<compile_context>
chip_gen: v7x
topology: tpu7x:2x2x1
jax: 0.10.0
libtpu: 0.0.40
codegen_flags: <defaults>
</compile_context>

<pallas_src>
import functools

import jax
import jax.numpy as jnp
from jax.experimental import pallas as pl
from jax.experimental.pallas import tpu as pltpu


def _round_up(x, m):
    return (x + m - 1) // m * m


def temporal_aggregate_kernel(x_ref, attn_ref, wv_ref, wp_ref, gamma_ref,
                              o_ref, v_scratch, *, heads, dim_head, tq):
    # x_ref     : (1, HW_pad, C_pad)       fmap, channels-last, resident per batch
    # attn_ref  : (1, heads, TQ, HW_pad)   query-row tile of temporal attention
    # wv_ref    : (C_pad, inner)           to_v weight (transposed), resident
    # wp_ref    : (inner, C_pad)           temporal_project weight (transposed), resident
    # gamma_ref : (1,)                     temporal_gamma, SMEM scalar
    # o_ref     : (1, TQ, C_pad)
    # v_scratch : (heads, HW_pad, dim_head) persistent per-batch value tensor
    i = pl.program_id(1)
    c_pad = o_ref.shape[2]

    # ---- once per batch: v_h = x_full @ Wv_h into persistent VMEM scratch ----
    @pl.when(i == 0)
    def _():
        x_full = x_ref[0]                                           # (HW_pad, C_pad)
        for h in range(heads):
            wv_h = wv_ref[:, h * dim_head:(h + 1) * dim_head]       # static slice of resident weight
            v_scratch[h] = jnp.dot(
                x_full, wv_h,
                preferred_element_type=jnp.float32).astype(v_scratch.dtype)

    # ---- per i-tile: per-head attention + fused projection-accumulate --------
    proj = jnp.zeros((tq, c_pad), jnp.float32)
    for h in range(heads):
        a_h = attn_ref[0, h]                                        # (TQ, HW_pad)
        o_h = jnp.dot(a_h, v_scratch[h],
                      preferred_element_type=jnp.float32)           # (TQ, dim_head), f32 acc
        wp_h = wp_ref[h * dim_head:(h + 1) * dim_head, :]           # (dim_head, C_pad) static slice
        proj = proj + jnp.dot(o_h.astype(wp_ref.dtype), wp_h,
                              preferred_element_type=jnp.float32)   # (TQ, C_pad)

    # ---- residual: o = x_tile + gamma * proj ---------------------------------
    row0 = pl.multiple_of(i * tq, tq)
    x_tile = x_ref[0, pl.ds(row0, tq), :]                           # (TQ, C_pad)
    gamma = gamma_ref[0].astype(jnp.float32)
    o_ref[0] = (x_tile.astype(jnp.float32) + gamma * proj).astype(o_ref.dtype)


def temporal_aggregate(temporal_attn, fmap, wv, wp, gamma, *,
                       heads, dim_head, tq=128):
    """temporal_attn: (B, heads, HW, HW); fmap: (B, C, H, W) (NCHW, like PyTorch).

    wv: to_v conv weight          (inner_dim, C, 1, 1)
    wp: temporal_project weight   (C, inner_dim, 1, 1)
    gamma: scalar parameter, shape (1,)
    Returns (B, C, H, W).
    """
    B, C, H, W = fmap.shape
    HW = H * W
    inner_dim = heads * dim_head
    assert temporal_attn.shape == (B, heads, HW, HW)

    # --- padding to TPU-friendly sizes (zeros are exactly neutral here) -------
    HW_pad = _round_up(HW, 128)
    C_pad = _round_up(C, 128)
    if tq % 8 != 0 or HW_pad % tq != 0:
        tq = 128                        # 128 always divides HW_pad
    tq = min(tq, HW_pad)
    n_i = HW_pad // tq

    # glue: NCHW -> (B, HW_pad, C_pad), channels-last
    x = jnp.transpose(fmap, (0, 2, 3, 1)).reshape(B, HW, C)
    x = jnp.pad(x, ((0, 0), (0, HW_pad - HW), (0, C_pad - C)))
    attn = jnp.pad(temporal_attn,
                   ((0, 0), (0, 0), (0, HW_pad - HW), (0, HW_pad - HW)))
    wv_mat = jnp.pad(jnp.transpose(wv.reshape(inner_dim, C)),
                     ((0, C_pad - C), (0, 0)))                      # (C_pad, inner)
    wp_mat = jnp.pad(jnp.transpose(wp.reshape(C, inner_dim)),
                     ((0, 0), (0, C_pad - C)))                      # (inner, C_pad)
    gamma_1d = gamma.reshape(1).astype(jnp.float32)

    kernel = functools.partial(temporal_aggregate_kernel,
                               heads=heads, dim_head=dim_head, tq=tq)

    itemsize = jnp.dtype(fmap.dtype).itemsize
    attn_itemsize = jnp.dtype(temporal_attn.dtype).itemsize

    # VMEM budget (double-buffered blocks + persistent scratch + weights).
    # NOTE: on v7x (64 MiB physical VMEM) pick `tq` so this stays under ~48 MiB.
    vmem_est = (2 * heads * tq * HW_pad * attn_itemsize
                + 2 * HW_pad * C_pad * itemsize
                + heads * HW_pad * dim_head * itemsize
                + 2 * tq * C_pad * itemsize
                + 4 * C_pad * inner_dim * itemsize)
    vmem_limit = max(32 * 1024 * 1024, int(vmem_est * 1.25))

    flops = 2 * B * (HW_pad * C_pad * inner_dim              # v (once per batch)
                     + heads * HW_pad * HW_pad * dim_head    # attn @ v
                     + HW_pad * inner_dim * C_pad)           # projection
    bytes_accessed = ((x.size + wv_mat.size + wp_mat.size) * itemsize
                      + attn.size * attn_itemsize
                      + B * HW_pad * C_pad * itemsize)

    out = pl.pallas_call(
        kernel,
        out_shape=jax.ShapeDtypeStruct((B, HW_pad, C_pad), fmap.dtype),
        grid_spec=pltpu.PrefetchScalarGridSpec(
            num_scalar_prefetch=0,
            grid=(B, n_i),
            in_specs=[
                # full fmap block per batch (resident across i; used for v and residual)
                pl.BlockSpec((1, HW_pad, C_pad), lambda b, i: (b, 0, 0)),
                # attention tiled over query rows
                pl.BlockSpec((1, heads, tq, HW_pad), lambda b, i: (b, 0, i, 0)),
                # weights: resident
                pl.BlockSpec((C_pad, inner_dim), lambda b, i: (0, 0)),
                pl.BlockSpec((inner_dim, C_pad), lambda b, i: (0, 0)),
                # gamma: single scalar in SMEM
                pl.BlockSpec(memory_space=pltpu.MemorySpace.SMEM),
            ],
            out_specs=pl.BlockSpec((1, tq, C_pad), lambda b, i: (b, i, 0)),
            scratch_shapes=[pltpu.VMEM((heads, HW_pad, dim_head), fmap.dtype)],
        ),
        compiler_params=pltpu.CompilerParams(
            # i carries the v-scratch dependency -> "arbitrary"; B is independent.
            dimension_semantics=("parallel", "arbitrary"),
            vmem_limit_bytes=vmem_limit),
        cost_estimate=pl.CostEstimate(flops=flops, transcendentals=0,
                                      bytes_accessed=bytes_accessed),
    )(x, attn, wv_mat, wp_mat, gamma_1d)

    # glue: (B, HW_pad, C_pad) -> NCHW (drop padding)
    out = out[:, :HW, :C].reshape(B, H, W, C)
    return jnp.transpose(out, (0, 3, 1, 2))


def reference_jax(temporal_attn, fmap, wv, wp, gamma, *, heads, dim_head):
    """Pure-JAX mirror of the PyTorch forward (NCHW), for verification."""
    B, C, H, W = fmap.shape
    inner_dim = heads * dim_head
    v = jnp.einsum('bchw,oc->bohw', fmap, wv.reshape(inner_dim, C),
                   precision='highest')
    v = v.reshape(B, heads, dim_head, H * W).transpose(0, 1, 3, 2)
    out = jnp.einsum('bhij,bhjd->bhid', temporal_attn, v, precision='highest')
    out = out.transpose(0, 1, 3, 2).reshape(B, inner_dim, H, W)
    out = jnp.einsum('bchw,oc->bohw', out, wp.reshape(C, inner_dim),
                     precision='highest')
    return fmap + gamma.reshape(()) * out


if __name__ == "__main__":
    # Small shapes consistent with the module (heads=4, dim_head=128 are the
    # module defaults).  C and H*W are deliberately non-multiples of 128 so the
    # wrapper padding path and the i-tiling (HW_pad=256 -> 2 tiles) are exercised.
    B, C, H, W = 2, 96, 15, 15
    heads, dim_head = 4, 128
    inner_dim = heads * dim_head
    HW = H * W

    key = jax.random.PRNGKey(0)
    k1, k2, k3, k4 = jax.random.split(key, 4)

    fmap = jax.random.normal(k1, (B, C, H, W), dtype=jnp.float32)
    temporal_attn = jax.nn.softmax(
        jax.random.normal(k2, (B, heads, HW, HW), dtype=jnp.float32), axis=-1)

    # NOTE: PyTorch inits temporal_gamma to 0; we use a nonzero value so the
    # aggregation path is actually exercised.
    wv = jax.random.normal(k3, (inner_dim, C, 1, 1), dtype=jnp.float32) * 0.05
    wp = jax.random.normal(k4, (C, inner_dim, 1, 1), dtype=jnp.float32) * 0.05
    gamma = jnp.array([0.1], dtype=jnp.float32)

    out = temporal_aggregate(temporal_attn, fmap, wv, wp, gamma,
                             heads=heads, dim_head=dim_head)
    out = jax.block_until_ready(out)

    ref = reference_jax(temporal_attn, fmap, wv, wp, gamma,
                        heads=heads, dim_head=dim_head)
    assert out.shape == (B, C, H, W)
    assert jnp.allclose(out, ref, rtol=1e-3, atol=1e-3), "mismatch vs reference"

    print("KERNEL_OK")
</pallas_src>

<mosaic_0001>
module attributes {stable_mosaic.version = 11 : i64} {
  func.func @temporal_aggregate_kernel(%arg0: i32, %arg1: i32, %arg2: memref<1x256x128xf32, #tpu.memory_space<vmem>>, %arg3: memref<1x4x128x256xf32, #tpu.memory_space<vmem>>, %arg4: memref<128x512xf32, #tpu.memory_space<vmem>>, %arg5: memref<512x128xf32, #tpu.memory_space<vmem>>, %arg6: memref<1xf32, #tpu.memory_space<smem>>, %arg7: memref<1x128x128xf32, #tpu.memory_space<vmem>>, %arg8: memref<4x256x128xf32, #tpu.memory_space<vmem>>) attributes {dimension_semantics = [#tpu.dimension_semantics<parallel>, #tpu.dimension_semantics<arbitrary>], iteration_bounds = array<i64: 2, 2>, scalar_prefetch = 0 : i64, scratch_operands = 1 : i64, tpu.core_type = #tpu.core_type<tc>, window_params = [{transform_indices = @transform_0, window_bounds = array<i64: 1, 256, 128>}, {transform_indices = @transform_1, window_bounds = array<i64: 1, 4, 128, 256>}, {pipeline_mode = #tpu.pipeline_mode<synchronous>, transform_indices = @transform_2, window_bounds = array<i64: 128, 512>}, {pipeline_mode = #tpu.pipeline_mode<synchronous>, transform_indices = @transform_3, window_bounds = array<i64: 512, 128>}, {transform_indices = @transform_4, window_bounds = array<i64: 1>}, {transform_indices = @transform_5, window_bounds = array<i64: 1, 128, 128>}]} {
    %c0_i32 = arith.constant 0 : i32
    %0 = arith.cmpi eq, %arg1, %c0_i32 : i32
    %1 = arith.extui %0 : i1 to i32
    %c0_i32_0 = arith.constant 0 : i32
    %2 = arith.cmpi ne, %1, %c0_i32_0 : i32
    scf.if %2 {
      %c0_44 = arith.constant 0 : index
      %c0_45 = arith.constant 0 : index
      %c0_46 = arith.constant 0 : index
      %48 = vector.load %arg2[%c0_44, %c0_45, %c0_46] : memref<1x256x128xf32, #tpu.memory_space<vmem>>, vector<1x256x128xf32>
      %49 = vector.shape_cast %48 : vector<1x256x128xf32> to vector<256x128xf32>
      %c0_47 = arith.constant 0 : index
      %c0_48 = arith.constant 0 : index
      %50 = vector.load %arg4[%c0_47, %c0_48] : memref<128x512xf32, #tpu.memory_space<vmem>>, vector<128x128xf32>
      %cst_49 = arith.constant dense<0.000000e+00> : vector<256x128xf32>
      %51 = tpu.matmul %49, %50, %cst_49 {dimension_numbers = #tpu.dot_dimension_numbers<[1], [0], [0], [1], [0, 0, 1, 1], [], []>} : vector<256x128xf32>, vector<128x128xf32>, vector<256x128xf32> -> vector<256x128xf32>
      %c0_50 = arith.constant 0 : index
      %c0_51 = arith.constant 0 : index
      %c0_52 = arith.constant 0 : index
      %52 = vector.load %arg8[%c0_50, %c0_51, %c0_52] : memref<4x256x128xf32, #tpu.memory_space<vmem>>, vector<1x256x128xf32>
      %53 = vector.shape_cast %52 : vector<1x256x128xf32> to vector<256x128xf32>
      %54 = vector.shape_cast %51 : vector<256x128xf32> to vector<1x256x128xf32>
      tpu.vector_store %arg8[%c0_50, %c0_51, %c0_52], %54 {strides = array<i32>} : memref<4x256x128xf32, #tpu.memory_space<vmem>>, vector<1x256x128xf32>,
      %c0_53 = arith.constant 0 : index
      %c128_54 = arith.constant 128 : index
      %55 = vector.load %arg4[%c0_53, %c128_54] : memref<128x512xf32, #tpu.memory_space<vmem>>, vector<128x128xf32>
      %cst_55 = arith.constant dense<0.000000e+00> : vector<256x128xf32>
      %56 = tpu.matmul %49, %55, %cst_55 {dimension_numbers = #tpu.dot_dimension_numbers<[1], [0], [0], [1], [0, 0, 1, 1], [], []>} : vector<256x128xf32>, vector<128x128xf32>, vector<256x128xf32> -> vector<256x128xf32>
      %c1_56 = arith.constant 1 : index
      %c0_57 = arith.constant 0 : index
      %c0_58 = arith.constant 0 : index
      %57 = vector.load %arg8[%c1_56, %c0_57, %c0_58] : memref<4x256x128xf32, #tpu.memory_space<vmem>>, vector<1x256x128xf32>
      %58 = vector.shape_cast %57 : vector<1x256x128xf32> to vector<256x128xf32>
      %59 = vector.shape_cast %56 : vector<256x128xf32> to vector<1x256x128xf32>
      tpu.vector_store %arg8[%c1_56, %c0_57, %c0_58], %59 {strides = array<i32>} : memref<4x256x128xf32, #tpu.memory_space<vmem>>, vector<1x256x128xf32>,
      %c0_59 = arith.constant 0 : index
      %c256_60 = arith.constant 256 : index
      %60 = vector.load %arg4[%c0_59, %c256_60] : memref<128x512xf32, #tpu.memory_space<vmem>>, vector<128x128xf32>
      %cst_61 = arith.constant dense<0.000000e+00> : vector<256x128xf32>
      %61 = tpu.matmul %49, %60, %cst_61 {dimension_numbers = #tpu.dot_dimension_numbers<[1], [0], [0], [1], [0, 0, 1, 1], [], []>} : vector<256x128xf32>, vector<128x128xf32>, vector<256x128xf32> -> vector<256x128xf32>
      %c2_62 = arith.constant 2 : index
      %c0_63 = arith.constant 0 : index
      %c0_64 = arith.constant 0 : index
      %62 = vector.load %arg8[%c2_62, %c0_63, %c0_64] : memref<4x256x128xf32, #tpu.memory_space<vmem>>, vector<1x256x128xf32>
      %63 = vector.shape_cast %62 : vector<1x256x128xf32> to vector<256x128xf32>
      %64 = vector.shape_cast %61 : vector<256x128xf32> to vector<1x256x128xf32>
      tpu.vector_store %arg8[%c2_62, %c0_63, %c0_64], %64 {strides = array<i32>} : memref<4x256x128xf32, #tpu.memory_space<vmem>>, vector<1x256x128xf32>,
      %c0_65 = arith.constant 0 : index
      %c384_66 = arith.constant 384 : index
      %65 = vector.load %arg4[%c0_65, %c384_66] : memref<128x512xf32, #tpu.memory_space<vmem>>, vector<128x128xf32>
      %cst_67 = arith.constant dense<0.000000e+00> : vector<256x128xf32>
      %66 = tpu.matmul %49, %65, %cst_67 {dimension_numbers = #tpu.dot_dimension_numbers<[1], [0], [0], [1], [0, 0, 1, 1], [], []>} : vector<256x128xf32>, vector<128x128xf32>, vector<256x128xf32> -> vector<256x128xf32>
      %c3_68 = arith.constant 3 : index
      %c0_69 = arith.constant 0 : index
      %c0_70 = arith.constant 0 : index
      %67 = vector.load %arg8[%c3_68, %c0_69, %c0_70] : memref<4x256x128xf32, #tpu.memory_space<vmem>>, vector<1x256x128xf32>
      %68 = vector.shape_cast %67 : vector<1x256x128xf32> to vector<256x128xf32>
      %69 = vector.shape_cast %66 : vector<256x128xf32> to vector<1x256x128xf32>
      tpu.vector_store %arg8[%c3_68, %c0_69, %c0_70], %69 {strides = array<i32>} : memref<4x256x128xf32, #tpu.memory_space<vmem>>, vector<1x256x128xf32>,
    } else {
    }
    %cst = arith.constant 0.000000e+00 : f32
    %3 = vector.broadcast %cst : f32 to vector<128x128xf32>
    %c0 = arith.constant 0 : index
    %c0_1 = arith.constant 0 : index
    %c0_2 = arith.constant 0 : index
    %c0_3 = arith.constant 0 : index
    %4 = vector.load %arg3[%c0, %c0_1, %c0_2, %c0_3] : memref<1x4x128x256xf32, #tpu.memory_space<vmem>>, vector<1x1x128x256xf32>
    %5 = vector.shape_cast %4 : vector<1x1x128x256xf32> to vector<128x256xf32>
    %c0_4 = arith.constant 0 : index
    %c0_5 = arith.constant 0 : index
    %c0_6 = arith.constant 0 : index
    %6 = vector.load %arg8[%c0_4, %c0_5, %c0_6] : memref<4x256x128xf32, #tpu.memory_space<vmem>>, vector<1x256x128xf32>
    %7 = vector.shape_cast %6 : vector<1x256x128xf32> to vector<256x128xf32>
    %cst_7 = arith.constant dense<0.000000e+00> : vector<128x128xf32>
    %8 = tpu.matmul %5, %7, %cst_7 {dimension_numbers = #tpu.dot_dimension_numbers<[1], [0], [0], [1], [0, 0, 1, 1], [], []>} : vector<128x256xf32>, vector<256x128xf32>, vector<128x128xf32> -> vector<128x128xf32>
    %c0_8 = arith.constant 0 : index
    %c0_9 = arith.constant 0 : index
    %9 = vector.load %arg5[%c0_8, %c0_9] : memref<512x128xf32, #tpu.memory_space<vmem>>, vector<128x128xf32>
    %cst_10 = arith.constant dense<0.000000e+00> : vector<128x128xf32>
    %10 = tpu.matmul %8, %9, %cst_10 {dimension_numbers = #tpu.dot_dimension_numbers<[1], [0], [0], [1], [0, 0, 1, 1], [], []>} : vector<128x128xf32>, vector<128x128xf32>, vector<128x128xf32> -> vector<128x128xf32>
    %11 = arith.addf %3, %10 : vector<128x128xf32>
    %c0_11 = arith.constant 0 : index
    %c1 = arith.constant 1 : index
    %c0_12 = arith.constant 0 : index
    %c0_13 = arith.constant 0 : index
    %12 = vector.load %arg3[%c0_11, %c1, %c0_12, %c0_13] : memref<1x4x128x256xf32, #tpu.memory_space<vmem>>, vector<1x1x128x256xf32>
    %13 = vector.shape_cast %12 : vector<1x1x128x256xf32> to vector<128x256xf32>
    %c1_14 = arith.constant 1 : index
    %c0_15 = arith.constant 0 : index
    %c0_16 = arith.constant 0 : index
    %14 = vector.load %arg8[%c1_14, %c0_15, %c0_16] : memref<4x256x128xf32, #tpu.memory_space<vmem>>, vector<1x256x128xf32>
    %15 = vector.shape_cast %14 : vector<1x256x128xf32> to vector<256x128xf32>
    %cst_17 = arith.constant dense<0.000000e+00> : vector<128x128xf32>
    %16 = tpu.matmul %13, %15, %cst_17 {dimension_numbers = #tpu.dot_dimension_numbers<[1], [0], [0], [1], [0, 0, 1, 1], [], []>} : vector<128x256xf32>, vector<256x128xf32>, vector<128x128xf32> -> vector<128x128xf32>
    %c128 = arith.constant 128 : index
    %c0_18 = arith.constant 0 : index
    %17 = vector.load %arg5[%c128, %c0_18] : memref<512x128xf32, #tpu.memory_space<vmem>>, vector<128x128xf32>
    %cst_19 = arith.constant dense<0.000000e+00> : vector<128x128xf32>
    %18 = tpu.matmul %16, %17, %cst_19 {dimension_numbers = #tpu.dot_dimension_numbers<[1], [0], [0], [1], [0, 0, 1, 1], [], []>} : vector<128x128xf32>, vector<128x128xf32>, vector<128x128xf32> -> vector<128x128xf32>
    %19 = arith.addf %11, %18 : vector<128x128xf32>
    %c0_20 = arith.constant 0 : index
    %c2 = arith.constant 2 : index
    %c0_21 = arith.constant 0 : index
    %c0_22 = arith.constant 0 : index
    %20 = vector.load %arg3[%c0_20, %c2, %c0_21, %c0_22] : memref<1x4x128x256xf32, #tpu.memory_space<vmem>>, vector<1x1x128x256xf32>
    %21 = vector.shape_cast %20 : vector<1x1x128x256xf32> to vector<128x256xf32>
    %c2_23 = arith.constant 2 : index
    %c0_24 = arith.constant 0 : index
    %c0_25 = arith.constant 0 : index
    %22 = vector.load %arg8[%c2_23, %c0_24, %c0_25] : memref<4x256x128xf32, #tpu.memory_space<vmem>>, vector<1x256x128xf32>
    %23 = vector.shape_cast %22 : vector<1x256x128xf32> to vector<256x128xf32>
    %cst_26 = arith.constant dense<0.000000e+00> : vector<128x128xf32>
    %24 = tpu.matmul %21, %23, %cst_26 {dimension_numbers = #tpu.dot_dimension_numbers<[1], [0], [0], [1], [0, 0, 1, 1], [], []>} : vector<128x256xf32>, vector<256x128xf32>, vector<128x128xf32> -> vector<128x128xf32>
    %c256 = arith.constant 256 : index
    %c0_27 = arith.constant 0 : index
    %25 = vector.load %arg5[%c256, %c0_27] : memref<512x128xf32, #tpu.memory_space<vmem>>, vector<128x128xf32>
    %cst_28 = arith.constant dense<0.000000e+00> : vector<128x128xf32>
    %26 = tpu.matmul %24, %25, %cst_28 {dimension_numbers = #tpu.dot_dimension_numbers<[1], [0], [0], [1], [0, 0, 1, 1], [], []>} : vector<128x128xf32>, vector<128x128xf32>, vector<128x128xf32> -> vector<128x128xf32>
    %27 = arith.addf %19, %26 : vector<128x128xf32>
    %c0_29 = arith.constant 0 : index
    %c3 = arith.constant 3 : index
    %c0_30 = arith.constant 0 : index
    %c0_31 = arith.constant 0 : index
    %28 = vector.load %arg3[%c0_29, %c3, %c0_30, %c0_31] : memref<1x4x128x256xf32, #tpu.memory_space<vmem>>, vector<1x1x128x256xf32>
    %29 = vector.shape_cast %28 : vector<1x1x128x256xf32> to vector<128x256xf32>
    %c3_32 = arith.constant 3 : index
    %c0_33 = arith.constant 0 : index
    %c0_34 = arith.constant 0 : index
    %30 = vector.load %arg8[%c3_32, %c0_33, %c0_34] : memref<4x256x128xf32, #tpu.memory_space<vmem>>, vector<1x256x128xf32>
    %31 = vector.shape_cast %30 : vector<1x256x128xf32> to vector<256x128xf32>
    %cst_35 = arith.constant dense<0.000000e+00> : vector<128x128xf32>
    %32 = tpu.matmul %29, %31, %cst_35 {dimension_numbers = #tpu.dot_dimension_numbers<[1], [0], [0], [1], [0, 0, 1, 1], [], []>} : vector<128x256xf32>, vector<256x128xf32>, vector<128x128xf32> -> vector<128x128xf32>
    %c384 = arith.constant 384 : index
    %c0_36 = arith.constant 0 : index
    %33 = vector.load %arg5[%c384, %c0_36] : memref<512x128xf32, #tpu.memory_space<vmem>>, vector<128x128xf32>
    %cst_37 = arith.constant dense<0.000000e+00> : vector<128x128xf32>
    %34 = tpu.matmul %32, %33, %cst_37 {dimension_numbers = #tpu.dot_dimension_numbers<[1], [0], [0], [1], [0, 0, 1, 1], [], []>} : vector<128x128xf32>, vector<128x128xf32>, vector<128x128xf32> -> vector<128x128xf32>
    %35 = arith.addf %27, %34 : vector<128x128xf32>
    %c128_i32 = arith.constant 128 : i32
    %36 = arith.muli %arg1, %c128_i32 : i32
    %37 = tpu.assume_multiple %36, 128 : i32
    %c0_38 = arith.constant 0 : index
    %38 = arith.index_cast %37 : i32 to index
    %c0_39 = arith.constant 0 : index
    %39 = vector.load %arg2[%c0_38, %38, %c0_39] : memref<1x256x128xf32, #tpu.memory_space<vmem>>, vector<1x128x128xf32>
    %40 = vector.shape_cast %39 : vector<1x128x128xf32> to vector<128x128xf32>
    %c0_40 = arith.constant 0 : index
    %41 = memref.load %arg6[%c0_40] : memref<1xf32, #tpu.memory_space<smem>>
    %42 = vector.broadcast %41 : f32 to vector<128x128xf32>
    %43 = arith.mulf %42, %35 : vector<128x128xf32>
    %44 = arith.addf %40, %43 : vector<128x128xf32>
    %c0_41 = arith.constant 0 : index
    %c0_42 = arith.constant 0 : index
    %c0_43 = arith.constant 0 : index
    %45 = vector.load %arg7[%c0_41, %c0_42, %c0_43] : memref<1x128x128xf32, #tpu.memory_space<vmem>>, vector<1x128x128xf32>
    %46 = vector.shape_cast %45 : vector<1x128x128xf32> to vector<128x128xf32>
    %47 = vector.shape_cast %44 : vector<128x128xf32> to vector<1x128x128xf32>
    tpu.vector_store %arg7[%c0_41, %c0_42, %c0_43], %47 {strides = array<i32>} : memref<1x128x128xf32, #tpu.memory_space<vmem>>, vector<1x128x128xf32>,
    return
  }
  func.func @transform_0(%arg0: i32, %arg1: i32) -> (i32, i32, i32) {
    %c0_i32 = arith.constant 0 : i32
    %c0_i32_0 = arith.constant 0 : i32
    %c0_i32_1 = arith.constant 0 : i32
    return %arg0, %c0_i32, %c0_i32_0 : i32, i32, i32
  }
  func.func @transform_1(%arg0: i32, %arg1: i32) -> (i32, i32, i32, i32) {
    %c0_i32 = arith.constant 0 : i32
    %c0_i32_0 = arith.constant 0 : i32
    %c0_i32_1 = arith.constant 0 : i32
    return %arg0, %c0_i32, %arg1, %c0_i32_0 : i32, i32, i32, i32
  }
  func.func @transform_2(%arg0: i32, %arg1: i32) -> (i32, i32) {
    %c0_i32 = arith.constant 0 : i32
    %c0_i32_0 = arith.constant 0 : i32
    %c0_i32_1 = arith.constant 0 : i32
    return %c0_i32, %c0_i32_0 : i32, i32
  }
  func.func @transform_3(%arg0: i32, %arg1: i32) -> (i32, i32) {
    %c0_i32 = arith.constant 0 : i32
    %c0_i32_0 = arith.constant 0 : i32
    %c0_i32_1 = arith.constant 0 : i32
    return %c0_i32, %c0_i32_0 : i32, i32
  }
  func.func @transform_4(%arg0: i32, %arg1: i32) -> i32 {
    %c0_i32 = arith.constant 0 : i32
    %c0_i32_0 = arith.constant 0 : i32
    return %c0_i32 : i32
  }
  func.func @transform_5(%arg0: i32, %arg1: i32) -> (i32, i32, i32) {
    %c0_i32 = arith.constant 0 : i32
    %c0_i32_0 = arith.constant 0 : i32
    return %arg0, %arg1, %c0_i32 : i32, i32, i32
  }
}

</mosaic_0001>

<llo_original>
// kernel: tpu_custom_call.1
$region0: #{tpu_custom_call.1}
  #allocation0 [shape = 'u32[]', space=smem, size = 0x4, offset = 0x4, fixed_abs, tag = 'smem constant byte address 0x4 - core index']
  #allocation1 [shape = 'u32[144,128]{1,0:T(1,128)}', space=vmem, size = 0x12000, scoped, tag = 'internal scratch']
  #allocation2 [shape = 'f32[4,256,128]{2,1,0:T(8,128)}', space=vmem, size = 0x80000, scoped, tag = 'scratch operand']
  #allocation3 [shape = 'f32[1]{0:T(128)S(6)}', space=smem, size = 0x200, scoped, tag = 'scoped memory for tpu_custom_call.1']
  #allocation13 [shape = 's32[]', space=sflag, size = 0x4, offset = 0, fixed_abs, tag = 'sflag constant byte address 0x0 - dummy sync flag']
  %s0 = inlined_call_operand.hbm [shape: f32[2,256,128], index: 0, kind: input, shape index: {}]
  %s1 = inlined_call_operand.hbm [shape: f32[2,4,256,256], index: 1, kind: input, shape index: {}]
  %s2 = inlined_call_operand.hbm [shape: f32[128,512], index: 2, kind: input, shape index: {}]
  %s3 = inlined_call_operand.hbm [shape: f32[512,128], index: 3, kind: input, shape index: {}]
  %s4 = inlined_call_operand.<no memory space> [shape: f32[1], index: 4, kind: input, shape index: {}]
  %s5 = inlined_call_operand.hbm [shape: f32[2,256,128], index: 5, kind: output, shape index: {}]
  %s6 = sld [smem:[#allocation0]]
  $region73: #{tpu_custom_call.1} parent=0
    _
  %s8 = ssub.s32 1, %s6
  %s9 = scalar_select 0, %s8, %s6
  %10 = sst [smem:[#allocation3]] %s4
  $region1: #{tpu_custom_call.1} parent=0
    #allocation4 [shape = 'u8[262144]{0}', space=vmem, size = 0x40000, scoped, tag = 'input window, operand 0']
    #allocation5 [shape = 's32[2]{0}', space=sflag, size = 0x8, scoped, tag = 'scoped memory for tpu_custom_call.1']
    #allocation6 [shape = 's32[2]{0}', space=sflag, size = 0x8, scoped, tag = 'scoped memory for tpu_custom_call.1']
    #allocation7 [shape = 'u8[1048576]{0}', space=vmem, size = 0x100000, scoped, tag = 'input window, operand 1']
    #allocation8 [shape = 's32[2]{0}', space=sflag, size = 0x8, scoped, tag = 'scoped memory for tpu_custom_call.1']
    #allocation9 [shape = 'u8[262144]{0}', space=vmem, size = 0x40000, scoped, tag = 'input window, operand 2, single buffered']
    #allocation10 [shape = 'u8[262144]{0}', space=vmem, size = 0x40000, scoped, tag = 'input window, operand 3, single buffered']
    #allocation11 [shape = 's32[1]{0}', space=sflag, size = 0x4, scoped, tag = 'scoped memory for tpu_custom_call.1']
    #allocation12 [shape = 'u8[131072]{0}', space=vmem, size = 0x20000, scoped, tag = 'output window, operand 0']
    %11 = vsyncpa [#allocation5], 0
    %s12 = scalar_lea.sflag [#allocation5], 1
    %13 = vsyncpa %s12, 0
    %14 = vsyncpa [#allocation8], 0
    %s15 = scalar_lea.sflag [#allocation8], 1
    %16 = vsyncpa %s15, 0
    %17 = vsyncpa [#allocation11], 0
    %18 = vsyncpa [#allocation6], 0
    %s19 = scalar_lea.sflag [#allocation6], 1
    %20 = vsyncpa %s19, 0
    loop: start=0, step=1, limit=6
    $region2: #{tpu_custom_call.1} parent=1 // loop_pre_header
      _
    $region3: #{tpu_custom_call.1} parent=1 // loop_header
      %s22 = sphi 0, %s26
      %p23 = scmp.ge.s32.totalorder %s22, 6
      %s29 = sphi 0, %s41
      %s30 = sphi 0, %s37
      %s31 = sphi 0, %s29
      %s32 = sphi 0, %s30
      %s33 = sphi 0, %s31
      %s34 = sphi 0, %s32
      %s44 = sphi 0, %s46
      %s47 = sphi 0, %s44
      %s48 = sphi 0, %s47
      %s64 = sphi 0, %s48
      %s72 = sphi 0, %s74
      %s75 = sphi 0, %s72
      %s76 = sphi 0, %s75
      %s92 = sphi 0, %s76
      %s96 = sphi 0, %s96
      %s98 = sphi 0, %s96
      %s99 = sphi 0, %s98
      %s113 = sphi 0, %s99
      %s117 = sphi 0, %s117
      %s119 = sphi 0, %s117
      %s120 = sphi 0, %s119
      %s134 = sphi 0, %s120
      %s138 = sphi 0, %s138
      %s140 = sphi 0, %s138
      %s141 = sphi 0, %s140
      %s155 = sphi 0, %s141
      %s163 = sphi 0, %s165
      %s166 = sphi 0, %s163
      %s167 = sphi 0, %s166
      %s183 = sphi 0, %s167
    $region4: #{tpu_custom_call.1} parent=1 // loop_header_branch
      %25 = sbr.rel (%p23) target = $region8
    $region5: #{tpu_custom_call.1} parent=1 // loop_body
      %s27 = ssub.s32 %s22, 1
      %s28 = ssub.s32 %s22, 2
      %s35 = sadd.s32 1, %s30
      %p36 = scmp.ge.s32.totalorder %s35, 2
      %s37 = scalar_select %p36, 0, %s35
      %s38 = sadd.s32 1, %s29
      %s39 = scalar_select %p36, %s38, %s29
      %p40 = scmp.ge.s32.totalorder %s39, 2
      %s41 = scalar_select %p40, 0, %s39
      %s42 = ssub.s32 %s29, %s41
      %p43 = scmp.eq.s32.totalorder %s42, 0
      %s45 = sadd.s32 %s44, 1
      %s46 = scalar_select %p43, %s44, %s45
      %p49 = pneg %p43
      %p50 = scmp.eq.s32.totalorder %s22, 3
      %p51 = por %p49, %p50
      %p52 = scmp.ne.s32.totalorder %s44, %s47
      %p53 = scmp.eq.s32.totalorder %s22, 0
      %p54 = por %p52, %p53
      %p55 = scmp.ne.s32.totalorder %s44, %s47
      %p56 = scmp.eq.s32.totalorder %s27, 3
      %p57 = por %p55, %p56
      %p58 = scmp.ne.s32.totalorder %s47, %s48
      %p59 = scmp.eq.s32.totalorder %s27, 0
      %p60 = por %p58, %p59
      %p61 = scmp.ne.s32.totalorder %s47, %s48
      %p62 = scmp.eq.s32.totalorder %s28, 3
      %p63 = por %p61, %p62
      %p65 = scmp.ne.s32.totalorder %s48, %s64
      %p66 = scmp.eq.s32.totalorder %s28, 0
      %p67 = por %p65, %p66
      %s68 = ssub.s32 %s29, %s41
      %s69 = ssub.s32 %s30, %s37
      %s70 = sor.u32 %s68, %s69
      %p71 = scmp.eq.s32.totalorder %s70, 0
      %s73 = sadd.s32 %s72, 1
      %s74 = scalar_select %p71, %s72, %s73
      %p77 = pneg %p71
      %p78 = scmp.eq.s32.totalorder %s22, 3
      %p79 = por %p77, %p78
      %p80 = scmp.ne.s32.totalorder %s72, %s75
      %p81 = scmp.eq.s32.totalorder %s22, 0
      %p82 = por %p80, %p81
      %p83 = scmp.ne.s32.totalorder %s72, %s75
      %p84 = scmp.eq.s32.totalorder %s27, 3
      %p85 = por %p83, %p84
      %p86 = scmp.ne.s32.totalorder %s75, %s76
      %p87 = scmp.eq.s32.totalorder %s27, 0
      %p88 = por %p86, %p87
      %p89 = scmp.ne.s32.totalorder %s75, %s76
      %p90 = scmp.eq.s32.totalorder %s28, 3
      %p91 = por %p89, %p90
      %p93 = scmp.ne.s32.totalorder %s76, %s92
      %p94 = scmp.eq.s32.totalorder %s28, 0
      %p95 = por %p93, %p94
      %s97 = sadd.s32 %s96, 1
      %p100 = scmp.eq.s32.totalorder %s22, 3
      %p101 = scmp.ne.s32.totalorder %s96, %s98
      %p102 = scmp.eq.s32.totalorder %s22, 0
      %p103 = por %p101, %p102
      %p104 = scmp.ne.s32.totalorder %s96, %s98
      %p105 = scmp.eq.s32.totalorder %s27, 3
      %p106 = por %p104, %p105
      %p107 = scmp.ne.s32.totalorder %s98, %s99
      %p108 = scmp.eq.s32.totalorder %s27, 0
      %p109 = por %p107, %p108
      %p110 = scmp.ne.s32.totalorder %s98, %s99
      %p111 = scmp.eq.s32.totalorder %s28, 3
      %p112 = por %p110, %p111
      %p114 = scmp.ne.s32.totalorder %s99, %s113
      %p115 = scmp.eq.s32.totalorder %s28, 0
      %p116 = por %p114, %p115
      %s118 = sadd.s32 %s117, 1
      %p121 = scmp.eq.s32.totalorder %s22, 3
      %p122 = scmp.ne.s32.totalorder %s117, %s119
      %p123 = scmp.eq.s32.totalorder %s22, 0
      %p124 = por %p122, %p123
      %p125 = scmp.ne.s32.totalorder %s117, %s119
      %p126 = scmp.eq.s32.totalorder %s27, 3
      %p127 = por %p125, %p126
      %p128 = scmp.ne.s32.totalorder %s119, %s120
      %p129 = scmp.eq.s32.totalorder %s27, 0
      %p130 = por %p128, %p129
      %p131 = scmp.ne.s32.totalorder %s119, %s120
      %p132 = scmp.eq.s32.totalorder %s28, 3
      %p133 = por %p131, %p132
      %p135 = scmp.ne.s32.totalorder %s120, %s134
      %p136 = scmp.eq.s32.totalorder %s28, 0
      %p137 = por %p135, %p136
      %s139 = sadd.s32 %s138, 1
      %p142 = scmp.eq.s32.totalorder %s22, 3
      %p143 = scmp.ne.s32.totalorder %s138, %s140
      %p144 = scmp.eq.s32.totalorder %s22, 0
      %p145 = por %p143, %p144
      %p146 = scmp.ne.s32.totalorder %s138, %s140
      %p147 = scmp.eq.s32.totalorder %s27, 3
      %p148 = por %p146, %p147
      %p149 = scmp.ne.s32.totalorder %s140, %s141
      %p150 = scmp.eq.s32.totalorder %s27, 0
      %p151 = por %p149, %p150
      %p152 = scmp.ne.s32.totalorder %s140, %s141
      %p153 = scmp.eq.s32.totalorder %s28, 3
      %p154 = por %p152, %p153
      %p156 = scmp.ne.s32.totalorder %s141, %s155
      %p157 = scmp.eq.s32.totalorder %s28, 0
      %p158 = por %p156, %p157
      %s159 = ssub.s32 %s29, %s41
      %s160 = ssub.s32 %s30, %s37
      %s161 = sor.u32 %s159, %s160
      %p162 = scmp.eq.s32.totalorder %s161, 0
      %s164 = sadd.s32 %s163, 1
      %s165 = scalar_select %p162, %s163, %s164
      %p168 = pneg %p162
      %p169 = scmp.eq.s32.totalorder %s22, 3
      %p170 = por %p168, %p169
      %p171 = scmp.ne.s32.totalorder %s163, %s166
      %p172 = scmp.eq.s32.totalorder %s22, 0
      %p173 = por %p171, %p172
      %p174 = scmp.ne.s32.totalorder %s163, %s166
      %p175 = scmp.eq.s32.totalorder %s27, 3
      %p176 = por %p174, %p175
      %p177 = scmp.ne.s32.totalorder %s166, %s167
      %p178 = scmp.eq.s32.totalorder %s27, 0
      %p179 = por %p177, %p178
      %p180 = scmp.ne.s32.totalorder %s166, %s167
      %p181 = scmp.eq.s32.totalorder %s28, 3
      %p182 = por %p180, %p181
      %p184 = scmp.ne.s32.totalorder %s167, %s183
      %p185 = scmp.eq.s32.totalorder %s28, 0
      %p186 = por %p184, %p185
      %p187 = scmp.le.s32.totalorder 1, %s22
      %p188 = scmp.lt.s32.totalorder %s22, 5
      %p189 = pnand %p187, %p188
      %p190 = pneg %p189
      // Predicated region
      $region9: #{tpu_custom_call.1} parent=5 // pred_check
        _
      $region10: #{tpu_custom_call.1} parent=5 // pred_check_branch
        %192 = sbr.rel (%p189) target = $region12
      $region11: #{tpu_custom_call.1} parent=5 // pred_region
        %s193 = ssub.s32 %s22, 1
        // Predicated region
        $region13: #{tpu_custom_call.1} parent=11 // pred_check
          %p194 = pneg %p109
        $region14: #{tpu_custom_call.1} parent=11 // pred_check_branch
          %196 = sbr.rel (%p194) target = $region16
        $region15: #{tpu_custom_call.1} parent=11 // pred_region
          %s198 = ssub.s32 8192, 8192
          %199 = vsyncadd [#allocation8], %s198
          %s200 = sshll.u32 [#allocation9], 4
          %s201 = int_to_ptr.vmem [resolvable:$true] %s200
          %206 = dma.hbm_to_vmem [thread:$0]  %s2, 8192, %s201, [#allocation8], 512, 512, 32
        $region16: #{tpu_custom_call.1} parent=11 // pred_fallthru
          _
        // Predicated region
        $region17: #{tpu_custom_call.1} parent=11 // pred_check
          %p207 = pneg %p130
        $region18: #{tpu_custom_call.1} parent=11 // pred_check_branch
          %209 = sbr.rel (%p207) target = $region20
        $region19: #{tpu_custom_call.1} parent=11 // pred_region
          %s211 = ssub.s32 8192, 8192
          %212 = vsyncadd [#allocation11], %s211
          %s213 = sshll.u32 [#allocation10], 4
          %s214 = int_to_ptr.vmem [resolvable:$true] %s213
          %219 = dma.hbm_to_vmem [thread:$0]  %s3, 8192, %s214, [#allocation11], 128, 128, 8
        $region20: #{tpu_custom_call.1} parent=11 // pred_fallthru
          _
        // Predicated region
        $region21: #{tpu_custom_call.1} parent=11 // pred_check
          %p220 = pneg %p151
        $region22: #{tpu_custom_call.1} parent=11 // pred_check_branch
          %222 = sbr.rel (%p220) target = $region24
        $region23: #{tpu_custom_call.1} parent=11 // pred_region
          _
        $region24: #{tpu_custom_call.1} parent=11 // pred_fallthru
          _
      $region12: #{tpu_custom_call.1} parent=5 // pred_fallthru
        _
      %p223 = scmp.lt.s32.totalorder %s22, 4
      // Predicated region
      $region25: #{tpu_custom_call.1} parent=5 // pred_check
        %p224 = pneg %p223
      $region26: #{tpu_custom_call.1} parent=5 // pred_check_branch
        %226 = sbr.rel (%p224) target = $region28
      $region27: #{tpu_custom_call.1} parent=5 // pred_region
        // Predicated region
        $region29: #{tpu_custom_call.1} parent=27 // pred_check
          %p227 = pneg %p54
        $region30: #{tpu_custom_call.1} parent=27 // pred_check_branch
          %229 = sbr.rel (%p227) target = $region32
        $region31: #{tpu_custom_call.1} parent=27 // pred_region
          %s230 = sand.u32 %s44, 1
          %s231 = scalar_lea.sflag [#allocation5], %s230
          %s232 = sand.u32 %s44, 1
          %s233 = smul.addr %s232, 256
          %s234 = scalar_lea.vmem [#allocation4], %s233
          %s236 = ssub.s32 4096, 4096
          %237 = vsyncadd %s231, %s236
          %s238 = smul.addr %s29, 32
          %s239 = smul.addr %s238, 128
          %s240 = scalar_lea.hbm %s0, %s239
          %s241 = sshll.u32 %s234, 4
          %s242 = int_to_ptr.vmem [resolvable:$true] %s241
          %247 = dma.hbm_to_vmem [thread:$0]  %s240, 4096, %s242, %s231, 128, 128, 8
        $region32: #{tpu_custom_call.1} parent=27 // pred_fallthru
          _
        // Predicated region
        $region33: #{tpu_custom_call.1} parent=27 // pred_check
          %p248 = pneg %p82
        $region34: #{tpu_custom_call.1} parent=27 // pred_check_branch
          %250 = sbr.rel (%p248) target = $region36
        $region35: #{tpu_custom_call.1} parent=27 // pred_region
          #allocation14 [shape = 'u32[6]{0}', space=smem, size = 0x18, scoped, tag = 'DMA stride descriptor']
          %s251 = sand.u32 %s22, 1
          %s252 = scalar_lea.sflag [#allocation8], %s251
          %s253 = sand.u32 %s72, 1
          %s254 = smul.addr %s253, 1024
          %s255 = scalar_lea.vmem [#allocation7], %s254
          %s256 = smul.u32 16, %s30
          %s258 = ssub.s32 16384, 16384
          %259 = vsyncadd %s252, %s258
          %s260 = smul.addr %s256, 2
          %s261 = smul.addr %s29, 256
          %s262 = sadd.s32 %s260, %s261
          %s263 = smul.addr %s262, 128
          %s264 = scalar_lea.hbm %s1, %s263
          %s266 = sshll.u32 1, 14
          %s267 = sxor.u32 4294967295, %s266
          %s269 = sld [smem:[#allocation0]]
          %s270 = sadd.s32 2, %s269
          %s272 = sshll.u32 7, 26
          %s273 = sxor.u32 4294967295, %s272
          %s274 = sand.u32 0, %s273
          %s275 = sshll.u32 %s270, 26
          %s276 = sor.u32 %s274, %s275
          %s277 = sshll.u32 %s255, 4
          %s278 = int_to_ptr.vmem [resolvable:$true] %s277
          %284 = sst [smem:[#allocation14]] 8192
          %s285 = scalar_lea.smem [#allocation14], 1
          %286 = sst [smem:[%s285]] 4096
          %s287 = scalar_lea.smem [#allocation14], 2
          %288 = sst [smem:[%s287]] 16
          %s289 = scalar_lea.smem [#allocation14], 3
          %290 = sst [smem:[%s289]] 256
          %s291 = scalar_lea.smem [#allocation14], 4
          %292 = sst [smem:[%s291]] 256
          %s293 = scalar_lea.smem [#allocation14], 5
          %294 = sst [smem:[%s293]] 16
          %296 = dma.general %s264, 16384, %s278, %s252, [#allocation13], [#allocation14], %s276, 0
        $region36: #{tpu_custom_call.1} parent=27 // pred_fallthru
          _
      $region28: #{tpu_custom_call.1} parent=5 // pred_fallthru
        _
      %p297 = scmp.le.s32.totalorder 1, %s22
      %p298 = scmp.lt.s32.totalorder %s22, 5
      %p299 = pnand %p297, %p298
      %p300 = pneg %p299
      // Predicated region
      $region37: #{tpu_custom_call.1} parent=5 // pred_check
        _
      $region38: #{tpu_custom_call.1} parent=5 // pred_check_branch
        %302 = sbr.rel (%p299) target = $region40
      $region39: #{tpu_custom_call.1} parent=5 // pred_region
        %s303 = ssub.s32 %s22, 1
        %s304 = sand.u32 %s47, 1
        %s305 = scalar_lea.sflag [#allocation5], %s304
        %s306 = sand.u32 %s47, 1
        %s307 = smul.addr %s306, 256
        %s308 = scalar_lea.vmem [#allocation4], %s307
        // Predicated region
        $region41: #{tpu_custom_call.1} parent=39 // pred_check
          %p309 = pneg %p60
        $region42: #{tpu_custom_call.1} parent=39 // pred_check_branch
          %311 = sbr.rel (%p309) target = $region44
        $region43: #{tpu_custom_call.1} parent=39 // pred_region
          %312 = dma.done %s305, 4096
        $region44: #{tpu_custom_call.1} parent=39 // pred_fallthru
          _
        %s313 = sand.u32 %s27, 1
        %s314 = scalar_lea.sflag [#allocation8], %s313
        %s315 = sand.u32 %s75, 1
        %s316 = smul.addr %s315, 1024
        %s317 = scalar_lea.vmem [#allocation7], %s316
        // Predicated region
        $region45: #{tpu_custom_call.1} parent=39 // pred_check
          %p318 = pneg %p88
        $region46: #{tpu_custom_call.1} parent=39 // pred_check_branch
          %320 = sbr.rel (%p318) target = $region48
        $region47: #{tpu_custom_call.1} parent=39 // pred_region
          %321 = dma.done %s314, 16384
        $region48: #{tpu_custom_call.1} parent=39 // pred_fallthru
          _
        // Predicated region
        $region49: #{tpu_custom_call.1} parent=39 // pred_check
          %p322 = pneg %p109
        $region50: #{tpu_custom_call.1} parent=39 // pred_check_branch
          %324 = sbr.rel (%p322) target = $region52
        $region51: #{tpu_custom_call.1} parent=39 // pred_region
          %325 = dma.done [#allocation8], 8192
        $region52: #{tpu_custom_call.1} parent=39 // pred_fallthru
          _
        // Predicated region
        $region53: #{tpu_custom_call.1} parent=39 // pred_check
          %p326 = pneg %p130
        $region54: #{tpu_custom_call.1} parent=39 // pred_check_branch
          %328 = sbr.rel (%p326) target = $region56
        $region55: #{tpu_custom_call.1} parent=39 // pred_region
          %329 = dma.done [#allocation11], 8192
        $region56: #{tpu_custom_call.1} parent=39 // pred_fallthru
          _
        %s330 = sand.u32 %s47, 1
        %s331 = scalar_lea.sflag [#allocation5], %s330
        %s332 = sand.u32 %s47, 1
        %s333 = smul.addr %s332, 256
        %s334 = scalar_lea.vmem [#allocation4], %s333
        %p335 = pneg %p60
        %p336 = pneg %p57
        %s337 = sand.u32 %s27, 1
        %s338 = scalar_lea.sflag [#allocation8], %s337
        %s339 = sand.u32 %s75, 1
        %s340 = smul.addr %s339, 1024
        %s341 = scalar_lea.vmem [#allocation7], %s340
        %p342 = pneg %p88
        %p343 = pneg %p85
        %p344 = pneg %p109
        %p345 = pneg %p106
        %p346 = pneg %p130
        %p347 = pneg %p127
        %p348 = pneg %p151
        %p349 = pneg %p148
        %p350 = pneg %p179
        %p351 = pneg %p176
        %s352 = sand.u32 %s166, 1
        %s353 = scalar_lea.sflag [#allocation6], %s352
        %s354 = sand.u32 %s166, 1
        %s355 = smul.addr %s354, 128
        %s356 = scalar_lea.vmem [#allocation12], %s355
        %s357 = smul.u32 16, %s32
        %s358 = smul.u32 16, %s32
        %p359 = scmp.eq.s32.totalorder %s32, 0
        // Predicated region
        $region57: #{tpu_custom_call.1} parent=39 // pred_check
          %p360 = pneg %p359
        $region58: #{tpu_custom_call.1} parent=39 // pred_check_branch
          %362 = sbr.rel (%p360) target = $region60
        $region59: #{tpu_custom_call.1} parent=39 // pred_region
          %v363 = vld [vmem:[%s308] sm:$0xff]
          %v364 = vld [vmem:[%s308 + $0x8] sm:$0xff]
          %v365 = vld [vmem:[%s308 + $0x10] sm:$0xff]
          %v366 = vld [vmem:[%s308 + $0x18] sm:$0xff]
          %v367 = vld [vmem:[%s308 + $0x20] sm:$0xff]
          %v368 = vld [vmem:[%s308 + $0x28] sm:$0xff]
          %v369 = vld [vmem:[%s308 + $0x30] sm:$0xff]
          %v370 = vld [vmem:[%s308 + $0x38] sm:$0xff]
          %v371 = vld [vmem:[%s308 + $0x40] sm:$0xff]
          %v372 = vld [vmem:[%s308 + $0x48] sm:$0xff]
          %v373 = vld [vmem:[%s308 + $0x50] sm:$0xff]
          %v374 = vld [vmem:[%s308 + $0x58] sm:$0xff]
          %v375 = vld [vmem:[%s308 + $0x60] sm:$0xff]
          %v376 = vld [vmem:[%s308 + $0x68] sm:$0xff]
          %v377 = vld [vmem:[%s308 + $0x70] sm:$0xff]
          %v378 = vld [vmem:[%s308 + $0x78] sm:$0xff]
          %v379 = vld [vmem:[%s308 + $0x80] sm:$0xff]
          %v380 = vld [vmem:[%s308 + $0x88] sm:$0xff]
          %v381 = vld [vmem:[%s308 + $0x90] sm:$0xff]
          %v382 = vld [vmem:[%s308 + $0x98] sm:$0xff]
          %v383 = vld [vmem:[%s308 + $0xa0] sm:$0xff]
          %v384 = vld [vmem:[%s308 + $0xa8] sm:$0xff]
          %v385 = vld [vmem:[%s308 + $0xb0] sm:$0xff]
          %v386 = vld [vmem:[%s308 + $0xb8] sm:$0xff]
          %v387 = vld [vmem:[%s308 + $0xc0] sm:$0xff]
          %v388 = vld [vmem:[%s308 + $0xc8] sm:$0xff]
          %v389 = vld [vmem:[%s308 + $0xd0] sm:$0xff]
          %v390 = vld [vmem:[%s308 + $0xd8] sm:$0xff]
          %v391 = vld [vmem:[%s308 + $0xe0] sm:$0xff]
          %v392 = vld [vmem:[%s308 + $0xe8] sm:$0xff]
          %v393 = vld [vmem:[%s308 + $0xf0] sm:$0xff]
          %v394 = vld [vmem:[%s308 + $0xf8] sm:$0xff]
          %v395 = vld [vmem:[#allocation9] sm:$0xff]
          %v396 = vld [vmem:[#allocation9 + $0x20] sm:$0xff]
          %v397 = vld [vmem:[#allocation9 + $0x40] sm:$0xff]
          %v398 = vld [vmem:[#allocation9 + $0x60] sm:$0xff]
          %v399 = vld [vmem:[#allocation9 + $0x80] sm:$0xff]
          %v400 = vld [vmem:[#allocation9 + $0xa0] sm:$0xff]
          %v401 = vld [vmem:[#allocation9 + $0xc0] sm:$0xff]
          %v402 = vld [vmem:[#allocation9 + $0xe0] sm:$0xff]
          %v403 = vld [vmem:[#allocation9 + $0x100] sm:$0xff]
          %v404 = vld [vmem:[#allocation9 + $0x120] sm:$0xff]
          %v405 = vld [vmem:[#allocation9 + $0x140] sm:$0xff]
          %v406 = vld [vmem:[#allocation9 + $0x160] sm:$0xff]
          %v407 = vld [vmem:[#allocation9 + $0x180] sm:$0xff]
          %v408 = vld [vmem:[#allocation9 + $0x1a0] sm:$0xff]
          %v409 = vld [vmem:[#allocation9 + $0x1c0] sm:$0xff]
          %v410 = vld [vmem:[#allocation9 + $0x1e0] sm:$0xff]
          %411 = vmatprep.subr.mxu0 0.0
          %412 = vmatpush1.msra.mxu0 %v395
          %413 = vmatprep.subr.mxu0 0.0
          %414 = vmatpush1.msra.mxu0 %v396
          %415 = vmatprep.subr.mxu0 0.0
          %416 = vmatpush1.msra.mxu0 %v397
          %417 = vmatprep.subr.mxu0 0.0
          %418 = vmatpush1.msra.mxu0 %v398
          %419 = vmatprep.subr.mxu0 0.0
          %420 = vmatpush1.msra.mxu0 %v399
          %421 = vmatprep.subr.mxu0 0.0
          %422 = vmatpush1.msra.mxu0 %v400
          %423 = vmatprep.subr.mxu0 0.0
          %424 = vmatpush1.msra.mxu0 %v401
          %425 = vmatprep.subr.mxu0 0.0
          %426 = vmatpush1.msra.mxu0 %v402
          %427 = vmatprep.subr.mxu0 0.0
          %428 = vmatpush1.msra.mxu0 %v403
          %429 = vmatprep.subr.mxu0 0.0
          %430 = vmatpush1.msra.mxu0 %v404
          %431 = vmatprep.subr.mxu0 0.0
          %432 = vmatpush1.msra.mxu0 %v405
          %433 = vmatprep.subr.mxu0 0.0
          %434 = vmatpush1.msra.mxu0 %v406
          %435 = vmatprep.subr.mxu0 0.0
          %436 = vmatpush1.msra.mxu0 %v407
          %437 = vmatprep.subr.mxu0 0.0
          %438 = vmatpush1.msra.mxu0 %v408
          %439 = vmatprep.subr.mxu0 0.0
          %440 = vmatpush1.msra.mxu0 %v409
          %441 = vmatprep.subr.mxu0 0.0
          %442 = vmatpush1.msra.mxu0 %v410
          %443 = vmatprep.subr.mxu0 0.0
          %444 = vmatpush1.msra.mxu0 0.0
          %445 = vmatprep.subr.mxu0 0.0
          %446 = vmatpush1.msra.mxu0 0.0
          %447 = vmatprep.subr.mxu0 0.0
          %448 = vmatpush1.msra.mxu0 0.0
          %449 = vmatprep.subr.mxu0 0.0
          %450 = vmatpush1.msra.mxu0 0.0
          %451 = vmatprep.subr.mxu0 0.0
          %452 = vmatpush1.msra.mxu0 0.0
          %453 = vmatprep.subr.mxu0 0.0
          %454 = vmatpush1.msra.mxu0 0.0
          %455 = vmatprep.subr.mxu0 0.0
          %456 = vmatpush1.msra.mxu0 0.0
          %457 = vmatprep.subr.mxu0 0.0
          %458 = vmatpush1.msra.mxu0 0.0
          %459 = vmatprep.subr.mxu0 0.0
          %460 = vmatpush1.msra.mxu0 0.0
          %461 = vmatprep.subr.mxu0 0.0
          %462 = vmatpush1.msra.mxu0 0.0
          %463 = vmatprep.subr.mxu0 0.0
          %464 = vmatpush1.msra.mxu0 0.0
          %465 = vmatprep.subr.mxu0 0.0
          %466 = vmatpush1.msra.mxu0 0.0
          %467 = vmatprep.subr.mxu0 0.0
          %468 = vmatpush1.msra.mxu0 0.0
          %469 = vmatprep.subr.mxu0 0.0
          %470 = vmatpush1.msra.mxu0 0.0
          %471 = vmatprep.subr.mxu0 0.0
          %472 = vmatpush1.msra.mxu0 0.0
          %473 = vmatprep.subr.mxu0 0.0
          %474 = vmatpush1.msra.mxu0 0.0
          %475 = vmatprep.mubr.f32.mxu0 0.0
          %476 = vmatmul.mubr.f32.gmra.mrb[0].mxu0 %v363
          %v477 = vpop.f32.mrb[0].mxu0
          %v478 = vadd.f32 0.0, %v477
          %v479 = vpop.f32.mrb[0].mxu0
          %480 = vmatprep.mubr.f32.mxu0 0.0
          %481 = vmatmul.mubr.f32.gmra.mrb[0].mxu0 %v364
          %v482 = vpop.f32.mrb[0].mxu0
          %v483 = vadd.f32 0.0, %v482
          %v484 = vpop.f32.mrb[0].mxu0
          %485 = vmatprep.mubr.f32.mxu0 0.0
          %486 = vmatmul.mubr.f32.gmra.mrb[0].mxu0 %v365
          %v487 = vpop.f32.mrb[0].mxu0
          %v488 = vadd.f32 0.0, %v487
          %v489 = vpop.f32.mrb[0].mxu0
          %490 = vmatprep.mubr.f32.mxu0 0.0
          %491 = vmatmul.mubr.f32.gmra.mrb[0].mxu0 %v366
          %v492 = vpop.f32.mrb[0].mxu0
          %v493 = vadd.f32 0.0, %v492
          %v494 = vpop.f32.mrb[0].mxu0
          %495 = vmatprep.mubr.f32.mxu0 0.0
          %496 = vmatmul.mubr.f32.gmra.mrb[0].mxu0 %v367
          %v497 = vpop.f32.mrb[0].mxu0
          %v498 = vadd.f32 0.0, %v497
          %v499 = vpop.f32.mrb[0].mxu0
          %500 = vmatprep.mubr.f32.mxu0 0.0
          %501 = vmatmul.mubr.f32.gmra.mrb[0].mxu0 %v368
          %v502 = vpop.f32.mrb[0].mxu0
          %v503 = vadd.f32 0.0, %v502
          %v504 = vpop.f32.mrb[0].mxu0
          %505 = vmatprep.mubr.f32.mxu0 0.0
          %506 = vmatmul.mubr.f32.gmra.mrb[0].mxu0 %v369
          %v507 = vpop.f32.mrb[0].mxu0
          %v508 = vadd.f32 0.0, %v507
          %v509 = vpop.f32.mrb[0].mxu0
          %510 = vmatprep.mubr.f32.mxu0 0.0
          %511 = vmatmul.mubr.f32.gmra.mrb[0].mxu0 %v370
          %v512 = vpop.f32.mrb[0].mxu0
          %v513 = vadd.f32 0.0, %v512
          %v514 = vpop.f32.mrb[0].mxu0
          %515 = vmatprep.mubr.f32.mxu0 0.0
          %516 = vmatmul.mubr.f32.gmra.mrb[0].mxu0 %v371
          %v517 = vpop.f32.mrb[0].mxu0
          %v518 = vadd.f32 0.0, %v517
          %v519 = vpop.f32.mrb[0].mxu0
          %520 = vmatprep.mubr.f32.mxu0 0.0
          %521 = vmatmul.mubr.f32.gmra.mrb[0].mxu0 %v372
          %v522 = vpop.f32.mrb[0].mxu0
          %v523 = vadd.f32 0.0, %v522
          %v524 = vpop.f32.mrb[0].mxu0
          %525 = vmatprep.mubr.f32.mxu0 0.0
          %526 = vmatmul.mubr.f32.gmra.mrb[0].mxu0 %v373
          %v527 = vpop.f32.mrb[0].mxu0
          %v528 = vadd.f32 0.0, %v527
          %v529 = vpop.f32.mrb[0].mxu0
          %530 = vmatprep.mubr.f32.mxu0 0.0
          %531 = vmatmul.mubr.f32.gmra.mrb[0].mxu0 %v374
          %v532 = vpop.f32.mrb[0].mxu0
          %v533 = vadd.f32 0.0, %v532
          %v534 = vpop.f32.mrb[0].mxu0
          %535 = vmatprep.mubr.f32.mxu0 0.0
          %536 = vmatmul.mubr.f32.gmra.mrb[0].mxu0 %v375
          %v537 = vpop.f32.mrb[0].mxu0
          %v538 = vadd.f32 0.0, %v537
          %v539 = vpop.f32.mrb[0].mxu0
          %540 = vmatprep.mubr.f32.mxu0 0.0
          %541 = vmatmul.mubr.f32.gmra.mrb[0].mxu0 %v376
          %v542 = vpop.f32.mrb[0].mxu0
          %v543 = vadd.f32 0.0, %v542
          %v544 = vpop.f32.mrb[0].mxu0
          %545 = vmatprep.mubr.f32.mxu0 0.0
          %546 = vmatmul.mubr.f32.gmra.mrb[0].mxu0 %v377
          %v547 = vpop.f32.mrb[0].mxu0
          %v548 = vadd.f32 0.0, %v547
          %v549 = vpop.f32.mrb[0].mxu0
          %550 = vmatprep.mubr.f32.mxu0 0.0
          %551 = vmatmul.mubr.f32.gmra.mrb[0].mxu0 %v378
          %v552 = vpop.f32.mrb[0].mxu0
          %v553 = vadd.f32 0.0, %v552
          %v554 = vpop.f32.mrb[0].mxu0
          %555 = vmatprep.mubr.f32.mxu0 0.0
          %556 = vmatmul.mubr.f32.gmra.mrb[0].mxu0 %v379
          %v557 = vpop.f32.mrb[0].mxu0
          %v558 = vadd.f32 0.0, %v557
          %v559 = vpop.f32.mrb[0].mxu0
          %560 = vmatprep.mubr.f32.mxu0 0.0
          %561 = vmatmul.mubr.f32.gmra.mrb[0].mxu0 %v380
          %v562 = vpop.f32.mrb[0].mxu0
          %v563 = vadd.f32 0.0, %v562
          %v564 = vpop.f32.mrb[0].mxu0
          %565 = vmatprep.mubr.f32.mxu0 0.0
          %566 = vmatmul.mubr.f32.gmra.mrb[0].mxu0 %v381
          %v567 = vpop.f32.mrb[0].mxu0
          %v568 = vadd.f32 0.0, %v567
          %v569 = vpop.f32.mrb[0].mxu0
          %570 = vmatprep.mubr.f32.mxu0 0.0
          %571 = vmatmul.mubr.f32.gmra.mrb[0].mxu0 %v382
          %v572 = vpop.f32.mrb[0].mxu0
          %v573 = vadd.f32 0.0, %v572
          %v574 = vpop.f32.mrb[0].mxu0
          %575 = vmatprep.mubr.f32.mxu0 0.0
          %576 = vmatmul.mubr.f32.gmra.mrb[0].mxu0 %v383
          %v577 = vpop.f32.mrb[0].mxu0
          %v578 = vadd.f32 0.0, %v577
          %v579 = vpop.f32.mrb[0].mxu0
          %580 = vmatprep.mubr.f32.mxu0 0.0
          %581 = vmatmul.mubr.f32.gmra.mrb[0].mxu0 %v384
          %v582 = vpop.f32.mrb[0].mxu0
          %v583 = vadd.f32 0.0, %v582
          %v584 = vpop.f32.mrb[0].mxu0
          %585 = vmatprep.mubr.f32.mxu0 0.0
          %586 = vmatmul.mubr.f32.gmra.mrb[0].mxu0 %v385
          %v587 = vpop.f32.mrb[0].mxu0
          %v588 = vadd.f32 0.0, %v587
          %v589 = vpop.f32.mrb[0].mxu0
          %590 = vmatprep.mubr.f32.mxu0 0.0
          %591 = vmatmul.mubr.f32.gmra.mrb[0].mxu0 %v386
          %v592 = vpop.f32.mrb[0].mxu0
          %v593 = vadd.f32 0.0, %v592
          %v594 = vpop.f32.mrb[0].mxu0
          %595 = vmatprep.mubr.f32.mxu0 0.0
          %596 = vmatmul.mubr.f32.gmra.mrb[0].mxu0 %v387
          %v597 = vpop.f32.mrb[0].mxu0
          %v598 = vadd.f32 0.0, %v597
          %v599 = vpop.f32.mrb[0].mxu0
          %600 = vmatprep.mubr.f32.mxu0 0.0
          %601 = vmatmul.mubr.f32.gmra.mrb[0].mxu0 %v388
          %v602 = vpop.f32.mrb[0].mxu0
          %v603 = vadd.f32 0.0, %v602
          %v604 = vpop.f32.mrb[0].mxu0
          %605 = vmatprep.mubr.f32.mxu0 0.0
          %606 = vmatmul.mubr.f32.gmra.mrb[0].mxu0 %v389
          %v607 = vpop.f32.mrb[0].mxu0
          %v608 = vadd.f32 0.0, %v607
          %v609 = vpop.f32.mrb[0].mxu0
          %610 = vmatprep.mubr.f32.mxu0 0.0
          %611 = vmatmul.mubr.f32.gmra.mrb[0].mxu0 %v390
          %v612 = vpop.f32.mrb[0].mxu0
          %v613 = vadd.f32 0.0, %v612
          %v614 = vpop.f32.mrb[0].mxu0
          %615 = vmatprep.mubr.f32.mxu0 0.0
          %616 = vmatmul.mubr.f32.gmra.mrb[0].mxu0 %v391
          %v617 = vpop.f32.mrb[0].mxu0
          %v618 = vadd.f32 0.0, %v617
          %v619 = vpop.f32.mrb[0].mxu0
          %620 = vmatprep.mubr.f32.mxu0 0.0
          %621 = vmatmul.mubr.f32.gmra.mrb[0].mxu0 %v392
          %v622 = vpop.f32.mrb[0].mxu0
          %v623 = vadd.f32 0.0, %v622
          %v624 = vpop.f32.mrb[0].mxu0
          %625 = vmatprep.mubr.f32.mxu0 0.0
          %626 = vmatmul.mubr.f32.gmra.mrb[0].mxu0 %v393
          %v627 = vpop.f32.mrb[0].mxu0
          %v628 = vadd.f32 0.0, %v627
          %v629 = vpop.f32.mrb[0].mxu0
          %630 = vmatprep.mubr.f32.mxu0 0.0
          %631 = vmatmul.mubr.f32.gmra.mrb[0].mxu0 %v394
          %v632 = vpop.f32.mrb[0].mxu0
          %v633 = vadd.f32 0.0, %v632
          %v634 = vpop.f32.mrb[0].mxu0
          %635 = vdwg.mxu0
          %636 = vst [vmem:[#allocation2] sm:$0xff] %v478
          %637 = vst [vmem:[#allocation2 + $0x8] sm:$0xff] %v483
          %638 = vst [vmem:[#allocation2 + $0x10] sm:$0xff] %v488
          %639 = vst [vmem:[#allocation2 + $0x18] sm:$0xff] %v493
          %640 = vst [vmem:[#allocation2 + $0x20] sm:$0xff] %v498
          %641 = vst [vmem:[#allocation2 + $0x28] sm:$0xff] %v503
          %642 = vst [vmem:[#allocation2 + $0x30] sm:$0xff] %v508
          %643 = vst [vmem:[#allocation2 + $0x38] sm:$0xff] %v513
          %644 = vst [vmem:[#allocation2 + $0x40] sm:$0xff] %v518
          %645 = vst [vmem:[#allocation2 + $0x48] sm:$0xff] %v523
          %646 = vst [vmem:[#allocation2 + $0x50] sm:$0xff] %v528
          %647 = vst [vmem:[#allocation2 + $0x58] sm:$0xff] %v533
          %648 = vst [vmem:[#allocation2 + $0x60] sm:$0xff] %v538
          %649 = vst [vmem:[#allocation2 + $0x68] sm:$0xff] %v543
          %650 = vst [vmem:[#allocation2 + $0x70] sm:$0xff] %v548
          %651 = vst [vmem:[#allocation2 + $0x78] sm:$0xff] %v553
          %652 = vst [vmem:[#allocation2 + $0x80] sm:$0xff] %v558
          %653 = vst [vmem:[#allocation2 + $0x88] sm:$0xff] %v563
          %654 = vst [vmem:[#allocation2 + $0x90] sm:$0xff] %v568
          %655 = vst [vmem:[#allocation2 + $0x98] sm:$0xff] %v573
          %656 = vst [vmem:[#allocation2 + $0xa0] sm:$0xff] %v578
          %657 = vst [vmem:[#allocation2 + $0xa8] sm:$0xff] %v583
          %658 = vst [vmem:[#allocation2 + $0xb0] sm:$0xff] %v588
          %659 = vst [vmem:[#allocation2 + $0xb8] sm:$0xff] %v593
          %660 = vst [vmem:[#allocation2 + $0xc0] sm:$0xff] %v598
          %661 = vst [vmem:[#allocation2 + $0xc8] sm:$0xff] %v603
          %662 = vst [vmem:[#allocation2 + $0xd0] sm:$0xff] %v608
          %663 = vst [vmem:[#allocation2 + $0xd8] sm:$0xff] %v613
          %664 = vst [vmem:[#allocation2 + $0xe0] sm:$0xff] %v618
          %665 = vst [vmem:[#allocation2 + $0xe8] sm:$0xff] %v623
          %666 = vst [vmem:[#allocation2 + $0xf0] sm:$0xff] %v628
          %667 = vst [vmem:[#allocation2 + $0xf8] sm:$0xff] %v633
          %v668 = vld [vmem:[#allocation9 + $0x8] sm:$0xff]
          %v669 = vld [vmem:[#allocation9 + $0x28] sm:$0xff]
          %v670 = vld [vmem:[#allocation9 + $0x48] sm:$0xff]
          %v671 = vld [vmem:[#allocation9 + $0x68] sm:$0xff]
          %v672 = vld [vmem:[#allocation9 + $0x88] sm:$0xff]
          %v673 = vld [vmem:[#allocation9 + $0xa8] sm:$0xff]
          %v674 = vld [vmem:[#allocation9 + $0xc8] sm:$0xff]
          %v675 = vld [vmem:[#allocation9 + $0xe8] sm:$0xff]
          %v676 = vld [vmem:[#allocation9 + $0x108] sm:$0xff]
          %v677 = vld [vmem:[#allocation9 + $0x128] sm:$0xff]
          %v678 = vld [vmem:[#allocation9 + $0x148] sm:$0xff]
          %v679 = vld [vmem:[#allocation9 + $0x168] sm:$0xff]
          %v680 = vld [vmem:[#allocation9 + $0x188] sm:$0xff]
          %v681 = vld [vmem:[#allocation9 + $0x1a8] sm:$0xff]
          %v682 = vld [vmem:[#allocation9 + $0x1c8] sm:$0xff]
          %v683 = vld [vmem:[#allocation9 + $0x1e8] sm:$0xff]
          %684 = vmatprep.subr.mxu0 0.0
          %685 = vmatpush1.msra.mxu0 %v668
          %686 = vmatprep.subr.mxu0 0.0
          %687 = vmatpush1.msra.mxu0 %v669
          %688 = vmatprep.subr.mxu0 0.0
          %689 = vmatpush1.msra.mxu0 %v670
          %690 = vmatprep.subr.mxu0 0.0
          %691 = vmatpush1.msra.mxu0 %v671
          %692 = vmatprep.subr.mxu0 0.0
          %693 = vmatpush1.msra.mxu0 %v672
          %694 = vmatprep.subr.mxu0 0.0
          %695 = vmatpush1.msra.mxu0 %v673
          %696 = vmatprep.subr.mxu0 0.0
          %697 = vmatpush1.msra.mxu0 %v674
          %698 = vmatprep.subr.mxu0 0.0
          %699 = vmatpush1.msra.mxu0 %v675
          %700 = vmatprep.subr.mxu0 0.0
          %701 = vmatpush1.msra.mxu0 %v676
          %702 = vmatprep.subr.mxu0 0.0
          %703 = vmatpush1.msra.mxu0 %v677
          %704 = vmatprep.subr.mxu0 0.0
          %705 = vmatpush1.msra.mxu0 %v678
          %706 = vmatprep.subr.mxu0 0.0
          %707 = vmatpush1.msra.mxu0 %v679
          %708 = vmatprep.subr.mxu0 0.0
          %709 = vmatpush1.msra.mxu0 %v680
          %710 = vmatprep.subr.mxu0 0.0
          %711 = vmatpush1.msra.mxu0 %v681
          %712 = vmatprep.subr.mxu0 0.0
          %713 = vmatpush1.msra.mxu0 %v682
          %714 = vmatprep.subr.mxu0 0.0
          %715 = vmatpush1.msra.mxu0 %v683
          %716 = vmatprep.subr.mxu0 0.0
          %717 = vmatpush1.msra.mxu0 0.0
          %718 = vmatprep.subr.mxu0 0.0
          %719 = vmatpush1.msra.mxu0 0.0
          %720 = vmatprep.subr.mxu0 0.0
          %721 = vmatpush1.msra.mxu0 0.0
          %722 = vmatprep.subr.mxu0 0.0
          %723 = vmatpush1.msra.mxu0 0.0
          %724 = vmatprep.subr.mxu0 0.0
          %725 = vmatpush1.msra.mxu0 0.0
          %726 = vmatprep.subr.mxu0 0.0
          %727 = vmatpush1.msra.mxu0 0.0
          %728 = vmatprep.subr.mxu0 0.0
          %729 = vmatpush1.msra.mxu0 0.0
          %730 = vmatprep.subr.mxu0 0.0
          %731 = vmatpush1.msra.mxu0 0.0
          %732 = vmatprep.subr.mxu0 0.0
          %733 = vmatpush1.msra.mxu0 0.0
          %734 = vmatprep.subr.mxu0 0.0
          %735 = vmatpush1.msra.mxu0 0.0
          %736 = vmatprep.subr.mxu0 0.0
          %737 = vmatpush1.msra.mxu0 0.0
          %738 = vmatprep.subr.mxu0 0.0
          %739 = vmatpush1.msra.mxu0 0.0
          %740 = vmatprep.subr.mxu0 0.0
          %741 = vmatpush1.msra.mxu0 0.0
          %742 = vmatprep.subr.mxu0 0.0
          %743 = vmatpush1.msra.mxu0 0.0
          %744 = vmatprep.subr.mxu0 0.0
          %745 = vmatpush1.msra.mxu0 0.0
          %746 = vmatprep.subr.mxu0 0.0
          %747 = vmatpush1.msra.mxu0 0.0
          %748 = vmatprep.mubr.f32.mxu0 0.0
          %749 = vmatmul.mubr.f32.gmra.mrb[0].mxu0 %v363
          %v750 = vpop.f32.mrb[0].mxu0
          %v751 = vadd.f32 0.0, %v750
          %v752 = vpop.f32.mrb[0].mxu0
          %753 = vmatprep.mubr.f32.mxu0 0.0
          %754 = vmatmul.mubr.f32.gmra.mrb[0].mxu0 %v364
          %v755 = vpop.f32.mrb[0].mxu0
          %v756 = vadd.f32 0.0, %v755
          %v757 = vpop.f32.mrb[0].mxu0
          %758 = vmatprep.mubr.f32.mxu0 0.0
          %759 = vmatmul.mubr.f32.gmra.mrb[0].mxu0 %v365
          %v760 = vpop.f32.mrb[0].mxu0
          %v761 = vadd.f32 0.0, %v760
          %v762 = vpop.f32.mrb[0].mxu0
          %763 = vmatprep.mubr.f32.mxu0 0.0
          %764 = vmatmul.mubr.f32.gmra.mrb[0].mxu0 %v366
          %v765 = vpop.f32.mrb[0].mxu0
          %v766 = vadd.f32 0.0, %v765
          %v767 = vpop.f32.mrb[0].mxu0
          %768 = vmatprep.mubr.f32.mxu0 0.0
          %769 = vmatmul.mubr.f32.gmra.mrb[0].mxu0 %v367
          %v770 = vpop.f32.mrb[0].mxu0
          %v771 = vadd.f32 0.0, %v770
          %v772 = vpop.f32.mrb[0].mxu0
          %773 = vmatprep.mubr.f32.mxu0 0.0
          %774 = vmatmul.mubr.f32.gmra.mrb[0].mxu0 %v368
          %v775 = vpop.f32.mrb[0].mxu0
          %v776 = vadd.f32 0.0, %v775
          %v777 = vpop.f32.mrb[0].mxu0
          %778 = vmatprep.mubr.f32.mxu0 0.0
          %779 = vmatmul.mubr.f32.gmra.mrb[0].mxu0 %v369
          %v780 = vpop.f32.mrb[0].mxu0
          %v781 = vadd.f32 0.0, %v780
          %v782 = vpop.f32.mrb[0].mxu0
          %783 = vmatprep.mubr.f32.mxu0 0.0
          %784 = vmatmul.mubr.f32.gmra.mrb[0].mxu0 %v370
          %v785 = vpop.f32.mrb[0].mxu0
          %v786 = vadd.f32 0.0, %v785
          %v787 = vpop.f32.mrb[0].mxu0
          %788 = vmatprep.mubr.f32.mxu0 0.0
          %789 = vmatmul.mubr.f32.gmra.mrb[0].mxu0 %v371
          %v790 = vpop.f32.mrb[0].mxu0
          %v791 = vadd.f32 0.0, %v790
          %v792 = vpop.f32.mrb[0].mxu0
          %793 = vmatprep.mubr.f32.mxu0 0.0
          %794 = vmatmul.mubr.f32.gmra.mrb[0].mxu0 %v372
          %v795 = vpop.f32.mrb[0].mxu0
          %v796 = vadd.f32 0.0, %v795
          %v797 = vpop.f32.mrb[0].mxu0
          %798 = vmatprep.mubr.f32.mxu0 0.0
          %799 = vmatmul.mubr.f32.gmra.mrb[0].mxu0 %v373
          %v800 = vpop.f32.mrb[0].mxu0
          %v801 = vadd.f32 0.0, %v800
          %v802 = vpop.f32.mrb[0].mxu0
          %803 = vmatprep.mubr.f32.mxu0 0.0
          %804 = vmatmul.mubr.f32.gmra.mrb[0].mxu0 %v374
          %v805 = vpop.f32.mrb[0].mxu0
          %v806 = vadd.f32 0.0, %v805
          %v807 = vpop.f32.mrb[0].mxu0
          %808 = vmatprep.mubr.f32.mxu0 0.0
          %809 = vmatmul.mubr.f32.gmra.mrb[0].mxu0 %v375
          %v810 = vpop.f32.mrb[0].mxu0
          %v811 = vadd.f32 0.0, %v810
          %v812 = vpop.f32.mrb[0].mxu0
          %813 = vmatprep.mubr.f32.mxu0 0.0
          %814 = vmatmul.mubr.f32.gmra.mrb[0].mxu0 %v376
          %v815 = vpop.f32.mrb[0].mxu0
          %v816 = vadd.f32 0.0, %v815
          %v817 = vpop.f32.mrb[0].mxu0
          %818 = vmatprep.mubr.f32.mxu0 0.0
          %819 = vmatmul.mubr.f32.gmra.mrb[0].mxu0 %v377
          %v820 = vpop.f32.mrb[0].mxu0
          %v821 = vadd.f32 0.0, %v820
          %v822 = vpop.f32.mrb[0].mxu0
          %823 = vmatprep.mubr.f32.mxu0 0.0
          %824 = vmatmul.mubr.f32.gmra.mrb[0].mxu0 %v378
          %v825 = vpop.f32.mrb[0].mxu0
          %v826 = vadd.f32 0.0, %v825
          %v827 = vpop.f32.mrb[0].mxu0
          %828 = vmatprep.mubr.f32.mxu0 0.0
          %829 = vmatmul.mubr.f32.gmra.mrb[0].mxu0 %v379
          %v830 = vpop.f32.mrb[0].mxu0
          %v831 = vadd.f32 0.0, %v830
          %v832 = vpop.f32.mrb[0].mxu0
          %833 = vmatprep.mubr.f32.mxu0 0.0
          %834 = vmatmul.mubr.f32.gmra.mrb[0].mxu0 %v380
          %v835 = vpop.f32.mrb[0].mxu0
          %v836 = vadd.f32 0.0, %v835
          %v837 = vpop.f32.mrb[0].mxu0
          %838 = vmatprep.mubr.f32.mxu0 0.0
          %839 = vmatmul.mubr.f32.gmra.mrb[0].mxu0 %v381
          %v840 = vpop.f32.mrb[0].mxu0
          %v841 = vadd.f32 0.0, %v840
          %v842 = vpop.f32.mrb[0].mxu0
          %843 = vmatprep.mubr.f32.mxu0 0.0
          %844 = vmatmul.mubr.f32.gmra.mrb[0].mxu0 %v382
          %v845 = vpop.f32.mrb[0].mxu0
          %v846 = vadd.f32 0.0, %v845
          %v847 = vpop.f32.mrb[0].mxu0
          %848 = vmatprep.mubr.f32.mxu0 0.0
          %849 = vmatmul.mubr.f32.gmra.mrb[0].mxu0 %v383
          %v850 = vpop.f32.mrb[0].mxu0
          %v851 = vadd.f32 0.0, %v850
          %v852 = vpop.f32.mrb[0].mxu0
          %853 = vmatprep.mubr.f32.mxu0 0.0
          %854 = vmatmul.mubr.f32.gmra.mrb[0].mxu0 %v384
          %v855 = vpop.f32.mrb[0].mxu0
          %v856 = vadd.f32 0.0, %v855
          %v857 = vpop.f32.mrb[0].mxu0
          %858 = vmatprep.mubr.f32.mxu0 0.0
          %859 = vmatmul.mubr.f32.gmra.mrb[0].mxu0 %v385
          %v860 = vpop.f32.mrb[0].mxu0
          %v861 = vadd.f32 0.0, %v860
          %v862 = vpop.f32.mrb[0].mxu0
          %863 = vmatprep.mubr.f32.mxu0 0.0
          %864 = vmatmul.mubr.f32.gmra.mrb[0].mxu0 %v386
          %v865 = vpop.f32.mrb[0].mxu0
          %v866 = vadd.f32 0.0, %v865
          %v867 = vpop.f32.mrb[0].mxu0
          %868 = vmatprep.mubr.f32.mxu0 0.0
          %869 = vmatmul.mubr.f32.gmra.mrb[0].mxu0 %v387
          %v870 = vpop.f32.mrb[0].mxu0
          %v871 = vadd.f32 0.0, %v870
          %v872 = vpop.f32.mrb[0].mxu0
          %873 = vmatprep.mubr.f32.mxu0 0.0
          %874 = vmatmul.mubr.f32.gmra.mrb[0].mxu0 %v388
          %v875 = vpop.f32.mrb[0].mxu0
          %v876 = vadd.f32 0.0, %v875
          %v877 = vpop.f32.mrb[0].mxu0
          %878 = vmatprep.mubr.f32.mxu0 0.0
          %879 = vmatmul.mubr.f32.gmra.mrb[0].mxu0 %v389
          %v880 = vpop.f32.mrb[0].mxu0
          %v881 = vadd.f32 0.0, %v880
          %v882 = vpop.f32.mrb[0].mxu0
          %883 = vmatprep.mubr.f32.mxu0 0.0
          %884 = vmatmul.mubr.f32.gmra.mrb[0].mxu0 %v390
          %v885 = vpop.f32.mrb[0].mxu0
          %v886 = vadd.f32 0.0, %v885
          %v887 = vpop.f32.mrb[0].mxu0
          %888 = vmatprep.mubr.f32.mxu0 0.0
          %889 = vmatmul.mubr.f32.gmra.mrb[0].mxu0 %v391
          %v890 = vpop.f32.mrb[0].mxu0
          %v891 = vadd.f32 0.0, %v890
          %v892 = vpop.f32.mrb[0].mxu0
          %893 = vmatprep.mubr.f32.mxu0 0.0
          %894 = vmatmul.mubr.f32.gmra.mrb[0].mxu0 %v392
          %v895 = vpop.f32.mrb[0].mxu0
          %v896 = vadd.f32 0.0, %v895
          %v897 = vpop.f32.mrb[0].mxu0
          %898 = vmatprep.mubr.f32.mxu0 0.0
          %899 = vmatmul.mubr.f32.gmra.mrb[0].mxu0 %v393
          %v900 = vpop.f32.mrb[0].mxu0
          %v901 = vadd.f32 0.0, %v900
          %v902 = vpop.f32.mrb[0].mxu0
          %903 = vmatprep.mubr.f32.mxu0 0.0
          %904 = vmatmul.mubr.f32.gmra.mrb[0].mxu0 %v394
          %v905 = vpop.f32.mrb[0].mxu0
          %v906 = vadd.f32 0.0, %v905
          %v907 = vpop.f32.mrb[0].mxu0
          %908 = vdwg.mxu0
          %s909 = scalar_lea.vmem [#allocation2], 256
          %910 = vst [vmem:[%s909] sm:$0xff] %v751
          %911 = vst [vmem:[%s909 + $0x8] sm:$0xff] %v756
          %912 = vst [vmem:[%s909 + $0x10] sm:$0xff] %v761
          %913 = vst [vmem:[%s909 + $0x18] sm:$0xff] %v766
          %914 = vst [vmem:[%s909 + $0x20] sm:$0xff] %v771
          %915 = vst [vmem:[%s909 + $0x28] sm:$0xff] %v776
          %916 = vst [vmem:[%s909 + $0x30] sm:$0xff] %v781
          %917 = vst [vmem:[%s909 + $0x38] sm:$0xff] %v786
          %918 = vst [vmem:[%s909 + $0x40] sm:$0xff] %v791
          %919 = vst [vmem:[%s909 + $0x48] sm:$0xff] %v796
          %920 = vst [vmem:[%s909 + $0x50] sm:$0xff] %v801
          %921 = vst [vmem:[%s909 + $0x58] sm:$0xff] %v806
          %922 = vst [vmem:[%s909 + $0x60] sm:$0xff] %v811
          %923 = vst [vmem:[%s909 + $0x68] sm:$0xff] %v816
          %924 = vst [vmem:[%s909 + $0x70] sm:$0xff] %v821
          %925 = vst [vmem:[%s909 + $0x78] sm:$0xff] %v826
          %926 = vst [vmem:[%s909 + $0x80] sm:$0xff] %v831
          %927 = vst [vmem:[%s909 + $0x88] sm:$0xff] %v836
          %928 = vst [vmem:[%s909 + $0x90] sm:$0xff] %v841
          %929 = vst [vmem:[%s909 + $0x98] sm:$0xff] %v846
          %930 = vst [vmem:[%s909 + $0xa0] sm:$0xff] %v851
          %931 = vst [vmem:[%s909 + $0xa8] sm:$0xff] %v856
          %932 = vst [vmem:[%s909 + $0xb0] sm:$0xff] %v861
          %933 = vst [vmem:[%s909 + $0xb8] sm:$0xff] %v866
          %934 = vst [vmem:[%s909 + $0xc0] sm:$0xff] %v871
          %935 = vst [vmem:[%s909 + $0xc8] sm:$0xff] %v876
          %936 = vst [vmem:[%s909 + $0xd0] sm:$0xff] %v881
          %937 = vst [vmem:[%s909 + $0xd8] sm:$0xff] %v886
          %938 = vst [vmem:[%s909 + $0xe0] sm:$0xff] %v891
          %939 = vst [vmem:[%s909 + $0xe8] sm:$0xff] %v896
          %940 = vst [vmem:[%s909 + $0xf0] sm:$0xff] %v901
          %941 = vst [vmem:[%s909 + $0xf8] sm:$0xff] %v906
          %v942 = vld [vmem:[#allocation9 + $0x10] sm:$0xff]
          %v943 = vld [vmem:[#allocation9 + $0x30] sm:$0xff]
          %v944 = vld [vmem:[#allocation9 + $0x50] sm:$0xff]
          %v945 = vld [vmem:[#allocation9 + $0x70] sm:$0xff]
          %v946 = vld [vmem:[#allocation9 + $0x90] sm:$0xff]
          %v947 = vld [vmem:[#allocation9 + $0xb0] sm:$0xff]
          %v948 = vld [vmem:[#allocation9 + $0xd0] sm:$0xff]
          %v949 = vld [vmem:[#allocation9 + $0xf0] sm:$0xff]
          %v950 = vld [vmem:[#allocation9 + $0x110] sm:$0xff]
          %v951 = vld [vmem:[#allocation9 + $0x130] sm:$0xff]
          %v952 = vld [vmem:[#allocation9 + $0x150] sm:$0xff]
          %v953 = vld [vmem:[#allocation9 + $0x170] sm:$0xff]
          %v954 = vld [vmem:[#allocation9 + $0x190] sm:$0xff]
          %v955 = vld [vmem:[#allocation9 + $0x1b0] sm:$0xff]
          %v956 = vld [vmem:[#allocation9 + $0x1d0] sm:$0xff]
          %v957 = vld [vmem:[#allocation9 + $0x1f0] sm:$0xff]
          %958 = vmatprep.subr.mxu0 0.0
          %959 = vmatpush1.msra.mxu0 %v942
          %960 = vmatprep.subr.mxu0 0.0
          %961 = vmatpush1.msra.mxu0 %v943
          %962 = vmatprep.subr.mxu0 0.0
          %963 = vmatpush1.msra.mxu0 %v944
          %964 = vmatprep.subr.mxu0 0.0
          %965 = vmatpush1.msra.mxu0 %v945
          %966 = vmatprep.subr.mxu0 0.0
          %967 = vmatpush1.msra.mxu0 %v946
          %968 = vmatprep.subr.mxu0 0.0
          %969 = vmatpush1.msra.mxu0 %v947
          %970 = vmatprep.subr.mxu0 0.0
          %971 = vmatpush1.msra.mxu0 %v948
          %972 = vmatprep.subr.mxu0 0.0
          %973 = vmatpush1.msra.mxu0 %v949
          %974 = vmatprep.subr.mxu0 0.0
          %975 = vmatpush1.msra.mxu0 %v950
          %976 = vmatprep.subr.mxu0 0.0
          %977 = vmatpush1.msra.mxu0 %v951
          %978 = vmatprep.subr.mxu0 0.0
          %979 = vmatpush1.msra.mxu0 %v952
          %980 = vmatprep.subr.mxu0 0.0
          %981 = vmatpush1.msra.mxu0 %v953
          %982 = vmatprep.subr.mxu0 0.0
          %983 = vmatpush1.msra.mxu0 %v954
          %984 = vmatprep.subr.mxu0 0.0
          %985 = vmatpush1.msra.mxu0 %v955
          %986 = vmatprep.subr.mxu0 0.0
          %987 = vmatpush1.msra.mxu0 %v956
          %988 = vmatprep.subr.mxu0 0.0
          %989 = vmatpush1.msra.mxu0 %v957
          %990 = vmatprep.subr.mxu0 0.0
          %991 = vmatpush1.msra.mxu0 0.0
          %992 = vmatprep.subr.mxu0 0.0
          %993 = vmatpush1.msra.mxu0 0.0
          %994 = vmatprep.subr.mxu0 0.0
          %995 = vmatpush1.msra.mxu0 0.0
          %996 = vmatprep.subr.mxu0 0.0
          %997 = vmatpush1.msra.mxu0 0.0
          %998 = vmatprep.subr.mxu0 0.0
          %999 = vmatpush1.msra.mxu0 0.0
          %1000 = vmatprep.subr.mxu0 0.0
          %1001 = vmatpush1.msra.mxu0 0.0
          %1002 = vmatprep.subr.mxu0 0.0
          %1003 = vmatpush1.msra.mxu0 0.0
          %1004 = vmatprep.subr.mxu0 0.0
          %1005 = vmatpush1.msra.mxu0 0.0
          %1006 = vmatprep.subr.mxu0 0.0
          %1007 = vmatpush1.msra.mxu0 0.0
          %1008 = vmatprep.subr.mxu0 0.0
          %1009 = vmatpush1.msra.mxu0 0.0
          %1010 = vmatprep.subr.mxu0 0.0
          %1011 = vmatpush1.msra.mxu0 0.0
          %1012 = vmatprep.subr.mxu0 0.0
          %1013 = vmatpush1.msra.mxu0 0.0
          %1014 = vmatprep.subr.mxu0 0.0
          %1015 = vmatpush1.msra.mxu0 0.0
          %1016 = vmatprep.subr.mxu0 0.0
          %1017 = vmatpush1.msra.mxu0 0.0
          %1018 = vmatprep.subr.mxu0 0.0
          %1019 = vmatpush1.msra.mxu0 0.0
          %1020 = vmatprep.subr.mxu0 0.0
          %1021 = vmatpush1.msra.mxu0 0.0
          %1022 = vmatprep.mubr.f32.mxu0 0.0
          %1023 = vmatmul.mubr.f32.gmra.mrb[0].mxu0 %v363
          %v1024 = vpop.f32.mrb[0].mxu0
          %v1025 = vadd.f32 0.0, %v1024
          %v1026 = vpop.f32.mrb[0].mxu0
          %1027 = vmatprep.mubr.f32.mxu0 0.0
          %1028 = vmatmul.mubr.f32.gmra.mrb[0].mxu0 %v364
          %v1029 = vpop.f32.mrb[0].mxu0
          %v1030 = vadd.f32 0.0, %v1029
          %v1031 = vpop.f32.mrb[0].mxu0
          %1032 = vmatprep.mubr.f32.mxu0 0.0
          %1033 = vmatmul.mubr.f32.gmra.mrb[0].mxu0 %v365
          %v1034 = vpop.f32.mrb[0].mxu0
          %v1035 = vadd.f32 0.0, %v1034
          %v1036 = vpop.f32.mrb[0].mxu0
          %1037 = vmatprep.mubr.f32.mxu0 0.0
          %1038 = vmatmul.mubr.f32.gmra.mrb[0].mxu0 %v366
          %v1039 = vpop.f32.mrb[0].mxu0
          %v1040 = vadd.f32 0.0, %v1039
          %v1041 = vpop.f32.mrb[0].mxu0
          %1042 = vmatprep.mubr.f32.mxu0 0.0
          %1043 = vmatmul.mubr.f32.gmra.mrb[0].mxu0 %v367
          %v1044 = vpop.f32.mrb[0].mxu0
          %v1045 = vadd.f32 0.0, %v1044
          %v1046 = vpop.f32.mrb[0].mxu0
          %1047 = vmatprep.mubr.f32.mxu0 0.0
          %1048 = vmatmul.mubr.f32.gmra.mrb[0].mxu0 %v368
          %v1049 = vpop.f32.mrb[0].mxu0
          %v1050 = vadd.f32 0.0, %v1049
          %v1051 = vpop.f32.mrb[0].mxu0
          %1052 = vmatprep.mubr.f32.mxu0 0.0
          %1053 = vmatmul.mubr.f32.gmra.mrb[0].mxu0 %v369
          %v1054 = vpop.f32.mrb[0].mxu0
          %v1055 = vadd.f32 0.0, %v1054
          %v1056 = vpop.f32.mrb[0].mxu0
          %1057 = vmatprep.mubr.f32.mxu0 0.0
          %1058 = vmatmul.mubr.f32.gmra.mrb[0].mxu0 %v370
          %v1059 = vpop.f32.mrb[0].mxu0
          %v1060 = vadd.f32 0.0, %v1059
          %v1061 = vpop.f32.mrb[0].mxu0
          %1062 = vmatprep.mubr.f32.mxu0 0.0
          %1063 = vmatmul.mubr.f32.gmra.mrb[0].mxu0 %v371
          %v1064 = vpop.f32.mrb[0].mxu0
          %v1065 = vadd.f32 0.0, %v1064
          %v1066 = vpop.f32.mrb[0].mxu0
          %1067 = vmatprep.mubr.f32.mxu0 0.0
          %1068 = vmatmul.mubr.f32.gmra.mrb[0].mxu0 %v372
          %v1069 = vpop.f32.mrb[0].mxu0
          %v1070 = vadd.f32 0.0, %v1069
          %v1071 = vpop.f32.mrb[0].mxu0
          %1072 = vmatprep.mubr.f32.mxu0 0.0
          %1073 = vmatmul.mubr.f32.gmra.mrb[0].mxu0 %v373
          %v1074 = vpop.f32.mrb[0].mxu0
          %v1075 = vadd.f32 0.0, %v1074
          %v1076 = vpop.f32.mrb[0].mxu0
          %1077 = vmatprep.mubr.f32.mxu0 0.0
          %1078 = vmatmul.mubr.f32.gmra.mrb[0].mxu0 %v374
          %v1079 = vpop.f32.mrb[0].mxu0
          %v1080 = vadd.f32 0.0, %v1079
          %v1081 = vpop.f32.mrb[0].mxu0
          %1082 = vmatprep.mubr.f32.mxu0 0.0
          %1083 = vmatmul.mubr.f32.gmra.mrb[0].mxu0 %v375
          %v1084 = vpop.f32.mrb[0].mxu0
          %v1085 = vadd.f32 0.0, %v1084
          %v1086 = vpop.f32.mrb[0].mxu0
          %1087 = vmatprep.mubr.f32.mxu0 0.0
          %1088 = vmatmul.mubr.f32.gmra.mrb[0].mxu0 %v376
          %v1089 = vpop.f32.mrb[0].mxu0
          %v1090 = vadd.f32 0.0, %v1089
          %v1091 = vpop.f32.mrb[0].mxu0
          %1092 = vmatprep.mubr.f32.mxu0 0.0
          %1093 = vmatmul.mubr.f32.gmra.mrb[0].mxu0 %v377
          %v1094 = vpop.f32.mrb[0].mxu0
          %v1095 = vadd.f32 0.0, %v1094
          %v1096 = vpop.f32.mrb[0].mxu0
          %1097 = vmatprep.mubr.f32.mxu0 0.0
          %1098 = vmatmul.mubr.f32.gmra.mrb[0].mxu0 %v378
          %v1099 = vpop.f32.mrb[0].mxu0
          %v1100 = vadd.f32 0.0, %v1099
          %v1101 = vpop.f32.mrb[0].mxu0
          %1102 = vmatprep.mubr.f32.mxu0 0.0
          %1103 = vmatmul.mubr.f32.gmra.mrb[0].mxu0 %v379
          %v1104 = vpop.f32.mrb[0].mxu0
          %v1105 = vadd.f32 0.0, %v1104
          %v1106 = vpop.f32.mrb[0].mxu0
          %1107 = vmatprep.mubr.f32.mxu0 0.0
          %1108 = vmatmul.mubr.f32.gmra.mrb[0].mxu0 %v380
          %v1109 = vpop.f32.mrb[0].mxu0
          %v1110 = vadd.f32 0.0, %v1109
          %v1111 = vpop.f32.mrb[0].mxu0
          %1112 = vmatprep.mubr.f32.mxu0 0.0
          %1113 = vmatmul.mubr.f32.gmra.mrb[0].mxu0 %v381
          %v1114 = vpop.f32.mrb[0].mxu0
          %v1115 = vadd.f32 0.0, %v1114
          %v1116 = vpop.f32.mrb[0].mxu0
          %1117 = vmatprep.mubr.f32.mxu0 0.0
          %1118 = vmatmul.mubr.f32.gmra.mrb[0].mxu0 %v382
          %v1119 = vpop.f32.mrb[0].mxu0
          %v1120 = vadd.f32 0.0, %v1119
          %v1121 = vpop.f32.mrb[0].mxu0
          %1122 = vmatprep.mubr.f32.mxu0 0.0
          %1123 = vmatmul.mubr.f32.gmra.mrb[0].mxu0 %v383
          %v1124 = vpop.f32.mrb[0].mxu0
          %v1125 = vadd.f32 0.0, %v1124
          %v1126 = vpop.f32.mrb[0].mxu0
          %1127 = vmatprep.mubr.f32.mxu0 0.0
          %1128 = vmatmul.mubr.f32.gmra.mrb[0].mxu0 %v384
          %v1129 = vpop.f32.mrb[0].mxu0
          %v1130 = vadd.f32 0.0, %v1129
          %v1131 = vpop.f32.mrb[0].mxu0
          %1132 = vmatprep.mubr.f32.mxu0 0.0
          %1133 = vmatmul.mubr.f32.gmra.mrb[0].mxu0 %v385
          %v1134 = vpop.f32.mrb[0].mxu0
          %v1135 = vadd.f32 0.0, %v1134
          %v1136 = vpop.f32.mrb[0].mxu0
          %1137 = vmatprep.mubr.f32.mxu0 0.0
          %1138 = vmatmul.mubr.f32.gmra.mrb[0].mxu0 %v386
          %v1139 = vpop.f32.mrb[0].mxu0
          %v1140 = vadd.f32 0.0, %v1139
          %v1141 = vpop.f32.mrb[0].mxu0
          %1142 = vmatprep.mubr.f32.mxu0 0.0
          %1143 = vmatmul.mubr.f32.gmra.mrb[0].mxu0 %v387
          %v1144 = vpop.f32.mrb[0].mxu0
          %v1145 = vadd.f32 0.0, %v1144
          %v1146 = vpop.f32.mrb[0].mxu0
          %1147 = vmatprep.mubr.f32.mxu0 0.0
          %1148 = vmatmul.mubr.f32.gmra.mrb[0].mxu0 %v388
          %v1149 = vpop.f32.mrb[0].mxu0
          %v1150 = vadd.f32 0.0, %v1149
          %v1151 = vpop.f32.mrb[0].mxu0
          %1152 = vmatprep.mubr.f32.mxu0 0.0
          %1153 = vmatmul.mubr.f32.gmra.mrb[0].mxu0 %v389
          %v1154 = vpop.f32.mrb[0].mxu0
          %v1155 = vadd.f32 0.0, %v1154
          %v1156 = vpop.f32.mrb[0].mxu0
          %1157 = vmatprep.mubr.f32.mxu0 0.0
          %1158 = vmatmul.mubr.f32.gmra.mrb[0].mxu0 %v390
          %v1159 = vpop.f32.mrb[0].mxu0
          %v1160 = vadd.f32 0.0, %v1159
          %v1161 = vpop.f32.mrb[0].mxu0
          %1162 = vmatprep.mubr.f32.mxu0 0.0
          %1163 = vmatmul.mubr.f32.gmra.mrb[0].mxu0 %v391
          %v1164 = vpop.f32.mrb[0].mxu0
          %v1165 = vadd.f32 0.0, %v1164
          %v1166 = vpop.f32.mrb[0].mxu0
          %1167 = vmatprep.mubr.f32.mxu0 0.0
          %1168 = vmatmul.mubr.f32.gmra.mrb[0].mxu0 %v392
          %v1169 = vpop.f32.mrb[0].mxu0
          %v1170 = vadd.f32 0.0, %v1169
          %v1171 = vpop.f32.mrb[0].mxu0
          %1172 = vmatprep.mubr.f32.mxu0 0.0
          %1173 = vmatmul.mubr.f32.gmra.mrb[0].mxu0 %v393
          %v1174 = vpop.f32.mrb[0].mxu0
          %v1175 = vadd.f32 0.0, %v1174
          %v1176 = vpop.f32.mrb[0].mxu0
          %1177 = vmatprep.mubr.f32.mxu0 0.0
          %1178 = vmatmul.mubr.f32.gmra.mrb[0].mxu0 %v394
          %v1179 = vpop.f32.mrb[0].mxu0
          %v1180 = vadd.f32 0.0, %v1179
          %v1181 = vpop.f32.mrb[0].mxu0
          %1182 = vdwg.mxu0
          %s1183 = scalar_lea.vmem [#allocation2], 512
          %1184 = vst [vmem:[%s1183] sm:$0xff] %v1025
          %1185 = vst [vmem:[%s1183 + $0x8] sm:$0xff] %v1030
          %1186 = vst [vmem:[%s1183 + $0x10] sm:$0xff] %v1035
          %1187 = vst [vmem:[%s1183 + $0x18] sm:$0xff] %v1040
          %1188 = vst [vmem:[%s1183 + $0x20] sm:$0xff] %v1045
          %1189 = vst [vmem:[%s1183 + $0x28] sm:$0xff] %v1050
          %1190 = vst [vmem:[%s1183 + $0x30] sm:$0xff] %v1055
          %1191 = vst [vmem:[%s1183 + $0x38] sm:$0xff] %v1060
          %1192 = vst [vmem:[%s1183 + $0x40] sm:$0xff] %v1065
          %1193 = vst [vmem:[%s1183 + $0x48] sm:$0xff] %v1070
          %1194 = vst [vmem:[%s1183 + $0x50] sm:$0xff] %v1075
          %1195 = vst [vmem:[%s1183 + $0x58] sm:$0xff] %v1080
          %1196 = vst [vmem:[%s1183 + $0x60] sm:$0xff] %v1085
          %1197 = vst [vmem:[%s1183 + $0x68] sm:$0xff] %v1090
          %1198 = vst [vmem:[%s1183 + $0x70] sm:$0xff] %v1095
          %1199 = vst [vmem:[%s1183 + $0x78] sm:$0xff] %v1100
          %1200 = vst [vmem:[%s1183 + $0x80] sm:$0xff] %v1105
          %1201 = vst [vmem:[%s1183 + $0x88] sm:$0xff] %v1110
          %1202 = vst [vmem:[%s1183 + $0x90] sm:$0xff] %v1115
          %1203 = vst [vmem:[%s1183 + $0x98] sm:$0xff] %v1120
          %1204 = vst [vmem:[%s1183 + $0xa0] sm:$0xff] %v1125
          %1205 = vst [vmem:[%s1183 + $0xa8] sm:$0xff] %v1130
          %1206 = vst [vmem:[%s1183 + $0xb0] sm:$0xff] %v1135
          %1207 = vst [vmem:[%s1183 + $0xb8] sm:$0xff] %v1140
          %1208 = vst [vmem:[%s1183 + $0xc0] sm:$0xff] %v1145
          %1209 = vst [vmem:[%s1183 + $0xc8] sm:$0xff] %v1150
          %1210 = vst [vmem:[%s1183 + $0xd0] sm:$0xff] %v1155
          %1211 = vst [vmem:[%s1183 + $0xd8] sm:$0xff] %v1160
          %1212 = vst [vmem:[%s1183 + $0xe0] sm:$0xff] %v1165
          %1213 = vst [vmem:[%s1183 + $0xe8] sm:$0xff] %v1170
          %1214 = vst [vmem:[%s1183 + $0xf0] sm:$0xff] %v1175
          %1215 = vst [vmem:[%s1183 + $0xf8] sm:$0xff] %v1180
          %v1216 = vld [vmem:[#allocation9 + $0x18] sm:$0xff]
          %v1217 = vld [vmem:[#allocation9 + $0x38] sm:$0xff]
          %v1218 = vld [vmem:[#allocation9 + $0x58] sm:$0xff]
          %v1219 = vld [vmem:[#allocation9 + $0x78] sm:$0xff]
          %v1220 = vld [vmem:[#allocation9 + $0x98] sm:$0xff]
          %v1221 = vld [vmem:[#allocation9 + $0xb8] sm:$0xff]
          %v1222 = vld [vmem:[#allocation9 + $0xd8] sm:$0xff]
          %v1223 = vld [vmem:[#allocation9 + $0xf8] sm:$0xff]
          %v1224 = vld [vmem:[#allocation9 + $0x118] sm:$0xff]
          %v1225 = vld [vmem:[#allocation9 + $0x138] sm:$0xff]
          %v1226 = vld [vmem:[#allocation9 + $0x158] sm:$0xff]
          %v1227 = vld [vmem:[#allocation9 + $0x178] sm:$0xff]
          %v1228 = vld [vmem:[#allocation9 + $0x198] sm:$0xff]
          %v1229 = vld [vmem:[#allocation9 + $0x1b8] sm:$0xff]
          %v1230 = vld [vmem:[#allocation9 + $0x1d8] sm:$0xff]
          %v1231 = vld [vmem:[#allocation9 + $0x1f8] sm:$0xff]
          %1232 = vmatprep.subr.mxu0 0.0
          %1233 = vmatpush1.msra.mxu0 %v1216
          %1234 = vmatprep.subr.mxu0 0.0
          %1235 = vmatpush1.msra.mxu0 %v1217
          %1236 = vmatprep.subr.mxu0 0.0
          %1237 = vmatpush1.msra.mxu0 %v1218
          %1238 = vmatprep.subr.mxu0 0.0
          %1239 = vmatpush1.msra.mxu0 %v1219
          %1240 = vmatprep.subr.mxu0 0.0
          %1241 = vmatpush1.msra.mxu0 %v1220
          %1242 = vmatprep.subr.mxu0 0.0
          %1243 = vmatpush1.msra.mxu0 %v1221
          %1244 = vmatprep.subr.mxu0 0.0
          %1245 = vmatpush1.msra.mxu0 %v1222
          %1246 = vmatprep.subr.mxu0 0.0
          %1247 = vmatpush1.msra.mxu0 %v1223
          %1248 = vmatprep.subr.mxu0 0.0
          %1249 = vmatpush1.msra.mxu0 %v1224
          %1250 = vmatprep.subr.mxu0 0.0
          %1251 = vmatpush1.msra.mxu0 %v1225
          %1252 = vmatprep.subr.mxu0 0.0
          %1253 = vmatpush1.msra.mxu0 %v1226
          %1254 = vmatprep.subr.mxu0 0.0
          %1255 = vmatpush1.msra.mxu0 %v1227
          %1256 = vmatprep.subr.mxu0 0.0
          %1257 = vmatpush1.msra.mxu0 %v1228
          %1258 = vmatprep.subr.mxu0 0.0
          %1259 = vmatpush1.msra.mxu0 %v1229
          %1260 = vmatprep.subr.mxu0 0.0
          %1261 = vmatpush1.msra.mxu0 %v1230
          %1262 = vmatprep.subr.mxu0 0.0
          %1263 = vmatpush1.msra.mxu0 %v1231
          %1264 = vmatprep.subr.mxu0 0.0
          %1265 = vmatpush1.msra.mxu0 0.0
          %1266 = vmatprep.subr.mxu0 0.0
          %1267 = vmatpush1.msra.mxu0 0.0
          %1268 = vmatprep.subr.mxu0 0.0
          %1269 = vmatpush1.msra.mxu0 0.0
          %1270 = vmatprep.subr.mxu0 0.0
          %1271 = vmatpush1.msra.mxu0 0.0
          %1272 = vmatprep.subr.mxu0 0.0
          %1273 = vmatpush1.msra.mxu0 0.0
          %1274 = vmatprep.subr.mxu0 0.0
          %1275 = vmatpush1.msra.mxu0 0.0
          %1276 = vmatprep.subr.mxu0 0.0
          %1277 = vmatpush1.msra.mxu0 0.0
          %1278 = vmatprep.subr.mxu0 0.0
          %1279 = vmatpush1.msra.mxu0 0.0
          %1280 = vmatprep.subr.mxu0 0.0
          %1281 = vmatpush1.msra.mxu0 0.0
          %1282 = vmatprep.subr.mxu0 0.0
          %1283 = vmatpush1.msra.mxu0 0.0
          %1284 = vmatprep.subr.mxu0 0.0
          %1285 = vmatpush1.msra.mxu0 0.0
          %1286 = vmatprep.subr.mxu0 0.0
          %1287 = vmatpush1.msra.mxu0 0.0
          %1288 = vmatprep.subr.mxu0 0.0
          %1289 = vmatpush1.msra.mxu0 0.0
          %1290 = vmatprep.subr.mxu0 0.0
          %1291 = vmatpush1.msra.mxu0 0.0
          %1292 = vmatprep.subr.mxu0 0.0
          %1293 = vmatpush1.msra.mxu0 0.0
          %1294 = vmatprep.subr.mxu0 0.0
          %1295 = vmatpush1.msra.mxu0 0.0
          %1296 = vmatprep.mubr.f32.mxu0 0.0
          %1297 = vmatmul.mubr.f32.gmra.mrb[0].mxu0 %v363
          %v1298 = vpop.f32.mrb[0].mxu0
          %v1299 = vadd.f32 0.0, %v1298
          %v1300 = vpop.f32.mrb[0].mxu0
          %1301 = vmatprep.mubr.f32.mxu0 0.0
          %1302 = vmatmul.mubr.f32.gmra.mrb[0].mxu0 %v364
          %v1303 = vpop.f32.mrb[0].mxu0
          %v1304 = vadd.f32 0.0, %v1303
          %v1305 = vpop.f32.mrb[0].mxu0
          %1306 = vmatprep.mubr.f32.mxu0 0.0
          %1307 = vmatmul.mubr.f32.gmra.mrb[0].mxu0 %v365
          %v1308 = vpop.f32.mrb[0].mxu0
          %v1309 = vadd.f32 0.0, %v1308
          %v1310 = vpop.f32.mrb[0].mxu0
          %1311 = vmatprep.mubr.f32.mxu0 0.0
          %1312 = vmatmul.mubr.f32.gmra.mrb[0].mxu0 %v366
          %v1313 = vpop.f32.mrb[0].mxu0
          %v1314 = vadd.f32 0.0, %v1313
          %v1315 = vpop.f32.mrb[0].mxu0
          %1316 = vmatprep.mubr.f32.mxu0 0.0
          %1317 = vmatmul.mubr.f32.gmra.mrb[0].mxu0 %v367
          %v1318 = vpop.f32.mrb[0].mxu0
          %v1319 = vadd.f32 0.0, %v1318
          %v1320 = vpop.f32.mrb[0].mxu0
          %1321 = vmatprep.mubr.f32.mxu0 0.0
          %1322 = vmatmul.mubr.f32.gmra.mrb[0].mxu0 %v368
          %v1323 = vpop.f32.mrb[0].mxu0
          %v1324 = vadd.f32 0.0, %v1323
          %v1325 = vpop.f32.mrb[0].mxu0
          %1326 = vmatprep.mubr.f32.mxu0 0.0
          %1327 = vmatmul.mubr.f32.gmra.mrb[0].mxu0 %v369
          %v1328 = vpop.f32.mrb[0].mxu0
          %v1329 = vadd.f32 0.0, %v1328
          %v1330 = vpop.f32.mrb[0].mxu0
          %1331 = vmatprep.mubr.f32.mxu0 0.0
          %1332 = vmatmul.mubr.f32.gmra.mrb[0].mxu0 %v370
          %v1333 = vpop.f32.mrb[0].mxu0
          %v1334 = vadd.f32 0.0, %v1333
          %v1335 = vpop.f32.mrb[0].mxu0
          %1336 = vmatprep.mubr.f32.mxu0 0.0
          %1337 = vmatmul.mubr.f32.gmra.mrb[0].mxu0 %v371
          %v1338 = vpop.f32.mrb[0].mxu0
          %v1339 = vadd.f32 0.0, %v1338
          %v1340 = vpop.f32.mrb[0].mxu0
          %1341 = vmatprep.mubr.f32.mxu0 0.0
          %1342 = vmatmul.mubr.f32.gmra.mrb[0].mxu0 %v372
          %v1343 = vpop.f32.mrb[0].mxu0
          %v1344 = vadd.f32 0.0, %v1343
          %v1345 = vpop.f32.mrb[0].mxu0
          %1346 = vmatprep.mubr.f32.mxu0 0.0
          %1347 = vmatmul.mubr.f32.gmra.mrb[0].mxu0 %v373
          %v1348 = vpop.f32.mrb[0].mxu0
          %v1349 = vadd.f32 0.0, %v1348
          %v1350 = vpop.f32.mrb[0].mxu0
          %1351 = vmatprep.mubr.f32.mxu0 0.0
          %1352 = vmatmul.mubr.f32.gmra.mrb[0].mxu0 %v374
          %v1353 = vpop.f32.mrb[0].mxu0
          %v1354 = vadd.f32 0.0, %v1353
          %v1355 = vpop.f32.mrb[0].mxu0
          %1356 = vmatprep.mubr.f32.mxu0 0.0
          %1357 = vmatmul.mubr.f32.gmra.mrb[0].mxu0 %v375
          %v1358 = vpop.f32.mrb[0].mxu0
          %v1359 = vadd.f32 0.0, %v1358
          %v1360 = vpop.f32.mrb[0].mxu0
          %1361 = vmatprep.mubr.f32.mxu0 0.0
          %1362 = vmatmul.mubr.f32.gmra.mrb[0].mxu0 %v376
          %v1363 = vpop.f32.mrb[0].mxu0
          %v1364 = vadd.f32 0.0, %v1363
          %v1365 = vpop.f32.mrb[0].mxu0
          %1366 = vmatprep.mubr.f32.mxu0 0.0
          %1367 = vmatmul.mubr.f32.gmra.mrb[0].mxu0 %v377
          %v1368 = vpop.f32.mrb[0].mxu0
          %v1369 = vadd.f32 0.0, %v1368
          %v1370 = vpop.f32.mrb[0].mxu0
          %1371 = vmatprep.mubr.f32.mxu0 0.0
          %1372 = vmatmul.mubr.f32.gmra.mrb[0].mxu0 %v378
          %v1373 = vpop.f32.mrb[0].mxu0
          %v1374 = vadd.f32 0.0, %v1373
          %v1375 = vpop.f32.mrb[0].mxu0
          %1376 = vmatprep.mubr.f32.mxu0 0.0
          %1377 = vmatmul.mubr.f32.gmra.mrb[0].mxu0 %v379
          %v1378 = vpop.f32.mrb[0].mxu0
          %v1379 = vadd.f32 0.0, %v1378
          %v1380 = vpop.f32.mrb[0].mxu0
          %1381 = vmatprep.mubr.f32.mxu0 0.0
          %1382 = vmatmul.mubr.f32.gmra.mrb[0].mxu0 %v380
          %v1383 = vpop.f32.mrb[0].mxu0
          %v1384 = vadd.f32 0.0, %v1383
          %v1385 = vpop.f32.mrb[0].mxu0
          %1386 = vmatprep.mubr.f32.mxu0 0.0
          %1387 = vmatmul.mubr.f32.gmra.mrb[0].mxu0 %v381
          %v1388 = vpop.f32.mrb[0].mxu0
          %v1389 = vadd.f32 0.0, %v1388
          %v1390 = vpop.f32.mrb[0].mxu0
          %1391 = vmatprep.mubr.f32.mxu0 0.0
          %1392 = vmatmul.mubr.f32.gmra.mrb[0].mxu0 %v382
          %v1393 = vpop.f32.mrb[0].mxu0
          %v1394 = vadd.f32 0.0, %v1393
          %v1395 = vpop.f32.mrb[0].mxu0
          %1396 = vmatprep.mubr.f32.mxu0 0.0
          %1397 = vmatmul.mubr.f32.gmra.mrb[0].mxu0 %v383
          %v1398 = vpop.f32.mrb[0].mxu0
          %v1399 = vadd.f32 0.0, %v1398
          %v1400 = vpop.f32.mrb[0].mxu0
          %1401 = vmatprep.mubr.f32.mxu0 0.0
          %1402 = vmatmul.mubr.f32.gmra.mrb[0].mxu0 %v384
          %v1403 = vpop.f32.mrb[0].mxu0
          %v1404 = vadd.f32 0.0, %v1403
          %v1405 = vpop.f32.mrb[0].mxu0
          %1406 = vmatprep.mubr.f32.mxu0 0.0
          %1407 = vmatmul.mubr.f32.gmra.mrb[0].mxu0 %v385
          %v1408 = vpop.f32.mrb[0].mxu0
          %v1409 = vadd.f32 0.0, %v1408
          %v1410 = vpop.f32.mrb[0].mxu0
          %1411 = vmatprep.mubr.f32.mxu0 0.0
          %1412 = vmatmul.mubr.f32.gmra.mrb[0].mxu0 %v386
          %v1413 = vpop.f32.mrb[0].mxu0
          %v1414 = vadd.f32 0.0, %v1413
          %v1415 = vpop.f32.mrb[0].mxu0
          %1416 = vmatprep.mubr.f32.mxu0 0.0
          %1417 = vmatmul.mubr.f32.gmra.mrb[0].mxu0 %v387
          %v1418 = vpop.f32.mrb[0].mxu0
          %v1419 = vadd.f32 0.0, %v1418
          %v1420 = vpop.f32.mrb[0].mxu0
          %1421 = vmatprep.mubr.f32.mxu0 0.0
          %1422 = vmatmul.mubr.f32.gmra.mrb[0].mxu0 %v388
          %v1423 = vpop.f32.mrb[0].mxu0
          %v1424 = vadd.f32 0.0, %v1423
          %v1425 = vpop.f32.mrb[0].mxu0
          %1426 = vmatprep.mubr.f32.mxu0 0.0
          %1427 = vmatmul.mubr.f32.gmra.mrb[0].mxu0 %v389
          %v1428 = vpop.f32.mrb[0].mxu0
          %v1429 = vadd.f32 0.0, %v1428
          %v1430 = vpop.f32.mrb[0].mxu0
          %1431 = vmatprep.mubr.f32.mxu0 0.0
          %1432 = vmatmul.mubr.f32.gmra.mrb[0].mxu0 %v390
          %v1433 = vpop.f32.mrb[0].mxu0
          %v1434 = vadd.f32 0.0, %v1433
          %v1435 = vpop.f32.mrb[0].mxu0
          %1436 = vmatprep.mubr.f32.mxu0 0.0
          %1437 = vmatmul.mubr.f32.gmra.mrb[0].mxu0 %v391
          %v1438 = vpop.f32.mrb[0].mxu0
          %v1439 = vadd.f32 0.0, %v1438
          %v1440 = vpop.f32.mrb[0].mxu0
          %1441 = vmatprep.mubr.f32.mxu0 0.0
          %1442 = vmatmul.mubr.f32.gmra.mrb[0].mxu0 %v392
          %v1443 = vpop.f32.mrb[0].mxu0
          %v1444 = vadd.f32 0.0, %v1443
          %v1445 = vpop.f32.mrb[0].mxu0
          %1446 = vmatprep.mubr.f32.mxu0 0.0
          %1447 = vmatmul.mubr.f32.gmra.mrb[0].mxu0 %v393
          %v1448 = vpop.f32.mrb[0].mxu0
          %v1449 = vadd.f32 0.0, %v1448
          %v1450 = vpop.f32.mrb[0].mxu0
          %1451 = vmatprep.mubr.f32.mxu0 0.0
          %1452 = vmatmul.mubr.f32.gmra.mrb[0].mxu0 %v394
          %v1453 = vpop.f32.mrb[0].mxu0
          %v1454 = vadd.f32 0.0, %v1453
          %v1455 = vpop.f32.mrb[0].mxu0
          %1456 = vdwg.mxu0
          %s1457 = scalar_lea.vmem [#allocation2], 768
          %1458 = vst [vmem:[%s1457] sm:$0xff] %v1299
          %1459 = vst [vmem:[%s1457 + $0x8] sm:$0xff] %v1304
          %1460 = vst [vmem:[%s1457 + $0x10] sm:$0xff] %v1309
          %1461 = vst [vmem:[%s1457 + $0x18] sm:$0xff] %v1314
          %1462 = vst [vmem:[%s1457 + $0x20] sm:$0xff] %v1319
          %1463 = vst [vmem:[%s1457 + $0x28] sm:$0xff] %v1324
          %1464 = vst [vmem:[%s1457 + $0x30] sm:$0xff] %v1329
          %1465 = vst [vmem:[%s1457 + $0x38] sm:$0xff] %v1334
          %1466 = vst [vmem:[%s1457 + $0x40] sm:$0xff] %v1339
          %1467 = vst [vmem:[%s1457 + $0x48] sm:$0xff] %v1344
          %1468 = vst [vmem:[%s1457 + $0x50] sm:$0xff] %v1349
          %1469 = vst [vmem:[%s1457 + $0x58] sm:$0xff] %v1354
          %1470 = vst [vmem:[%s1457 + $0x60] sm:$0xff] %v1359
          %1471 = vst [vmem:[%s1457 + $0x68] sm:$0xff] %v1364
          %1472 = vst [vmem:[%s1457 + $0x70] sm:$0xff] %v1369
          %1473 = vst [vmem:[%s1457 + $0x78] sm:$0xff] %v1374
          %1474 = vst [vmem:[%s1457 + $0x80] sm:$0xff] %v1379
          %1475 = vst [vmem:[%s1457 + $0x88] sm:$0xff] %v1384
          %1476 = vst [vmem:[%s1457 + $0x90] sm:$0xff] %v1389
          %1477 = vst [vmem:[%s1457 + $0x98] sm:$0xff] %v1394
          %1478 = vst [vmem:[%s1457 + $0xa0] sm:$0xff] %v1399
          %1479 = vst [vmem:[%s1457 + $0xa8] sm:$0xff] %v1404
          %1480 = vst [vmem:[%s1457 + $0xb0] sm:$0xff] %v1409
          %1481 = vst [vmem:[%s1457 + $0xb8] sm:$0xff] %v1414
          %1482 = vst [vmem:[%s1457 + $0xc0] sm:$0xff] %v1419
          %1483 = vst [vmem:[%s1457 + $0xc8] sm:$0xff] %v1424
          %1484 = vst [vmem:[%s1457 + $0xd0] sm:$0xff] %v1429
          %1485 = vst [vmem:[%s1457 + $0xd8] sm:$0xff] %v1434
          %1486 = vst [vmem:[%s1457 + $0xe0] sm:$0xff] %v1439
          %1487 = vst [vmem:[%s1457 + $0xe8] sm:$0xff] %v1444
          %1488 = vst [vmem:[%s1457 + $0xf0] sm:$0xff] %v1449
          %1489 = vst [vmem:[%s1457 + $0xf8] sm:$0xff] %v1454
        $region60: #{tpu_custom_call.1} parent=39 // pred_fallthru
          _
        %v1490 = vld [vmem:[%s317] sm:$0xff]
        %v1491 = vld [vmem:[%s317 + $0x8] sm:$0xff]
        %v1492 = vld [vmem:[%s317 + $0x10] sm:$0xff]
        %v1493 = vld [vmem:[%s317 + $0x18] sm:$0xff]
        %v1494 = vld [vmem:[%s317 + $0x20] sm:$0xff]
        %v1495 = vld [vmem:[%s317 + $0x28] sm:$0xff]
        %v1496 = vld [vmem:[%s317 + $0x30] sm:$0xff]
        %v1497 = vld [vmem:[%s317 + $0x38] sm:$0xff]
        %v1498 = vld [vmem:[%s317 + $0x40] sm:$0xff]
        %v1499 = vld [vmem:[%s317 + $0x48] sm:$0xff]
        %v1500 = vld [vmem:[%s317 + $0x50] sm:$0xff]
        %v1501 = vld [vmem:[%s317 + $0x58] sm:$0xff]
        %v1502 = vld [vmem:[%s317 + $0x60] sm:$0xff]
        %v1503 = vld [vmem:[%s317 + $0x68] sm:$0xff]
        %v1504 = vld [vmem:[%s317 + $0x70] sm:$0xff]
        %v1505 = vld [vmem:[%s317 + $0x78] sm:$0xff]
        %v1506 = vld [vmem:[%s317 + $0x80] sm:$0xff]
        %v1507 = vld [vmem:[%s317 + $0x88] sm:$0xff]
        %v1508 = vld [vmem:[%s317 + $0x90] sm:$0xff]
        %v1509 = vld [vmem:[%s317 + $0x98] sm:$0xff]
        %v1510 = vld [vmem:[%s317 + $0xa0] sm:$0xff]
        %v1511 = vld [vmem:[%s317 + $0xa8] sm:$0xff]
        %v1512 = vld [vmem:[%s317 + $0xb0] sm:$0xff]
        %v1513 = vld [vmem:[%s317 + $0xb8] sm:$0xff]
        %v1514 = vld [vmem:[%s317 + $0xc0] sm:$0xff]
        %v1515 = vld [vmem:[%s317 + $0xc8] sm:$0xff]
        %v1516 = vld [vmem:[%s317 + $0xd0] sm:$0xff]
        %v1517 = vld [vmem:[%s317 + $0xd8] sm:$0xff]
        %v1518 = vld [vmem:[%s317 + $0xe0] sm:$0xff]
        %v1519 = vld [vmem:[%s317 + $0xe8] sm:$0xff]
        %v1520 = vld [vmem:[%s317 + $0xf0] sm:$0xff]
        %v1521 = vld [vmem:[%s317 + $0xf8] sm:$0xff]
        %v1522 = vld [vmem:[#allocation2] sm:$0xff]
        %v1523 = vld [vmem:[#allocation2 + $0x8] sm:$0xff]
        %v1524 = vld [vmem:[#allocation2 + $0x10] sm:$0xff]
        %v1525 = vld [vmem:[#allocation2 + $0x18] sm:$0xff]
        %v1526 = vld [vmem:[#allocation2 + $0x20] sm:$0xff]
        %v1527 = vld [vmem:[#allocation2 + $0x28] sm:$0xff]
        %v1528 = vld [vmem:[#allocation2 + $0x30] sm:$0xff]
        %v1529 = vld [vmem:[#allocation2 + $0x38] sm:$0xff]
        %v1530 = vld [vmem:[#allocation2 + $0x40] sm:$0xff]
        %v1531 = vld [vmem:[#allocation2 + $0x48] sm:$0xff]
        %v1532 = vld [vmem:[#allocation2 + $0x50] sm:$0xff]
        %v1533 = vld [vmem:[#allocation2 + $0x58] sm:$0xff]
        %v1534 = vld [vmem:[#allocation2 + $0x60] sm:$0xff]
        %v1535 = vld [vmem:[#allocation2 + $0x68] sm:$0xff]
        %v1536 = vld [vmem:[#allocation2 + $0x70] sm:$0xff]
        %v1537 = vld [vmem:[#allocation2 + $0x78] sm:$0xff]
        %v1538 = vld [vmem:[#allocation2 + $0x80] sm:$0xff]
        %v1539 = vld [vmem:[#allocation2 + $0x88] sm:$0xff]
        %v1540 = vld [vmem:[#allocation2 + $0x90] sm:$0xff]
        %v1541 = vld [vmem:[#allocation2 + $0x98] sm:$0xff]
        %v1542 = vld [vmem:[#allocation2 + $0xa0] sm:$0xff]
        %v1543 = vld [vmem:[#allocation2 + $0xa8] sm:$0xff]
        %v1544 = vld [vmem:[#allocation2 + $0xb0] sm:$0xff]
        %v1545 = vld [vmem:[#allocation2 + $0xb8] sm:$0xff]
        %v1546 = vld [vmem:[#allocation2 + $0xc0] sm:$0xff]
        %v1547 = vld [vmem:[#allocation2 + $0xc8] sm:$0xff]
        %v1548 = vld [vmem:[#allocation2 + $0xd0] sm:$0xff]
        %v1549 = vld [vmem:[#allocation2 + $0xd8] sm:$0xff]
        %v1550 = vld [vmem:[#allocation2 + $0xe0] sm:$0xff]
        %v1551 = vld [vmem:[#allocation2 + $0xe8] sm:$0xff]
        %v1552 = vld [vmem:[#allocation2 + $0xf0] sm:$0xff]
        %v1553 = vld [vmem:[#allocation2 + $0xf8] sm:$0xff]
        %1554 = vmatprep.subr.mxu0 0.0
        %1555 = vmatpush1.msra.mxu0 %v1522
        %1556 = vmatprep.subr.mxu0 0.0
        %1557 = vmatpush1.msra.mxu0 %v1523
        %1558 = vmatprep.subr.mxu0 0.0
        %1559 = vmatpush1.msra.mxu0 %v1524
        %1560 = vmatprep.subr.mxu0 0.0
        %1561 = vmatpush1.msra.mxu0 %v1525
        %1562 = vmatprep.subr.mxu0 0.0
        %1563 = vmatpush1.msra.mxu0 %v1526
        %1564 = vmatprep.subr.mxu0 0.0
        %1565 = vmatpush1.msra.mxu0 %v1527
        %1566 = vmatprep.subr.mxu0 0.0
        %1567 = vmatpush1.msra.mxu0 %v1528
        %1568 = vmatprep.subr.mxu0 0.0
        %1569 = vmatpush1.msra.mxu0 %v1529
        %1570 = vmatprep.subr.mxu0 0.0
        %1571 = vmatpush1.msra.mxu0 %v1530
        %1572 = vmatprep.subr.mxu0 0.0
        %1573 = vmatpush1.msra.mxu0 %v1531
        %1574 = vmatprep.subr.mxu0 0.0
        %1575 = vmatpush1.msra.mxu0 %v1532
        %1576 = vmatprep.subr.mxu0 0.0
        %1577 = vmatpush1.msra.mxu0 %v1533
        %1578 = vmatprep.subr.mxu0 0.0
        %1579 = vmatpush1.msra.mxu0 %v1534
        %1580 = vmatprep.subr.mxu0 0.0
        %1581 = vmatpush1.msra.mxu0 %v1535
        %1582 = vmatprep.subr.mxu0 0.0
        %1583 = vmatpush1.msra.mxu0 %v1536
        %1584 = vmatprep.subr.mxu0 0.0
        %1585 = vmatpush1.msra.mxu0 %v1537
        %1586 = vmatprep.subr.mxu0 0.0
        %1587 = vmatpush1.msra.mxu0 %v1538
        %1588 = vmatprep.subr.mxu0 0.0
        %1589 = vmatpush1.msra.mxu0 %v1539
        %1590 = vmatprep.subr.mxu0 0.0
        %1591 = vmatpush1.msra.mxu0 %v1540
        %1592 = vmatprep.subr.mxu0 0.0
        %1593 = vmatpush1.msra.mxu0 %v1541
        %1594 = vmatprep.subr.mxu0 0.0
        %1595 = vmatpush1.msra.mxu0 %v1542
        %1596 = vmatprep.subr.mxu0 0.0
        %1597 = vmatpush1.msra.mxu0 %v1543
        %1598 = vmatprep.subr.mxu0 0.0
        %1599 = vmatpush1.msra.mxu0 %v1544
        %1600 = vmatprep.subr.mxu0 0.0
        %1601 = vmatpush1.msra.mxu0 %v1545
        %1602 = vmatprep.subr.mxu0 0.0
        %1603 = vmatpush1.msra.mxu0 %v1546
        %1604 = vmatprep.subr.mxu0 0.0
        %1605 = vmatpush1.msra.mxu0 %v1547
        %1606 = vmatprep.subr.mxu0 0.0
        %1607 = vmatpush1.msra.mxu0 %v1548
        %1608 = vmatprep.subr.mxu0 0.0
        %1609 = vmatpush1.msra.mxu0 %v1549
        %1610 = vmatprep.subr.mxu0 0.0
        %1611 = vmatpush1.msra.mxu0 %v1550
        %1612 = vmatprep.subr.mxu0 0.0
        %1613 = vmatpush1.msra.mxu0 %v1551
        %1614 = vmatprep.subr.mxu0 0.0
        %1615 = vmatpush1.msra.mxu0 %v1552
        %1616 = vmatprep.subr.mxu0 0.0
        %1617 = vmatpush1.msra.mxu0 %v1553
        %1618 = vmatprep.mubr.f32.mxu0 %v1491
        %1619 = vmatmul.mubr.f32.gmra.mrb[0].mxu0 %v1490
        %v1620 = vpop.f32.mrb[0].mxu0
        %v1621 = vadd.f32 0.0, %v1620
        %v1622 = vpop.f32.mrb[0].mxu0
        %1623 = vmatprep.mubr.f32.mxu0 %v1493
        %1624 = vmatmul.mubr.f32.gmra.mrb[0].mxu0 %v1492
        %v1625 = vpop.f32.mrb[0].mxu0
        %v1626 = vadd.f32 0.0, %v1625
        %v1627 = vpop.f32.mrb[0].mxu0
        %1628 = vmatprep.mubr.f32.mxu0 %v1495
        %1629 = vmatmul.mubr.f32.gmra.mrb[0].mxu0 %v1494
        %v1630 = vpop.f32.mrb[0].mxu0
        %v1631 = vadd.f32 0.0, %v1630
        %v1632 = vpop.f32.mrb[0].mxu0
        %1633 = vmatprep.mubr.f32.mxu0 %v1497
        %1634 = vmatmul.mubr.f32.gmra.mrb[0].mxu0 %v1496
        %v1635 = vpop.f32.mrb[0].mxu0
        %v1636 = vadd.f32 0.0, %v1635
        %v1637 = vpop.f32.mrb[0].mxu0
        %1638 = vmatprep.mubr.f32.mxu0 %v1499
        %1639 = vmatmul.mubr.f32.gmra.mrb[0].mxu0 %v1498
        %v1640 = vpop.f32.mrb[0].mxu0
        %v1641 = vadd.f32 0.0, %v1640
        %v1642 = vpop.f32.mrb[0].mxu0
        %1643 = vmatprep.mubr.f32.mxu0 %v1501
        %1644 = vmatmul.mubr.f32.gmra.mrb[0].mxu0 %v1500
        %v1645 = vpop.f32.mrb[0].mxu0
        %v1646 = vadd.f32 0.0, %v1645
        %v1647 = vpop.f32.mrb[0].mxu0
        %1648 = vmatprep.mubr.f32.mxu0 %v1503
        %1649 = vmatmul.mubr.f32.gmra.mrb[0].mxu0 %v1502
        %v1650 = vpop.f32.mrb[0].mxu0
        %v1651 = vadd.f32 0.0, %v1650
        %v1652 = vpop.f32.mrb[0].mxu0
        %1653 = vmatprep.mubr.f32.mxu0 %v1505
        %1654 = vmatmul.mubr.f32.gmra.mrb[0].mxu0 %v1504
        %v1655 = vpop.f32.mrb[0].mxu0
        %v1656 = vadd.f32 0.0, %v1655
        %v1657 = vpop.f32.mrb[0].mxu0
        %1658 = vmatprep.mubr.f32.mxu0 %v1507
        %1659 = vmatmul.mubr.f32.gmra.mrb[0].mxu0 %v1506
        %v1660 = vpop.f32.mrb[0].mxu0
        %v1661 = vadd.f32 0.0, %v1660
        %v1662 = vpop.f32.mrb[0].mxu0
        %1663 = vmatprep.mubr.f32.mxu0 %v1509
        %1664 = vmatmul.mubr.f32.gmra.mrb[0].mxu0 %v1508
        %v1665 = vpop.f32.mrb[0].mxu0
        %v1666 = vadd.f32 0.0, %v1665
        %v1667 = vpop.f32.mrb[0].mxu0
        %1668 = vmatprep.mubr.f32.mxu0 %v1511
        %1669 = vmatmul.mubr.f32.gmra.mrb[0].mxu0 %v1510
        %v1670 = vpop.f32.mrb[0].mxu0
        %v1671 = vadd.f32 0.0, %v1670
        %v1672 = vpop.f32.mrb[0].mxu0
        %1673 = vmatprep.mubr.f32.mxu0 %v1513
        %1674 = vmatmul.mubr.f32.gmra.mrb[0].mxu0 %v1512
        %v1675 = vpop.f32.mrb[0].mxu0
        %v1676 = vadd.f32 0.0, %v1675
        %v1677 = vpop.f32.mrb[0].mxu0
        %1678 = vmatprep.mubr.f32.mxu0 %v1515
        %1679 = vmatmul.mubr.f32.gmra.mrb[0].mxu0 %v1514
        %v1680 = vpop.f32.mrb[0].mxu0
        %v1681 = vadd.f32 0.0, %v1680
        %v1682 = vpop.f32.mrb[0].mxu0
        %1683 = vmatprep.mubr.f32.mxu0 %v1517
        %1684 = vmatmul.mubr.f32.gmra.mrb[0].mxu0 %v1516
        %v1685 = vpop.f32.mrb[0].mxu0
        %v1686 = vadd.f32 0.0, %v1685
        %v1687 = vpop.f32.mrb[0].mxu0
        %1688 = vmatprep.mubr.f32.mxu0 %v1519
        %1689 = vmatmul.mubr.f32.gmra.mrb[0].mxu0 %v1518
        %v1690 = vpop.f32.mrb[0].mxu0
        %v1691 = vadd.f32 0.0, %v1690
        %v1692 = vpop.f32.mrb[0].mxu0
        %1693 = vmatprep.mubr.f32.mxu0 %v1521
        %1694 = vmatmul.mubr.f32.gmra.mrb[0].mxu0 %v1520
        %v1695 = vpop.f32.mrb[0].mxu0
        %v1696 = vadd.f32 0.0, %v1695
        %v1697 = vpop.f32.mrb[0].mxu0
        %1698 = vdwg.mxu0
        %v1699 = vld [vmem:[#allocation10] sm:$0xff]
        %v1700 = vld [vmem:[#allocation10 + $0x8] sm:$0xff]
        %v1701 = vld [vmem:[#allocation10 + $0x10] sm:$0xff]
        %v1702 = vld [vmem:[#allocation10 + $0x18] sm:$0xff]
        %v1703 = vld [vmem:[#allocation10 + $0x20] sm:$0xff]
        %v1704 = vld [vmem:[#allocation10 + $0x28] sm:$0xff]
        %v1705 = vld [vmem:[#allocation10 + $0x30] sm:$0xff]
        %v1706 = vld [vmem:[#allocation10 + $0x38] sm:$0xff]
        %v1707 = vld [vmem:[#allocation10 + $0x40] sm:$0xff]
        %v1708 = vld [vmem:[#allocation10 + $0x48] sm:$0xff]
        %v1709 = vld [vmem:[#allocation10 + $0x50] sm:$0xff]
        %v1710 = vld [vmem:[#allocation10 + $0x58] sm:$0xff]
        %v1711 = vld [vmem:[#allocation10 + $0x60] sm:$0xff]
        %v1712 = vld [vmem:[#allocation10 + $0x68] sm:$0xff]
        %v1713 = vld [vmem:[#allocation10 + $0x70] sm:$0xff]
        %v1714 = vld [vmem:[#allocation10 + $0x78] sm:$0xff]
        %s1715 = scalar_lea.vmem %s317, 256 [#allocation7]
        %v1716 = vld [vmem:[%s1715] sm:$0xff]
        %v1717 = vld [vmem:[%s1715 + $0x8] sm:$0xff]
        %v1718 = vld [vmem:[%s1715 + $0x10] sm:$0xff]
        %v1719 = vld [vmem:[%s1715 + $0x18] sm:$0xff]
        %v1720 = vld [vmem:[%s1715 + $0x20] sm:$0xff]
        %v1721 = vld [vmem:[%s1715 + $0x28] sm:$0xff]
        %v1722 = vld [vmem:[%s1715 + $0x30] sm:$0xff]
        %v1723 = vld [vmem:[%s1715 + $0x38] sm:$0xff]
        %v1724 = vld [vmem:[%s1715 + $0x40] sm:$0xff]
        %v1725 = vld [vmem:[%s1715 + $0x48] sm:$0xff]
        %v1726 = vld [vmem:[%s1715 + $0x50] sm:$0xff]
        %v1727 = vld [vmem:[%s1715 + $0x58] sm:$0xff]
        %v1728 = vld [vmem:[%s1715 + $0x60] sm:$0xff]
        %v1729 = vld [vmem:[%s1715 + $0x68] sm:$0xff]
        %v1730 = vld [vmem:[%s1715 + $0x70] sm:$0xff]
        %v1731 = vld [vmem:[%s1715 + $0x78] sm:$0xff]
        %v1732 = vld [vmem:[%s1715 + $0x80] sm:$0xff]
        %v1733 = vld [vmem:[%s1715 + $0x88] sm:$0xff]
        %v1734 = vld [vmem:[%s1715 + $0x90] sm:$0xff]
        %v1735 = vld [vmem:[%s1715 + $0x98] sm:$0xff]
        %v1736 = vld [vmem:[%s1715 + $0xa0] sm:$0xff]
        %v1737 = vld [vmem:[%s1715 + $0xa8] sm:$0xff]
        %v1738 = vld [vmem:[%s1715 + $0xb0] sm:$0xff]
        %v1739 = vld [vmem:[%s1715 + $0xb8] sm:$0xff]
        %v1740 = vld [vmem:[%s1715 + $0xc0] sm:$0xff]
        %v1741 = vld [vmem:[%s1715 + $0xc8] sm:$0xff]
        %v1742 = vld [vmem:[%s1715 + $0xd0] sm:$0xff]
        %v1743 = vld [vmem:[%s1715 + $0xd8] sm:$0xff]
        %v1744 = vld [vmem:[%s1715 + $0xe0] sm:$0xff]
        %v1745 = vld [vmem:[%s1715 + $0xe8] sm:$0xff]
        %v1746 = vld [vmem:[%s1715 + $0xf0] sm:$0xff]
        %v1747 = vld [vmem:[%s1715 + $0xf8] sm:$0xff]
        %s1748 = scalar_lea.vmem [#allocation2], 256
        %v1749 = vld [vmem:[%s1748] sm:$0xff]
        %v1750 = vld [vmem:[%s1748 + $0x8] sm:$0xff]
        %v1751 = vld [vmem:[%s1748 + $0x10] sm:$0xff]
        %v1752 = vld [vmem:[%s1748 + $0x18] sm:$0xff]
        %v1753 = vld [vmem:[%s1748 + $0x20] sm:$0xff]
        %v1754 = vld [vmem:[%s1748 + $0x28] sm:$0xff]
        %v1755 = vld [vmem:[%s1748 + $0x30] sm:$0xff]
        %v1756 = vld [vmem:[%s1748 + $0x38] sm:$0xff]
        %v1757 = vld [vmem:[%s1748 + $0x40] sm:$0xff]
        %v1758 = vld [vmem:[%s1748 + $0x48] sm:$0xff]
        %v1759 = vld [vmem:[%s1748 + $0x50] sm:$0xff]
        %v1760 = vld [vmem:[%s1748 + $0x58] sm:$0xff]
        %v1761 = vld [vmem:[%s1748 + $0x60] sm:$0xff]
        %v1762 = vld [vmem:[%s1748 + $0x68] sm:$0xff]
        %v1763 = vld [vmem:[%s1748 + $0x70] sm:$0xff]
        %v1764 = vld [vmem:[%s1748 + $0x78] sm:$0xff]
        %v1765 = vld [vmem:[%s1748 + $0x80] sm:$0xff]
        %v1766 = vld [vmem:[%s1748 + $0x88] sm:$0xff]
        %v1767 = vld [vmem:[%s1748 + $0x90] sm:$0xff]
        %v1768 = vld [vmem:[%s1748 + $0x98] sm:$0xff]
        %v1769 = vld [vmem:[%s1748 + $0xa0] sm:$0xff]
        %v1770 = vld [vmem:[%s1748 + $0xa8] sm:$0xff]
        %v1771 = vld [vmem:[%s1748 + $0xb0] sm:$0xff]
        %v1772 = vld [vmem:[%s1748 + $0xb8] sm:$0xff]
        %v1773 = vld [vmem:[%s1748 + $0xc0] sm:$0xff]
        %v1774 = vld [vmem:[%s1748 + $0xc8] sm:$0xff]
        %v1775 = vld [vmem:[%s1748 + $0xd0] sm:$0xff]
        %v1776 = vld [vmem:[%s1748 + $0xd8] sm:$0xff]
        %v1777 = vld [vmem:[%s1748 + $0xe0] sm:$0xff]
        %v1778 = vld [vmem:[%s1748 + $0xe8] sm:$0xff]
        %v1779 = vld [vmem:[%s1748 + $0xf0] sm:$0xff]
        %v1780 = vld [vmem:[%s1748 + $0xf8] sm:$0xff]
        %1781 = vmatprep.subr.mxu0 0.0
        %1782 = vmatpush1.msra.mxu0 %v1749
        %1783 = vmatprep.subr.mxu0 0.0
        %1784 = vmatpush1.msra.mxu0 %v1750
        %1785 = vmatprep.subr.mxu0 0.0
        %1786 = vmatpush1.msra.mxu0 %v1751
        %1787 = vmatprep.subr.mxu0 0.0
        %1788 = vmatpush1.msra.mxu0 %v1752
        %1789 = vmatprep.subr.mxu0 0.0
        %1790 = vmatpush1.msra.mxu0 %v1753
        %1791 = vmatprep.subr.mxu0 0.0
        %1792 = vmatpush1.msra.mxu0 %v1754
        %1793 = vmatprep.subr.mxu0 0.0
        %1794 = vmatpush1.msra.mxu0 %v1755
        %1795 = vmatprep.subr.mxu0 0.0
        %1796 = vmatpush1.msra.mxu0 %v1756
        %1797 = vmatprep.subr.mxu0 0.0
        %1798 = vmatpush1.msra.mxu0 %v1757
        %1799 = vmatprep.subr.mxu0 0.0
        %1800 = vmatpush1.msra.mxu0 %v1758
        %1801 = vmatprep.subr.mxu0 0.0
        %1802 = vmatpush1.msra.mxu0 %v1759
        %1803 = vmatprep.subr.mxu0 0.0
        %1804 = vmatpush1.msra.mxu0 %v1760
        %1805 = vmatprep.subr.mxu0 0.0
        %1806 = vmatpush1.msra.mxu0 %v1761
        %1807 = vmatprep.subr.mxu0 0.0
        %1808 = vmatpush1.msra.mxu0 %v1762
        %1809 = vmatprep.subr.mxu0 0.0
        %1810 = vmatpush1.msra.mxu0 %v1763
        %1811 = vmatprep.subr.mxu0 0.0
        %1812 = vmatpush1.msra.mxu0 %v1764
        %1813 = vmatprep.subr.mxu0 0.0
        %1814 = vmatpush1.msra.mxu0 %v1765
        %1815 = vmatprep.subr.mxu0 0.0
        %1816 = vmatpush1.msra.mxu0 %v1766
        %1817 = vmatprep.subr.mxu0 0.0
        %1818 = vmatpush1.msra.mxu0 %v1767
        %1819 = vmatprep.subr.mxu0 0.0
        %1820 = vmatpush1.msra.mxu0 %v1768
        %1821 = vmatprep.subr.mxu0 0.0
        %1822 = vmatpush1.msra.mxu0 %v1769
        %1823 = vmatprep.subr.mxu0 0.0
        %1824 = vmatpush1.msra.mxu0 %v1770
        %1825 = vmatprep.subr.mxu0 0.0
        %1826 = vmatpush1.msra.mxu0 %v1771
        %1827 = vmatprep.subr.mxu0 0.0
        %1828 = vmatpush1.msra.mxu0 %v1772
        %1829 = vmatprep.subr.mxu0 0.0
        %1830 = vmatpush1.msra.mxu0 %v1773
        %1831 = vmatprep.subr.mxu0 0.0
        %1832 = vmatpush1.msra.mxu0 %v1774
        %1833 = vmatprep.subr.mxu0 0.0
        %1834 = vmatpush1.msra.mxu0 %v1775
        %1835 = vmatprep.subr.mxu0 0.0
        %1836 = vmatpush1.msra.mxu0 %v1776
        %1837 = vmatprep.subr.mxu0 0.0
        %1838 = vmatpush1.msra.mxu0 %v1777
        %1839 = vmatprep.subr.mxu0 0.0
        %1840 = vmatpush1.msra.mxu0 %v1778
        %1841 = vmatprep.subr.mxu0 0.0
        %1842 = vmatpush1.msra.mxu0 %v1779
        %1843 = vmatprep.subr.mxu0 0.0
        %1844 = vmatpush1.msra.mxu0 %v1780
        %1845 = vmatprep.mubr.f32.mxu0 %v1717
        %1846 = vmatmul.mubr.f32.gmra.mrb[0].mxu0 %v1716
        %v1847 = vpop.f32.mrb[0].mxu0
        %v1848 = vadd.f32 0.0, %v1847
        %v1849 = vpop.f32.mrb[0].mxu0
        %1850 = vmatprep.mubr.f32.mxu0 %v1719
        %1851 = vmatmul.mubr.f32.gmra.mrb[0].mxu0 %v1718
        %v1852 = vpop.f32.mrb[0].mxu0
        %v1853 = vadd.f32 0.0, %v1852
        %v1854 = vpop.f32.mrb[0].mxu0
        %1855 = vmatprep.mubr.f32.mxu0 %v1721
        %1856 = vmatmul.mubr.f32.gmra.mrb[0].mxu0 %v1720
        %v1857 = vpop.f32.mrb[0].mxu0
        %v1858 = vadd.f32 0.0, %v1857
        %v1859 = vpop.f32.mrb[0].mxu0
        %1860 = vmatprep.mubr.f32.mxu0 %v1723
        %1861 = vmatmul.mubr.f32.gmra.mrb[0].mxu0 %v1722
        %v1862 = vpop.f32.mrb[0].mxu0
        %v1863 = vadd.f32 0.0, %v1862
        %v1864 = vpop.f32.mrb[0].mxu0
        %1865 = vmatprep.mubr.f32.mxu0 %v1725
        %1866 = vmatmul.mubr.f32.gmra.mrb[0].mxu0 %v1724
        %v1867 = vpop.f32.mrb[0].mxu0
        %v1868 = vadd.f32 0.0, %v1867
        %v1869 = vpop.f32.mrb[0].mxu0
        %1870 = vmatprep.mubr.f32.mxu0 %v1727
        %1871 = vmatmul.mubr.f32.gmra.mrb[0].mxu0 %v1726
        %v1872 = vpop.f32.mrb[0].mxu0
        %v1873 = vadd.f32 0.0, %v1872
        %v1874 = vpop.f32.mrb[0].mxu0
        %1875 = vmatprep.mubr.f32.mxu0 %v1729
        %1876 = vmatmul.mubr.f32.gmra.mrb[0].mxu0 %v1728
        %v1877 = vpop.f32.mrb[0].mxu0
        %v1878 = vadd.f32 0.0, %v1877
        %v1879 = vpop.f32.mrb[0].mxu0
        %1880 = vmatprep.mubr.f32.mxu0 %v1731
        %1881 = vmatmul.mubr.f32.gmra.mrb[0].mxu0 %v1730
        %v1882 = vpop.f32.mrb[0].mxu0
        %v1883 = vadd.f32 0.0, %v1882
        %v1884 = vpop.f32.mrb[0].mxu0
        %1885 = vmatprep.mubr.f32.mxu0 %v1733
        %1886 = vmatmul.mubr.f32.gmra.mrb[0].mxu0 %v1732
        %v1887 = vpop.f32.mrb[0].mxu0
        %v1888 = vadd.f32 0.0, %v1887
        %v1889 = vpop.f32.mrb[0].mxu0
        %1890 = vmatprep.mubr.f32.mxu0 %v1735
        %1891 = vmatmul.mubr.f32.gmra.mrb[0].mxu0 %v1734
        %v1892 = vpop.f32.mrb[0].mxu0
        %v1893 = vadd.f32 0.0, %v1892
        %v1894 = vpop.f32.mrb[0].mxu0
        %1895 = vmatprep.mubr.f32.mxu0 %v1737
        %1896 = vmatmul.mubr.f32.gmra.mrb[0].mxu0 %v1736
        %v1897 = vpop.f32.mrb[0].mxu0
        %v1898 = vadd.f32 0.0, %v1897
        %v1899 = vpop.f32.mrb[0].mxu0
        %1900 = vmatprep.mubr.f32.mxu0 %v1739
        %1901 = vmatmul.mubr.f32.gmra.mrb[0].mxu0 %v1738
        %v1902 = vpop.f32.mrb[0].mxu0
        %v1903 = vadd.f32 0.0, %v1902
        %v1904 = vpop.f32.mrb[0].mxu0
        %1905 = vmatprep.mubr.f32.mxu0 %v1741
        %1906 = vmatmul.mubr.f32.gmra.mrb[0].mxu0 %v1740
        %v1907 = vpop.f32.mrb[0].mxu0
        %v1908 = vadd.f32 0.0, %v1907
        %v1909 = vpop.f32.mrb[0].mxu0
        %1910 = vmatprep.mubr.f32.mxu0 %v1743
        %1911 = vmatmul.mubr.f32.gmra.mrb[0].mxu0 %v1742
        %v1912 = vpop.f32.mrb[0].mxu0
        %v1913 = vadd.f32 0.0, %v1912
        %v1914 = vpop.f32.mrb[0].mxu0
        %1915 = vmatprep.mubr.f32.mxu0 %v1745
        %1916 = vmatmul.mubr.f32.gmra.mrb[0].mxu0 %v1744
        %v1917 = vpop.f32.mrb[0].mxu0
        %v1918 = vadd.f32 0.0, %v1917
        %v1919 = vpop.f32.mrb[0].mxu0
        %1920 = vmatprep.mubr.f32.mxu0 %v1747
        %1921 = vmatmul.mubr.f32.gmra.mrb[0].mxu0 %v1746
        %v1922 = vpop.f32.mrb[0].mxu0
        %v1923 = vadd.f32 0.0, %v1922
        %v1924 = vpop.f32.mrb[0].mxu0
        %1925 = vdwg.mxu0
        %v1926 = vld [vmem:[#allocation10 + $0x80] sm:$0xff]
        %v1927 = vld [vmem:[#allocation10 + $0x88] sm:$0xff]
        %v1928 = vld [vmem:[#allocation10 + $0x90] sm:$0xff]
        %v1929 = vld [vmem:[#allocation10 + $0x98] sm:$0xff]
        %v1930 = vld [vmem:[#allocation10 + $0xa0] sm:$0xff]
        %v1931 = vld [vmem:[#allocation10 + $0xa8] sm:$0xff]
        %v1932 = vld [vmem:[#allocation10 + $0xb0] sm:$0xff]
        %v1933 = vld [vmem:[#allocation10 + $0xb8] sm:$0xff]
        %v1934 = vld [vmem:[#allocation10 + $0xc0] sm:$0xff]
        %v1935 = vld [vmem:[#allocation10 + $0xc8] sm:$0xff]
        %v1936 = vld [vmem:[#allocation10 + $0xd0] sm:$0xff]
        %v1937 = vld [vmem:[#allocation10 + $0xd8] sm:$0xff]
        %v1938 = vld [vmem:[#allocation10 + $0xe0] sm:$0xff]
        %v1939 = vld [vmem:[#allocation10 + $0xe8] sm:$0xff]
        %v1940 = vld [vmem:[#allocation10 + $0xf0] sm:$0xff]
        %v1941 = vld [vmem:[#allocation10 + $0xf8] sm:$0xff]
        %1942 = vmatprep.subr.mxu0 0.0
        %1943 = vmatpush1.msra.mxu0 %v1926
        %1944 = vmatprep.subr.mxu0 0.0
        %1945 = vmatpush1.msra.mxu0 %v1927
        %1946 = vmatprep.subr.mxu0 0.0
        %1947 = vmatpush1.msra.mxu0 %v1928
        %1948 = vmatprep.subr.mxu0 0.0
        %1949 = vmatpush1.msra.mxu0 %v1929
        %1950 = vmatprep.subr.mxu0 0.0
        %1951 = vmatpush1.msra.mxu0 %v1930
        %1952 = vmatprep.subr.mxu0 0.0
        %1953 = vmatpush1.msra.mxu0 %v1931
        %1954 = vmatprep.subr.mxu0 0.0
        %1955 = vmatpush1.msra.mxu0 %v1932
        %1956 = vmatprep.subr.mxu0 0.0
        %1957 = vmatpush1.msra.mxu0 %v1933
        %1958 = vmatprep.subr.mxu0 0.0
        %1959 = vmatpush1.msra.mxu0 %v1934
        %1960 = vmatprep.subr.mxu0 0.0
        %1961 = vmatpush1.msra.mxu0 %v1935
        %1962 = vmatprep.subr.mxu0 0.0
        %1963 = vmatpush1.msra.mxu0 %v1936
        %1964 = vmatprep.subr.mxu0 0.0
        %1965 = vmatpush1.msra.mxu0 %v1937
        %1966 = vmatprep.subr.mxu0 0.0
        %1967 = vmatpush1.msra.mxu0 %v1938
        %1968 = vmatprep.subr.mxu0 0.0
        %1969 = vmatpush1.msra.mxu0 %v1939
        %1970 = vmatprep.subr.mxu0 0.0
        %1971 = vmatpush1.msra.mxu0 %v1940
        %1972 = vmatprep.subr.mxu0 0.0
        %1973 = vmatpush1.msra.mxu0 %v1941
        %1974 = vmatprep.subr.mxu0 0.0
        %1975 = vmatpush1.msra.mxu0 0.0
        %1976 = vmatprep.subr.mxu0 0.0
        %1977 = vmatpush1.msra.mxu0 0.0
        %1978 = vmatprep.subr.mxu0 0.0
        %1979 = vmatpush1.msra.mxu0 0.0
        %1980 = vmatprep.subr.mxu0 0.0
        %1981 = vmatpush1.msra.mxu0 0.0
        %1982 = vmatprep.subr.mxu0 0.0
        %1983 = vmatpush1.msra.mxu0 0.0
        %1984 = vmatprep.subr.mxu0 0.0
        %1985 = vmatpush1.msra.mxu0 0.0
        %1986 = vmatprep.subr.mxu0 0.0
        %1987 = vmatpush1.msra.mxu0 0.0
        %1988 = vmatprep.subr.mxu0 0.0
        %1989 = vmatpush1.msra.mxu0 0.0
        %1990 = vmatprep.subr.mxu0 0.0
        %1991 = vmatpush1.msra.mxu0 0.0
        %1992 = vmatprep.subr.mxu0 0.0
        %1993 = vmatpush1.msra.mxu0 0.0
        %1994 = vmatprep.subr.mxu0 0.0
        %1995 = vmatpush1.msra.mxu0 0.0
        %1996 = vmatprep.subr.mxu0 0.0
        %1997 = vmatpush1.msra.mxu0 0.0
        %1998 = vmatprep.subr.mxu0 0.0
        %1999 = vmatpush1.msra.mxu0 0.0
        %2000 = vmatprep.subr.mxu0 0.0
        %2001 = vmatpush1.msra.mxu0 0.0
        %2002 = vmatprep.subr.mxu0 0.0
        %2003 = vmatpush1.msra.mxu0 0.0
        %2004 = vmatprep.subr.mxu0 0.0
        %2005 = vmatpush1.msra.mxu0 0.0
        %2006 = vmatprep.mubr.f32.mxu0 0.0
        %2007 = vmatmul.mubr.f32.gmra.mrb[0].mxu0 %v1848
        %v2008 = vpop.f32.mrb[0].mxu0
        %v2009 = vadd.f32 0.0, %v2008
        %v2010 = vpop.f32.mrb[0].mxu0
        %2011 = vmatprep.mubr.f32.mxu0 0.0
        %2012 = vmatmul.mubr.f32.gmra.mrb[0].mxu0 %v1853
        %v2013 = vpop.f32.mrb[0].mxu0
        %v2014 = vadd.f32 0.0, %v2013
        %v2015 = vpop.f32.mrb[0].mxu0
        %2016 = vmatprep.mubr.f32.mxu0 0.0
        %2017 = vmatmul.mubr.f32.gmra.mrb[0].mxu0 %v1858
        %v2018 = vpop.f32.mrb[0].mxu0
        %v2019 = vadd.f32 0.0, %v2018
        %v2020 = vpop.f32.mrb[0].mxu0
        %2021 = vmatprep.mubr.f32.mxu0 0.0
        %2022 = vmatmul.mubr.f32.gmra.mrb[0].mxu0 %v1863
        %v2023 = vpop.f32.mrb[0].mxu0
        %v2024 = vadd.f32 0.0, %v2023
        %v2025 = vpop.f32.mrb[0].mxu0
        %2026 = vmatprep.mubr.f32.mxu0 0.0
        %2027 = vmatmul.mubr.f32.gmra.mrb[0].mxu0 %v1868
        %v2028 = vpop.f32.mrb[0].mxu0
        %v2029 = vadd.f32 0.0, %v2028
        %v2030 = vpop.f32.mrb[0].mxu0
        %2031 = vmatprep.mubr.f32.mxu0 0.0
        %2032 = vmatmul.mubr.f32.gmra.mrb[0].mxu0 %v1873
        %v2033 = vpop.f32.mrb[0].mxu0
        %v2034 = vadd.f32 0.0, %v2033
        %v2035 = vpop.f32.mrb[0].mxu0
        %2036 = vmatprep.mubr.f32.mxu0 0.0
        %2037 = vmatmul.mubr.f32.gmra.mrb[0].mxu0 %v1878
        %v2038 = vpop.f32.mrb[0].mxu0
        %v2039 = vadd.f32 0.0, %v2038
        %v2040 = vpop.f32.mrb[0].mxu0
        %2041 = vmatprep.mubr.f32.mxu0 0.0
        %2042 = vmatmul.mubr.f32.gmra.mrb[0].mxu0 %v1883
        %v2043 = vpop.f32.mrb[0].mxu0
        %v2044 = vadd.f32 0.0, %v2043
        %v2045 = vpop.f32.mrb[0].mxu0
        %2046 = vmatprep.mubr.f32.mxu0 0.0
        %2047 = vmatmul.mubr.f32.gmra.mrb[0].mxu0 %v1888
        %v2048 = vpop.f32.mrb[0].mxu0
        %v2049 = vadd.f32 0.0, %v2048
        %v2050 = vpop.f32.mrb[0].mxu0
        %2051 = vmatprep.mubr.f32.mxu0 0.0
        %2052 = vmatmul.mubr.f32.gmra.mrb[0].mxu0 %v1893
        %v2053 = vpop.f32.mrb[0].mxu0
        %v2054 = vadd.f32 0.0, %v2053
        %v2055 = vpop.f32.mrb[0].mxu0
        %2056 = vmatprep.mubr.f32.mxu0 0.0
        %2057 = vmatmul.mubr.f32.gmra.mrb[0].mxu0 %v1898
        %v2058 = vpop.f32.mrb[0].mxu0
        %v2059 = vadd.f32 0.0, %v2058
        %v2060 = vpop.f32.mrb[0].mxu0
        %2061 = vmatprep.mubr.f32.mxu0 0.0
        %2062 = vmatmul.mubr.f32.gmra.mrb[0].mxu0 %v1903
        %v2063 = vpop.f32.mrb[0].mxu0
        %v2064 = vadd.f32 0.0, %v2063
        %v2065 = vpop.f32.mrb[0].mxu0
        %2066 = vmatprep.mubr.f32.mxu0 0.0
        %2067 = vmatmul.mubr.f32.gmra.mrb[0].mxu0 %v1908
        %v2068 = vpop.f32.mrb[0].mxu0
        %v2069 = vadd.f32 0.0, %v2068
        %v2070 = vpop.f32.mrb[0].mxu0
        %2071 = vmatprep.mubr.f32.mxu0 0.0
        %2072 = vmatmul.mubr.f32.gmra.mrb[0].mxu0 %v1913
        %v2073 = vpop.f32.mrb[0].mxu0
        %v2074 = vadd.f32 0.0, %v2073
        %v2075 = vpop.f32.mrb[0].mxu0
        %2076 = vmatprep.mubr.f32.mxu0 0.0
        %2077 = vmatmul.mubr.f32.gmra.mrb[0].mxu0 %v1918
        %v2078 = vpop.f32.mrb[0].mxu0
        %v2079 = vadd.f32 0.0, %v2078
        %v2080 = vpop.f32.mrb[0].mxu0
        %2081 = vmatprep.mubr.f32.mxu0 0.0
        %2082 = vmatmul.mubr.f32.gmra.mrb[0].mxu0 %v1923
        %v2083 = vpop.f32.mrb[0].mxu0
        %v2084 = vadd.f32 0.0, %v2083
        %v2085 = vpop.f32.mrb[0].mxu0
        %2086 = vdwg.mxu0
        %2087 = vmatprep.subr.mxu0 0.0
        %2088 = vmatpush1.msra.mxu0 %v1699
        %2089 = vmatprep.subr.mxu0 0.0
        %2090 = vmatpush1.msra.mxu0 %v1700
        %2091 = vmatprep.subr.mxu0 0.0
        %2092 = vmatpush1.msra.mxu0 %v1701
        %2093 = vmatprep.subr.mxu0 0.0
        %2094 = vmatpush1.msra.mxu0 %v1702
        %2095 = vmatprep.subr.mxu0 0.0
        %2096 = vmatpush1.msra.mxu0 %v1703
        %2097 = vmatprep.subr.mxu0 0.0
        %2098 = vmatpush1.msra.mxu0 %v1704
        %2099 = vmatprep.subr.mxu0 0.0
        %2100 = vmatpush1.msra.mxu0 %v1705
        %2101 = vmatprep.subr.mxu0 0.0
        %2102 = vmatpush1.msra.mxu0 %v1706
        %2103 = vmatprep.subr.mxu0 0.0
        %2104 = vmatpush1.msra.mxu0 %v1707
        %2105 = vmatprep.subr.mxu0 0.0
        %2106 = vmatpush1.msra.mxu0 %v1708
        %2107 = vmatprep.subr.mxu0 0.0
        %2108 = vmatpush1.msra.mxu0 %v1709
        %2109 = vmatprep.subr.mxu0 0.0
        %2110 = vmatpush1.msra.mxu0 %v1710
        %2111 = vmatprep.subr.mxu0 0.0
        %2112 = vmatpush1.msra.mxu0 %v1711
        %2113 = vmatprep.subr.mxu0 0.0
        %2114 = vmatpush1.msra.mxu0 %v1712
        %2115 = vmatprep.subr.mxu0 0.0
        %2116 = vmatpush1.msra.mxu0 %v1713
        %2117 = vmatprep.subr.mxu0 0.0
        %2118 = vmatpush1.msra.mxu0 %v1714
        %2119 = vmatprep.subr.mxu0 0.0
        %2120 = vmatpush1.msra.mxu0 0.0
        %2121 = vmatprep.subr.mxu0 0.0
        %2122 = vmatpush1.msra.mxu0 0.0
        %2123 = vmatprep.subr.mxu0 0.0
        %2124 = vmatpush1.msra.mxu0 0.0
        %2125 = vmatprep.subr.mxu0 0.0
        %2126 = vmatpush1.msra.mxu0 0.0
        %2127 = vmatprep.subr.mxu0 0.0
        %2128 = vmatpush1.msra.mxu0 0.0
        %2129 = vmatprep.subr.mxu0 0.0
        %2130 = vmatpush1.msra.mxu0 0.0
        %2131 = vmatprep.subr.mxu0 0.0
        %2132 = vmatpush1.msra.mxu0 0.0
        %2133 = vmatprep.subr.mxu0 0.0
        %2134 = vmatpush1.msra.mxu0 0.0
        %2135 = vmatprep.subr.mxu0 0.0
        %2136 = vmatpush1.msra.mxu0 0.0
        %2137 = vmatprep.subr.mxu0 0.0
        %2138 = vmatpush1.msra.mxu0 0.0
        %2139 = vmatprep.subr.mxu0 0.0
        %2140 = vmatpush1.msra.mxu0 0.0
        %2141 = vmatprep.subr.mxu0 0.0
        %2142 = vmatpush1.msra.mxu0 0.0
        %2143 = vmatprep.subr.mxu0 0.0
        %2144 = vmatpush1.msra.mxu0 0.0
        %2145 = vmatprep.subr.mxu0 0.0
        %2146 = vmatpush1.msra.mxu0 0.0
        %2147 = vmatprep.subr.mxu0 0.0
        %2148 = vmatpush1.msra.mxu0 0.0
        %2149 = vmatprep.subr.mxu0 0.0
        %2150 = vmatpush1.msra.mxu0 0.0
        %2151 = vmatprep.mubr.f32.mxu0 0.0
        %2152 = vmatmul.mubr.f32.gmra.mrb[0].mxu0 %v1621
        %v2153 = vpop.f32.mrb[0].mxu0
        %v2154 = vadd.f32 %v2009, %v2153
        %v2155 = vpop.f32.mrb[0].mxu0
        %2156 = vmatprep.mubr.f32.mxu0 0.0
        %2157 = vmatmul.mubr.f32.gmra.mrb[0].mxu0 %v1626
        %v2158 = vpop.f32.mrb[0].mxu0
        %v2159 = vadd.f32 %v2014, %v2158
        %v2160 = vpop.f32.mrb[0].mxu0
        %2161 = vmatprep.mubr.f32.mxu0 0.0
        %2162 = vmatmul.mubr.f32.gmra.mrb[0].mxu0 %v1631
        %v2163 = vpop.f32.mrb[0].mxu0
        %v2164 = vadd.f32 %v2019, %v2163
        %v2165 = vpop.f32.mrb[0].mxu0
        %2166 = vmatprep.mubr.f32.mxu0 0.0
        %2167 = vmatmul.mubr.f32.gmra.mrb[0].mxu0 %v1636
        %v2168 = vpop.f32.mrb[0].mxu0
        %v2169 = vadd.f32 %v2024, %v2168
        %v2170 = vpop.f32.mrb[0].mxu0
        %2171 = vmatprep.mubr.f32.mxu0 0.0
        %2172 = vmatmul.mubr.f32.gmra.mrb[0].mxu0 %v1641
        %v2173 = vpop.f32.mrb[0].mxu0
        %v2174 = vadd.f32 %v2029, %v2173
        %v2175 = vpop.f32.mrb[0].mxu0
        %2176 = vmatprep.mubr.f32.mxu0 0.0
        %2177 = vmatmul.mubr.f32.gmra.mrb[0].mxu0 %v1646
        %v2178 = vpop.f32.mrb[0].mxu0
        %v2179 = vadd.f32 %v2034, %v2178
        %v2180 = vpop.f32.mrb[0].mxu0
        %2181 = vmatprep.mubr.f32.mxu0 0.0
        %2182 = vmatmul.mubr.f32.gmra.mrb[0].mxu0 %v1651
        %v2183 = vpop.f32.mrb[0].mxu0
        %v2184 = vadd.f32 %v2039, %v2183
        %v2185 = vpop.f32.mrb[0].mxu0
        %2186 = vmatprep.mubr.f32.mxu0 0.0
        %2187 = vmatmul.mubr.f32.gmra.mrb[0].mxu0 %v1656
        %v2188 = vpop.f32.mrb[0].mxu0
        %v2189 = vadd.f32 %v2044, %v2188
        %v2190 = vpop.f32.mrb[0].mxu0
        %2191 = vmatprep.mubr.f32.mxu0 0.0
        %2192 = vmatmul.mubr.f32.gmra.mrb[0].mxu0 %v1661
        %v2193 = vpop.f32.mrb[0].mxu0
        %v2194 = vadd.f32 %v2049, %v2193
        %v2195 = vpop.f32.mrb[0].mxu0
        %2196 = vmatprep.mubr.f32.mxu0 0.0
        %2197 = vmatmul.mubr.f32.gmra.mrb[0].mxu0 %v1666
        %v2198 = vpop.f32.mrb[0].mxu0
        %v2199 = vadd.f32 %v2054, %v2198
        %v2200 = vpop.f32.mrb[0].mxu0
        %2201 = vmatprep.mubr.f32.mxu0 0.0
        %2202 = vmatmul.mubr.f32.gmra.mrb[0].mxu0 %v1671
        %v2203 = vpop.f32.mrb[0].mxu0
        %v2204 = vadd.f32 %v2059, %v2203
        %v2205 = vpop.f32.mrb[0].mxu0
        %2206 = vmatprep.mubr.f32.mxu0 0.0
        %2207 = vmatmul.mubr.f32.gmra.mrb[0].mxu0 %v1676
        %v2208 = vpop.f32.mrb[0].mxu0
        %v2209 = vadd.f32 %v2064, %v2208
        %v2210 = vpop.f32.mrb[0].mxu0
        %2211 = vmatprep.mubr.f32.mxu0 0.0
        %2212 = vmatmul.mubr.f32.gmra.mrb[0].mxu0 %v1681
        %v2213 = vpop.f32.mrb[0].mxu0
        %v2214 = vadd.f32 %v2069, %v2213
        %v2215 = vpop.f32.mrb[0].mxu0
        %2216 = vmatprep.mubr.f32.mxu0 0.0
        %2217 = vmatmul.mubr.f32.gmra.mrb[0].mxu0 %v1686
        %v2218 = vpop.f32.mrb[0].mxu0
        %v2219 = vadd.f32 %v2074, %v2218
        %v2220 = vpop.f32.mrb[0].mxu0
        %2221 = vmatprep.mubr.f32.mxu0 0.0
        %2222 = vmatmul.mubr.f32.gmra.mrb[0].mxu0 %v1691
        %v2223 = vpop.f32.mrb[0].mxu0
        %v2224 = vadd.f32 %v2079, %v2223
        %v2225 = vpop.f32.mrb[0].mxu0
        %2226 = vmatprep.mubr.f32.mxu0 0.0
        %2227 = vmatmul.mubr.f32.gmra.mrb[0].mxu0 %v1696
        %v2228 = vpop.f32.mrb[0].mxu0
        %v2229 = vadd.f32 %v2084, %v2228
        %v2230 = vpop.f32.mrb[0].mxu0
        %2231 = vdwg.mxu0
        %s2232 = scalar_lea.vmem %s317, 512 [#allocation7]
        %v2233 = vld [vmem:[%s2232] sm:$0xff]
        %v2234 = vld [vmem:[%s2232 + $0x8] sm:$0xff]
        %v2235 = vld [vmem:[%s2232 + $0x10] sm:$0xff]
        %v2236 = vld [vmem:[%s2232 + $0x18] sm:$0xff]
        %v2237 = vld [vmem:[%s2232 + $0x20] sm:$0xff]
        %v2238 = vld [vmem:[%s2232 + $0x28] sm:$0xff]
        %v2239 = vld [vmem:[%s2232 + $0x30] sm:$0xff]
        %v2240 = vld [vmem:[%s2232 + $0x38] sm:$0xff]
        %v2241 = vld [vmem:[%s2232 + $0x40] sm:$0xff]
        %v2242 = vld [vmem:[%s2232 + $0x48] sm:$0xff]
        %v2243 = vld [vmem:[%s2232 + $0x50] sm:$0xff]
        %v2244 = vld [vmem:[%s2232 + $0x58] sm:$0xff]
        %v2245 = vld [vmem:[%s2232 + $0x60] sm:$0xff]
        %v2246 = vld [vmem:[%s2232 + $0x68] sm:$0xff]
        %v2247 = vld [vmem:[%s2232 + $0x70] sm:$0xff]
        %v2248 = vld [vmem:[%s2232 + $0x78] sm:$0xff]
        %v2249 = vld [vmem:[%s2232 + $0x80] sm:$0xff]
        %v2250 = vld [vmem:[%s2232 + $0x88] sm:$0xff]
        %v2251 = vld [vmem:[%s2232 + $0x90] sm:$0xff]
        %v2252 = vld [vmem:[%s2232 + $0x98] sm:$0xff]
        %v2253 = vld [vmem:[%s2232 + $0xa0] sm:$0xff]
        %v2254 = vld [vmem:[%s2232 + $0xa8] sm:$0xff]
        %v2255 = vld [vmem:[%s2232 + $0xb0] sm:$0xff]
        %v2256 = vld [vmem:[%s2232 + $0xb8] sm:$0xff]
        %v2257 = vld [vmem:[%s2232 + $0xc0] sm:$0xff]
        %v2258 = vld [vmem:[%s2232 + $0xc8] sm:$0xff]
        %v2259 = vld [vmem:[%s2232 + $0xd0] sm:$0xff]
        %v2260 = vld [vmem:[%s2232 + $0xd8] sm:$0xff]
        %v2261 = vld [vmem:[%s2232 + $0xe0] sm:$0xff]
        %v2262 = vld [vmem:[%s2232 + $0xe8] sm:$0xff]
        %v2263 = vld [vmem:[%s2232 + $0xf0] sm:$0xff]
        %v2264 = vld [vmem:[%s2232 + $0xf8] sm:$0xff]
        %s2265 = scalar_lea.vmem [#allocation2], 512
        %v2266 = vld [vmem:[%s2265] sm:$0xff]
        %v2267 = vld [vmem:[%s2265 + $0x8] sm:$0xff]
        %v2268 = vld [vmem:[%s2265 + $0x10] sm:$0xff]
        %v2269 = vld [vmem:[%s2265 + $0x18] sm:$0xff]
        %v2270 = vld [vmem:[%s2265 + $0x20] sm:$0xff]
        %v2271 = vld [vmem:[%s2265 + $0x28] sm:$0xff]
        %v2272 = vld [vmem:[%s2265 + $0x30] sm:$0xff]
        %v2273 = vld [vmem:[%s2265 + $0x38] sm:$0xff]
        %v2274 = vld [vmem:[%s2265 + $0x40] sm:$0xff]
        %v2275 = vld [vmem:[%s2265 + $0x48] sm:$0xff]
        %v2276 = vld [vmem:[%s2265 + $0x50] sm:$0xff]
        %v2277 = vld [vmem:[%s2265 + $0x58] sm:$0xff]
        %v2278 = vld [vmem:[%s2265 + $0x60] sm:$0xff]
        %v2279 = vld [vmem:[%s2265 + $0x68] sm:$0xff]
        %v2280 = vld [vmem:[%s2265 + $0x70] sm:$0xff]
        %v2281 = vld [vmem:[%s2265 + $0x78] sm:$0xff]
        %v2282 = vld [vmem:[%s2265 + $0x80] sm:$0xff]
        %v2283 = vld [vmem:[%s2265 + $0x88] sm:$0xff]
        %v2284 = vld [vmem:[%s2265 + $0x90] sm:$0xff]
        %v2285 = vld [vmem:[%s2265 + $0x98] sm:$0xff]
        %v2286 = vld [vmem:[%s2265 + $0xa0] sm:$0xff]
        %v2287 = vld [vmem:[%s2265 + $0xa8] sm:$0xff]
        %v2288 = vld [vmem:[%s2265 + $0xb0] sm:$0xff]
        %v2289 = vld [vmem:[%s2265 + $0xb8] sm:$0xff]
        %v2290 = vld [vmem:[%s2265 + $0xc0] sm:$0xff]
        %v2291 = vld [vmem:[%s2265 + $0xc8] sm:$0xff]
        %v2292 = vld [vmem:[%s2265 + $0xd0] sm:$0xff]
        %v2293 = vld [vmem:[%s2265 + $0xd8] sm:$0xff]
        %v2294 = vld [vmem:[%s2265 + $0xe0] sm:$0xff]
        %v2295 = vld [vmem:[%s2265 + $0xe8] sm:$0xff]
        %v2296 = vld [vmem:[%s2265 + $0xf0] sm:$0xff]
        %v2297 = vld [vmem:[%s2265 + $0xf8] sm:$0xff]
        %2298 = vmatprep.subr.mxu0 0.0
        %2299 = vmatpush1.msra.mxu0 %v2266
        %2300 = vmatprep.subr.mxu0 0.0
        %2301 = vmatpush1.msra.mxu0 %v2267
        %2302 = vmatprep.subr.mxu0 0.0
        %2303 = vmatpush1.msra.mxu0 %v2268
        %2304 = vmatprep.subr.mxu0 0.0
        %2305 = vmatpush1.msra.mxu0 %v2269
        %2306 = vmatprep.subr.mxu0 0.0
        %2307 = vmatpush1.msra.mxu0 %v2270
        %2308 = vmatprep.subr.mxu0 0.0
        %2309 = vmatpush1.msra.mxu0 %v2271
        %2310 = vmatprep.subr.mxu0 0.0
        %2311 = vmatpush1.msra.mxu0 %v2272
        %2312 = vmatprep.subr.mxu0 0.0
        %2313 = vmatpush1.msra.mxu0 %v2273
        %2314 = vmatprep.subr.mxu0 0.0
        %2315 = vmatpush1.msra.mxu0 %v2274
        %2316 = vmatprep.subr.mxu0 0.0
        %2317 = vmatpush1.msra.mxu0 %v2275
        %2318 = vmatprep.subr.mxu0 0.0
        %2319 = vmatpush1.msra.mxu0 %v2276
        %2320 = vmatprep.subr.mxu0 0.0
        %2321 = vmatpush1.msra.mxu0 %v2277
        %2322 = vmatprep.subr.mxu0 0.0
        %2323 = vmatpush1.msra.mxu0 %v2278
        %2324 = vmatprep.subr.mxu0 0.0
        %2325 = vmatpush1.msra.mxu0 %v2279
        %2326 = vmatprep.subr.mxu0 0.0
        %2327 = vmatpush1.msra.mxu0 %v2280
        %2328 = vmatprep.subr.mxu0 0.0
        %2329 = vmatpush1.msra.mxu0 %v2281
        %2330 = vmatprep.subr.mxu0 0.0
        %2331 = vmatpush1.msra.mxu0 %v2282
        %2332 = vmatprep.subr.mxu0 0.0
        %2333 = vmatpush1.msra.mxu0 %v2283
        %2334 = vmatprep.subr.mxu0 0.0
        %2335 = vmatpush1.msra.mxu0 %v2284
        %2336 = vmatprep.subr.mxu0 0.0
        %2337 = vmatpush1.msra.mxu0 %v2285
        %2338 = vmatprep.subr.mxu0 0.0
        %2339 = vmatpush1.msra.mxu0 %v2286
        %2340 = vmatprep.subr.mxu0 0.0
        %2341 = vmatpush1.msra.mxu0 %v2287
        %2342 = vmatprep.subr.mxu0 0.0
        %2343 = vmatpush1.msra.mxu0 %v2288
        %2344 = vmatprep.subr.mxu0 0.0
        %2345 = vmatpush1.msra.mxu0 %v2289
        %2346 = vmatprep.subr.mxu0 0.0
        %2347 = vmatpush1.msra.mxu0 %v2290
        %2348 = vmatprep.subr.mxu0 0.0
        %2349 = vmatpush1.msra.mxu0 %v2291
        %2350 = vmatprep.subr.mxu0 0.0
        %2351 = vmatpush1.msra.mxu0 %v2292
        %2352 = vmatprep.subr.mxu0 0.0
        %2353 = vmatpush1.msra.mxu0 %v2293
        %2354 = vmatprep.subr.mxu0 0.0
        %2355 = vmatpush1.msra.mxu0 %v2294
        %2356 = vmatprep.subr.mxu0 0.0
        %2357 = vmatpush1.msra.mxu0 %v2295
        %2358 = vmatprep.subr.mxu0 0.0
        %2359 = vmatpush1.msra.mxu0 %v2296
        %2360 = vmatprep.subr.mxu0 0.0
        %2361 = vmatpush1.msra.mxu0 %v2297
        %2362 = vmatprep.mubr.f32.mxu0 %v2234
        %2363 = vmatmul.mubr.f32.gmra.mrb[0].mxu0 %v2233
        %v2364 = vpop.f32.mrb[0].mxu0
        %v2365 = vadd.f32 0.0, %v2364
        %v2366 = vpop.f32.mrb[0].mxu0
        %2367 = vmatprep.mubr.f32.mxu0 %v2236
        %2368 = vmatmul.mubr.f32.gmra.mrb[0].mxu0 %v2235
        %v2369 = vpop.f32.mrb[0].mxu0
        %v2370 = vadd.f32 0.0, %v2369
        %v2371 = vpop.f32.mrb[0].mxu0
        %2372 = vmatprep.mubr.f32.mxu0 %v2238
        %2373 = vmatmul.mubr.f32.gmra.mrb[0].mxu0 %v2237
        %v2374 = vpop.f32.mrb[0].mxu0
        %v2375 = vadd.f32 0.0, %v2374
        %v2376 = vpop.f32.mrb[0].mxu0
        %2377 = vmatprep.mubr.f32.mxu0 %v2240
        %2378 = vmatmul.mubr.f32.gmra.mrb[0].mxu0 %v2239
        %v2379 = vpop.f32.mrb[0].mxu0
        %v2380 = vadd.f32 0.0, %v2379
        %v2381 = vpop.f32.mrb[0].mxu0
        %2382 = vmatprep.mubr.f32.mxu0 %v2242
        %2383 = vmatmul.mubr.f32.gmra.mrb[0].mxu0 %v2241
        %v2384 = vpop.f32.mrb[0].mxu0
        %v2385 = vadd.f32 0.0, %v2384
        %v2386 = vpop.f32.mrb[0].mxu0
        %2387 = vmatprep.mubr.f32.mxu0 %v2244
        %2388 = vmatmul.mubr.f32.gmra.mrb[0].mxu0 %v2243
        %v2389 = vpop.f32.mrb[0].mxu0
        %v2390 = vadd.f32 0.0, %v2389
        %v2391 = vpop.f32.mrb[0].mxu0
        %2392 = vmatprep.mubr.f32.mxu0 %v2246
        %2393 = vmatmul.mubr.f32.gmra.mrb[0].mxu0 %v2245
        %v2394 = vpop.f32.mrb[0].mxu0
        %v2395 = vadd.f32 0.0, %v2394
        %v2396 = vpop.f32.mrb[0].mxu0
        %2397 = vmatprep.mubr.f32.mxu0 %v2248
        %2398 = vmatmul.mubr.f32.gmra.mrb[0].mxu0 %v2247
        %v2399 = vpop.f32.mrb[0].mxu0
        %v2400 = vadd.f32 0.0, %v2399
        %v2401 = vpop.f32.mrb[0].mxu0
        %2402 = vmatprep.mubr.f32.mxu0 %v2250
        %2403 = vmatmul.mubr.f32.gmra.mrb[0].mxu0 %v2249
        %v2404 = vpop.f32.mrb[0].mxu0
        %v2405 = vadd.f32 0.0, %v2404
        %v2406 = vpop.f32.mrb[0].mxu0
        %2407 = vmatprep.mubr.f32.mxu0 %v2252
        %2408 = vmatmul.mubr.f32.gmra.mrb[0].mxu0 %v2251
        %v2409 = vpop.f32.mrb[0].mxu0
        %v2410 = vadd.f32 0.0, %v2409
        %v2411 = vpop.f32.mrb[0].mxu0
        %2412 = vmatprep.mubr.f32.mxu0 %v2254
        %2413 = vmatmul.mubr.f32.gmra.mrb[0].mxu0 %v2253
        %v2414 = vpop.f32.mrb[0].mxu0
        %v2415 = vadd.f32 0.0, %v2414
        %v2416 = vpop.f32.mrb[0].mxu0
        %2417 = vmatprep.mubr.f32.mxu0 %v2256
        %2418 = vmatmul.mubr.f32.gmra.mrb[0].mxu0 %v2255
        %v2419 = vpop.f32.mrb[0].mxu0
        %v2420 = vadd.f32 0.0, %v2419
        %v2421 = vpop.f32.mrb[0].mxu0
        %2422 = vmatprep.mubr.f32.mxu0 %v2258
        %2423 = vmatmul.mubr.f32.gmra.mrb[0].mxu0 %v2257
        %v2424 = vpop.f32.mrb[0].mxu0
        %v2425 = vadd.f32 0.0, %v2424
        %v2426 = vpop.f32.mrb[0].mxu0
        %2427 = vmatprep.mubr.f32.mxu0 %v2260
        %2428 = vmatmul.mubr.f32.gmra.mrb[0].mxu0 %v2259
        %v2429 = vpop.f32.mrb[0].mxu0
        %v2430 = vadd.f32 0.0, %v2429
        %v2431 = vpop.f32.mrb[0].mxu0
        %2432 = vmatprep.mubr.f32.mxu0 %v2262
        %2433 = vmatmul.mubr.f32.gmra.mrb[0].mxu0 %v2261
        %v2434 = vpop.f32.mrb[0].mxu0
        %v2435 = vadd.f32 0.0, %v2434
        %v2436 = vpop.f32.mrb[0].mxu0
        %2437 = vmatprep.mubr.f32.mxu0 %v2264
        %2438 = vmatmul.mubr.f32.gmra.mrb[0].mxu0 %v2263
        %v2439 = vpop.f32.mrb[0].mxu0
        %v2440 = vadd.f32 0.0, %v2439
        %v2441 = vpop.f32.mrb[0].mxu0
        %2442 = vdwg.mxu0
        %v2443 = vld [vmem:[#allocation10 + $0x100] sm:$0xff]
        %v2444 = vld [vmem:[#allocation10 + $0x108] sm:$0xff]
        %v2445 = vld [vmem:[#allocation10 + $0x110] sm:$0xff]
        %v2446 = vld [vmem:[#allocation10 + $0x118] sm:$0xff]
        %v2447 = vld [vmem:[#allocation10 + $0x120] sm:$0xff]
        %v2448 = vld [vmem:[#allocation10 + $0x128] sm:$0xff]
        %v2449 = vld [vmem:[#allocation10 + $0x130] sm:$0xff]
        %v2450 = vld [vmem:[#allocation10 + $0x138] sm:$0xff]
        %v2451 = vld [vmem:[#allocation10 + $0x140] sm:$0xff]
        %v2452 = vld [vmem:[#allocation10 + $0x148] sm:$0xff]
        %v2453 = vld [vmem:[#allocation10 + $0x150] sm:$0xff]
        %v2454 = vld [vmem:[#allocation10 + $0x158] sm:$0xff]
        %v2455 = vld [vmem:[#allocation10 + $0x160] sm:$0xff]
        %v2456 = vld [vmem:[#allocation10 + $0x168] sm:$0xff]
        %v2457 = vld [vmem:[#allocation10 + $0x170] sm:$0xff]
        %v2458 = vld [vmem:[#allocation10 + $0x178] sm:$0xff]
        %2459 = vmatprep.subr.mxu0 0.0
        %2460 = vmatpush1.msra.mxu0 %v2443
        %2461 = vmatprep.subr.mxu0 0.0
        %2462 = vmatpush1.msra.mxu0 %v2444
        %2463 = vmatprep.subr.mxu0 0.0
        %2464 = vmatpush1.msra.mxu0 %v2445
        %2465 = vmatprep.subr.mxu0 0.0
        %2466 = vmatpush1.msra.mxu0 %v2446
        %2467 = vmatprep.subr.mxu0 0.0
        %2468 = vmatpush1.msra.mxu0 %v2447
        %2469 = vmatprep.subr.mxu0 0.0
        %2470 = vmatpush1.msra.mxu0 %v2448
        %2471 = vmatprep.subr.mxu0 0.0
        %2472 = vmatpush1.msra.mxu0 %v2449
        %2473 = vmatprep.subr.mxu0 0.0
        %2474 = vmatpush1.msra.mxu0 %v2450
        %2475 = vmatprep.subr.mxu0 0.0
        %2476 = vmatpush1.msra.mxu0 %v2451
        %2477 = vmatprep.subr.mxu0 0.0
        %2478 = vmatpush1.msra.mxu0 %v2452
        %2479 = vmatprep.subr.mxu0 0.0
        %2480 = vmatpush1.msra.mxu0 %v2453
        %2481 = vmatprep.subr.mxu0 0.0
        %2482 = vmatpush1.msra.mxu0 %v2454
        %2483 = vmatprep.subr.mxu0 0.0
        %2484 = vmatpush1.msra.mxu0 %v2455
        %2485 = vmatprep.subr.mxu0 0.0
        %2486 = vmatpush1.msra.mxu0 %v2456
        %2487 = vmatprep.subr.mxu0 0.0
        %2488 = vmatpush1.msra.mxu0 %v2457
        %2489 = vmatprep.subr.mxu0 0.0
        %2490 = vmatpush1.msra.mxu0 %v2458
        %2491 = vmatprep.subr.mxu0 0.0
        %2492 = vmatpush1.msra.mxu0 0.0
        %2493 = vmatprep.subr.mxu0 0.0
        %2494 = vmatpush1.msra.mxu0 0.0
        %2495 = vmatprep.subr.mxu0 0.0
        %2496 = vmatpush1.msra.mxu0 0.0
        %2497 = vmatprep.subr.mxu0 0.0
        %2498 = vmatpush1.msra.mxu0 0.0
        %2499 = vmatprep.subr.mxu0 0.0
        %2500 = vmatpush1.msra.mxu0 0.0
        %2501 = vmatprep.subr.mxu0 0.0
        %2502 = vmatpush1.msra.mxu0 0.0
        %2503 = vmatprep.subr.mxu0 0.0
        %2504 = vmatpush1.msra.mxu0 0.0
        %2505 = vmatprep.subr.mxu0 0.0
        %2506 = vmatpush1.msra.mxu0 0.0
        %2507 = vmatprep.subr.mxu0 0.0
        %2508 = vmatpush1.msra.mxu0 0.0
        %2509 = vmatprep.subr.mxu0 0.0
        %2510 = vmatpush1.msra.mxu0 0.0
        %2511 = vmatprep.subr.mxu0 0.0
        %2512 = vmatpush1.msra.mxu0 0.0
        %2513 = vmatprep.subr.mxu0 0.0
        %2514 = vmatpush1.msra.mxu0 0.0
        %2515 = vmatprep.subr.mxu0 0.0
        %2516 = vmatpush1.msra.mxu0 0.0
        %2517 = vmatprep.subr.mxu0 0.0
        %2518 = vmatpush1.msra.mxu0 0.0
        %2519 = vmatprep.subr.mxu0 0.0
        %2520 = vmatpush1.msra.mxu0 0.0
        %2521 = vmatprep.subr.mxu0 0.0
        %2522 = vmatpush1.msra.mxu0 0.0
        %2523 = vmatprep.mubr.f32.mxu0 0.0
        %2524 = vmatmul.mubr.f32.gmra.mrb[0].mxu0 %v2365
        %v2525 = vpop.f32.mrb[0].mxu0
        %v2526 = vadd.f32 0.0, %v2525
        %v2527 = vpop.f32.mrb[0].mxu0
        %2528 = vmatprep.mubr.f32.mxu0 0.0
        %2529 = vmatmul.mubr.f32.gmra.mrb[0].mxu0 %v2370
        %v2530 = vpop.f32.mrb[0].mxu0
        %v2531 = vadd.f32 0.0, %v2530
        %v2532 = vpop.f32.mrb[0].mxu0
        %2533 = vmatprep.mubr.f32.mxu0 0.0
        %2534 = vmatmul.mubr.f32.gmra.mrb[0].mxu0 %v2375
        %v2535 = vpop.f32.mrb[0].mxu0
        %v2536 = vadd.f32 0.0, %v2535
        %v2537 = vpop.f32.mrb[0].mxu0
        %2538 = vmatprep.mubr.f32.mxu0 0.0
        %2539 = vmatmul.mubr.f32.gmra.mrb[0].mxu0 %v2380
        %v2540 = vpop.f32.mrb[0].mxu0
        %v2541 = vadd.f32 0.0, %v2540
        %v2542 = vpop.f32.mrb[0].mxu0
        %2543 = vmatprep.mubr.f32.mxu0 0.0
        %2544 = vmatmul.mubr.f32.gmra.mrb[0].mxu0 %v2385
        %v2545 = vpop.f32.mrb[0].mxu0
        %v2546 = vadd.f32 0.0, %v2545
        %v2547 = vpop.f32.mrb[0].mxu0
        %2548 = vmatprep.mubr.f32.mxu0 0.0
        %2549 = vmatmul.mubr.f32.gmra.mrb[0].mxu0 %v2390
        %v2550 = vpop.f32.mrb[0].mxu0
        %v2551 = vadd.f32 0.0, %v2550
        %v2552 = vpop.f32.mrb[0].mxu0
        %2553 = vmatprep.mubr.f32.mxu0 0.0
        %2554 = vmatmul.mubr.f32.gmra.mrb[0].mxu0 %v2395
        %v2555 = vpop.f32.mrb[0].mxu0
        %v2556 = vadd.f32 0.0, %v2555
        %v2557 = vpop.f32.mrb[0].mxu0
        %2558 = vmatprep.mubr.f32.mxu0 0.0
        %2559 = vmatmul.mubr.f32.gmra.mrb[0].mxu0 %v2400
        %v2560 = vpop.f32.mrb[0].mxu0
        %v2561 = vadd.f32 0.0, %v2560
        %v2562 = vpop.f32.mrb[0].mxu0
        %2563 = vmatprep.mubr.f32.mxu0 0.0
        %2564 = vmatmul.mubr.f32.gmra.mrb[0].mxu0 %v2405
        %v2565 = vpop.f32.mrb[0].mxu0
        %v2566 = vadd.f32 0.0, %v2565
        %v2567 = vpop.f32.mrb[0].mxu0
        %2568 = vmatprep.mubr.f32.mxu0 0.0
        %2569 = vmatmul.mubr.f32.gmra.mrb[0].mxu0 %v2410
        %v2570 = vpop.f32.mrb[0].mxu0
        %v2571 = vadd.f32 0.0, %v2570
        %v2572 = vpop.f32.mrb[0].mxu0
        %2573 = vmatprep.mubr.f32.mxu0 0.0
        %2574 = vmatmul.mubr.f32.gmra.mrb[0].mxu0 %v2415
        %v2575 = vpop.f32.mrb[0].mxu0
        %v2576 = vadd.f32 0.0, %v2575
        %v2577 = vpop.f32.mrb[0].mxu0
        %2578 = vmatprep.mubr.f32.mxu0 0.0
        %2579 = vmatmul.mubr.f32.gmra.mrb[0].mxu0 %v2420
        %v2580 = vpop.f32.mrb[0].mxu0
        %v2581 = vadd.f32 0.0, %v2580
        %v2582 = vpop.f32.mrb[0].mxu0
        %2583 = vmatprep.mubr.f32.mxu0 0.0
        %2584 = vmatmul.mubr.f32.gmra.mrb[0].mxu0 %v2425
        %v2585 = vpop.f32.mrb[0].mxu0
        %v2586 = vadd.f32 0.0, %v2585
        %v2587 = vpop.f32.mrb[0].mxu0
        %2588 = vmatprep.mubr.f32.mxu0 0.0
        %2589 = vmatmul.mubr.f32.gmra.mrb[0].mxu0 %v2430
        %v2590 = vpop.f32.mrb[0].mxu0
        %v2591 = vadd.f32 0.0, %v2590
        %v2592 = vpop.f32.mrb[0].mxu0
        %2593 = vmatprep.mubr.f32.mxu0 0.0
        %2594 = vmatmul.mubr.f32.gmra.mrb[0].mxu0 %v2435
        %v2595 = vpop.f32.mrb[0].mxu0
        %v2596 = vadd.f32 0.0, %v2595
        %v2597 = vpop.f32.mrb[0].mxu0
        %2598 = vmatprep.mubr.f32.mxu0 0.0
        %2599 = vmatmul.mubr.f32.gmra.mrb[0].mxu0 %v2440
        %v2600 = vpop.f32.mrb[0].mxu0
        %v2601 = vadd.f32 0.0, %v2600
        %v2602 = vpop.f32.mrb[0].mxu0
        %2603 = vdwg.mxu0
        %v2604 = vadd.f32 %v2154, %v2526
        %v2605 = vadd.f32 %v2159, %v2531
        %v2606 = vadd.f32 %v2164, %v2536
        %v2607 = vadd.f32 %v2169, %v2541
        %v2608 = vadd.f32 %v2174, %v2546
        %v2609 = vadd.f32 %v2179, %v2551
        %v2610 = vadd.f32 %v2184, %v2556
        %v2611 = vadd.f32 %v2189, %v2561
        %v2612 = vadd.f32 %v2194, %v2566
        %v2613 = vadd.f32 %v2199, %v2571
        %v2614 = vadd.f32 %v2204, %v2576
        %v2615 = vadd.f32 %v2209, %v2581
        %v2616 = vadd.f32 %v2214, %v2586
        %v2617 = vadd.f32 %v2219, %v2591
        %v2618 = vadd.f32 %v2224, %v2596
        %v2619 = vadd.f32 %v2229, %v2601
        %s2620 = scalar_lea.vmem %s317, 768 [#allocation7]
        %v2621 = vld [vmem:[%s2620] sm:$0xff]
        %v2622 = vld [vmem:[%s2620 + $0x8] sm:$0xff]
        %v2623 = vld [vmem:[%s2620 + $0x10] sm:$0xff]
        %v2624 = vld [vmem:[%s2620 + $0x18] sm:$0xff]
        %v2625 = vld [vmem:[%s2620 + $0x20] sm:$0xff]
        %v2626 = vld [vmem:[%s2620 + $0x28] sm:$0xff]
        %v2627 = vld [vmem:[%s2620 + $0x30] sm:$0xff]
        %v2628 = vld [vmem:[%s2620 + $0x38] sm:$0xff]
        %v2629 = vld [vmem:[%s2620 + $0x40] sm:$0xff]
        %v2630 = vld [vmem:[%s2620 + $0x48] sm:$0xff]
        %v2631 = vld [vmem:[%s2620 + $0x50] sm:$0xff]
        %v2632 = vld [vmem:[%s2620 + $0x58] sm:$0xff]
        %v2633 = vld [vmem:[%s2620 + $0x60] sm:$0xff]
        %v2634 = vld [vmem:[%s2620 + $0x68] sm:$0xff]
        %v2635 = vld [vmem:[%s2620 + $0x70] sm:$0xff]
        %v2636 = vld [vmem:[%s2620 + $0x78] sm:$0xff]
        %v2637 = vld [vmem:[%s2620 + $0x80] sm:$0xff]
        %v2638 = vld [vmem:[%s2620 + $0x88] sm:$0xff]
        %v2639 = vld [vmem:[%s2620 + $0x90] sm:$0xff]
        %v2640 = vld [vmem:[%s2620 + $0x98] sm:$0xff]
        %v2641 = vld [vmem:[%s2620 + $0xa0] sm:$0xff]
        %v2642 = vld [vmem:[%s2620 + $0xa8] sm:$0xff]
        %v2643 = vld [vmem:[%s2620 + $0xb0] sm:$0xff]
        %v2644 = vld [vmem:[%s2620 + $0xb8] sm:$0xff]
        %v2645 = vld [vmem:[%s2620 + $0xc0] sm:$0xff]
        %v2646 = vld [vmem:[%s2620 + $0xc8] sm:$0xff]
        %v2647 = vld [vmem:[%s2620 + $0xd0] sm:$0xff]
        %v2648 = vld [vmem:[%s2620 + $0xd8] sm:$0xff]
        %v2649 = vld [vmem:[%s2620 + $0xe0] sm:$0xff]
        %v2650 = vld [vmem:[%s2620 + $0xe8] sm:$0xff]
        %v2651 = vld [vmem:[%s2620 + $0xf0] sm:$0xff]
        %v2652 = vld [vmem:[%s2620 + $0xf8] sm:$0xff]
        %s2653 = scalar_lea.vmem [#allocation2], 768
        %v2654 = vld [vmem:[%s2653] sm:$0xff]
        %v2655 = vld [vmem:[%s2653 + $0x8] sm:$0xff]
        %v2656 = vld [vmem:[%s2653 + $0x10] sm:$0xff]
        %v2657 = vld [vmem:[%s2653 + $0x18] sm:$0xff]
        %v2658 = vld [vmem:[%s2653 + $0x20] sm:$0xff]
        %v2659 = vld [vmem:[%s2653 + $0x28] sm:$0xff]
        %v2660 = vld [vmem:[%s2653 + $0x30] sm:$0xff]
        %v2661 = vld [vmem:[%s2653 + $0x38] sm:$0xff]
        %v2662 = vld [vmem:[%s2653 + $0x40] sm:$0xff]
        %v2663 = vld [vmem:[%s2653 + $0x48] sm:$0xff]
        %v2664 = vld [vmem:[%s2653 + $0x50] sm:$0xff]
        %v2665 = vld [vmem:[%s2653 + $0x58] sm:$0xff]
        %v2666 = vld [vmem:[%s2653 + $0x60] sm:$0xff]
        %v2667 = vld [vmem:[%s2653 + $0x68] sm:$0xff]
        %v2668 = vld [vmem:[%s2653 + $0x70] sm:$0xff]
        %v2669 = vld [vmem:[%s2653 + $0x78] sm:$0xff]
        %v2670 = vld [vmem:[%s2653 + $0x80] sm:$0xff]
        %v2671 = vld [vmem:[%s2653 + $0x88] sm:$0xff]
        %v2672 = vld [vmem:[%s2653 + $0x90] sm:$0xff]
        %v2673 = vld [vmem:[%s2653 + $0x98] sm:$0xff]
        %v2674 = vld [vmem:[%s2653 + $0xa0] sm:$0xff]
        %v2675 = vld [vmem:[%s2653 + $0xa8] sm:$0xff]
        %v2676 = vld [vmem:[%s2653 + $0xb0] sm:$0xff]
        %v2677 = vld [vmem:[%s2653 + $0xb8] sm:$0xff]
        %v2678 = vld [vmem:[%s2653 + $0xc0] sm:$0xff]
        %v2679 = vld [vmem:[%s2653 + $0xc8] sm:$0xff]
        %v2680 = vld [vmem:[%s2653 + $0xd0] sm:$0xff]
        %v2681 = vld [vmem:[%s2653 + $0xd8] sm:$0xff]
        %v2682 = vld [vmem:[%s2653 + $0xe0] sm:$0xff]
        %v2683 = vld [vmem:[%s2653 + $0xe8] sm:$0xff]
        %v2684 = vld [vmem:[%s2653 + $0xf0] sm:$0xff]
        %v2685 = vld [vmem:[%s2653 + $0xf8] sm:$0xff]
        %2686 = vmatprep.subr.mxu0 0.0
        %2687 = vmatpush1.msra.mxu0 %v2654
        %2688 = vmatprep.subr.mxu0 0.0
        %2689 = vmatpush1.msra.mxu0 %v2655
        %2690 = vmatprep.subr.mxu0 0.0
        %2691 = vmatpush1.msra.mxu0 %v2656
        %2692 = vmatprep.subr.mxu0 0.0
        %2693 = vmatpush1.msra.mxu0 %v2657
        %2694 = vmatprep.subr.mxu0 0.0
        %2695 = vmatpush1.msra.mxu0 %v2658
        %2696 = vmatprep.subr.mxu0 0.0
        %2697 = vmatpush1.msra.mxu0 %v2659
        %2698 = vmatprep.subr.mxu0 0.0
        %2699 = vmatpush1.msra.mxu0 %v2660
        %2700 = vmatprep.subr.mxu0 0.0
        %2701 = vmatpush1.msra.mxu0 %v2661
        %2702 = vmatprep.subr.mxu0 0.0
        %2703 = vmatpush1.msra.mxu0 %v2662
        %2704 = vmatprep.subr.mxu0 0.0
        %2705 = vmatpush1.msra.mxu0 %v2663
        %2706 = vmatprep.subr.mxu0 0.0
        %2707 = vmatpush1.msra.mxu0 %v2664
        %2708 = vmatprep.subr.mxu0 0.0
        %2709 = vmatpush1.msra.mxu0 %v2665
        %2710 = vmatprep.subr.mxu0 0.0
        %2711 = vmatpush1.msra.mxu0 %v2666
        %2712 = vmatprep.subr.mxu0 0.0
        %2713 = vmatpush1.msra.mxu0 %v2667
        %2714 = vmatprep.subr.mxu0 0.0
        %2715 = vmatpush1.msra.mxu0 %v2668
        %2716 = vmatprep.subr.mxu0 0.0
        %2717 = vmatpush1.msra.mxu0 %v2669
        %2718 = vmatprep.subr.mxu0 0.0
        %2719 = vmatpush1.msra.mxu0 %v2670
        %2720 = vmatprep.subr.mxu0 0.0
        %2721 = vmatpush1.msra.mxu0 %v2671
        %2722 = vmatprep.subr.mxu0 0.0
        %2723 = vmatpush1.msra.mxu0 %v2672
        %2724 = vmatprep.subr.mxu0 0.0
        %2725 = vmatpush1.msra.mxu0 %v2673
        %2726 = vmatprep.subr.mxu0 0.0
        %2727 = vmatpush1.msra.mxu0 %v2674
        %2728 = vmatprep.subr.mxu0 0.0
        %2729 = vmatpush1.msra.mxu0 %v2675
        %2730 = vmatprep.subr.mxu0 0.0
        %2731 = vmatpush1.msra.mxu0 %v2676
        %2732 = vmatprep.subr.mxu0 0.0
        %2733 = vmatpush1.msra.mxu0 %v2677
        %2734 = vmatprep.subr.mxu0 0.0
        %2735 = vmatpush1.msra.mxu0 %v2678
        %2736 = vmatprep.subr.mxu0 0.0
        %2737 = vmatpush1.msra.mxu0 %v2679
        %2738 = vmatprep.subr.mxu0 0.0
        %2739 = vmatpush1.msra.mxu0 %v2680
        %2740 = vmatprep.subr.mxu0 0.0
        %2741 = vmatpush1.msra.mxu0 %v2681
        %2742 = vmatprep.subr.mxu0 0.0
        %2743 = vmatpush1.msra.mxu0 %v2682
        %2744 = vmatprep.subr.mxu0 0.0
        %2745 = vmatpush1.msra.mxu0 %v2683
        %2746 = vmatprep.subr.mxu0 0.0
        %2747 = vmatpush1.msra.mxu0 %v2684
        %2748 = vmatprep.subr.mxu0 0.0
        %2749 = vmatpush1.msra.mxu0 %v2685
        %2750 = vmatprep.mubr.f32.mxu0 %v2622
        %2751 = vmatmul.mubr.f32.gmra.mrb[0].mxu0 %v2621
        %v2752 = vpop.f32.mrb[0].mxu0
        %v2753 = vadd.f32 0.0, %v2752
        %v2754 = vpop.f32.mrb[0].mxu0
        %2755 = vmatprep.mubr.f32.mxu0 %v2624
        %2756 = vmatmul.mubr.f32.gmra.mrb[0].mxu0 %v2623
        %v2757 = vpop.f32.mrb[0].mxu0
        %v2758 = vadd.f32 0.0, %v2757
        %v2759 = vpop.f32.mrb[0].mxu0
        %2760 = vmatprep.mubr.f32.mxu0 %v2626
        %2761 = vmatmul.mubr.f32.gmra.mrb[0].mxu0 %v2625
        %v2762 = vpop.f32.mrb[0].mxu0
        %v2763 = vadd.f32 0.0, %v2762
        %v2764 = vpop.f32.mrb[0].mxu0
        %2765 = vmatprep.mubr.f32.mxu0 %v2628
        %2766 = vmatmul.mubr.f32.gmra.mrb[0].mxu0 %v2627
        %v2767 = vpop.f32.mrb[0].mxu0
        %v2768 = vadd.f32 0.0, %v2767
        %v2769 = vpop.f32.mrb[0].mxu0
        %2770 = vmatprep.mubr.f32.mxu0 %v2630
        %2771 = vmatmul.mubr.f32.gmra.mrb[0].mxu0 %v2629
        %v2772 = vpop.f32.mrb[0].mxu0
        %v2773 = vadd.f32 0.0, %v2772
        %v2774 = vpop.f32.mrb[0].mxu0
        %2775 = vmatprep.mubr.f32.mxu0 %v2632
        %2776 = vmatmul.mubr.f32.gmra.mrb[0].mxu0 %v2631
        %v2777 = vpop.f32.mrb[0].mxu0
        %v2778 = vadd.f32 0.0, %v2777
        %v2779 = vpop.f32.mrb[0].mxu0
        %2780 = vmatprep.mubr.f32.mxu0 %v2634
        %2781 = vmatmul.mubr.f32.gmra.mrb[0].mxu0 %v2633
        %v2782 = vpop.f32.mrb[0].mxu0
        %v2783 = vadd.f32 0.0, %v2782
        %v2784 = vpop.f32.mrb[0].mxu0
        %2785 = vmatprep.mubr.f32.mxu0 %v2636
        %2786 = vmatmul.mubr.f32.gmra.mrb[0].mxu0 %v2635
        %v2787 = vpop.f32.mrb[0].mxu0
        %v2788 = vadd.f32 0.0, %v2787
        %v2789 = vpop.f32.mrb[0].mxu0
        %2790 = vmatprep.mubr.f32.mxu0 %v2638
        %2791 = vmatmul.mubr.f32.gmra.mrb[0].mxu0 %v2637
        %v2792 = vpop.f32.mrb[0].mxu0
        %v2793 = vadd.f32 0.0, %v2792
        %v2794 = vpop.f32.mrb[0].mxu0
        %2795 = vmatprep.mubr.f32.mxu0 %v2640
        %2796 = vmatmul.mubr.f32.gmra.mrb[0].mxu0 %v2639
        %v2797 = vpop.f32.mrb[0].mxu0
        %v2798 = vadd.f32 0.0, %v2797
        %v2799 = vpop.f32.mrb[0].mxu0
        %2800 = vmatprep.mubr.f32.mxu0 %v2642
        %2801 = vmatmul.mubr.f32.gmra.mrb[0].mxu0 %v2641
        %v2802 = vpop.f32.mrb[0].mxu0
        %v2803 = vadd.f32 0.0, %v2802
        %v2804 = vpop.f32.mrb[0].mxu0
        %2805 = vmatprep.mubr.f32.mxu0 %v2644
        %2806 = vmatmul.mubr.f32.gmra.mrb[0].mxu0 %v2643
        %v2807 = vpop.f32.mrb[0].mxu0
        %v2808 = vadd.f32 0.0, %v2807
        %v2809 = vpop.f32.mrb[0].mxu0
        %2810 = vmatprep.mubr.f32.mxu0 %v2646
        %2811 = vmatmul.mubr.f32.gmra.mrb[0].mxu0 %v2645
        %v2812 = vpop.f32.mrb[0].mxu0
        %v2813 = vadd.f32 0.0, %v2812
        %v2814 = vpop.f32.mrb[0].mxu0
        %2815 = vmatprep.mubr.f32.mxu0 %v2648
        %2816 = vmatmul.mubr.f32.gmra.mrb[0].mxu0 %v2647
        %v2817 = vpop.f32.mrb[0].mxu0
        %v2818 = vadd.f32 0.0, %v2817
        %v2819 = vpop.f32.mrb[0].mxu0
        %2820 = vmatprep.mubr.f32.mxu0 %v2650
        %2821 = vmatmul.mubr.f32.gmra.mrb[0].mxu0 %v2649
        %v2822 = vpop.f32.mrb[0].mxu0
        %v2823 = vadd.f32 0.0, %v2822
        %v2824 = vpop.f32.mrb[0].mxu0
        %2825 = vmatprep.mubr.f32.mxu0 %v2652
        %2826 = vmatmul.mubr.f32.gmra.mrb[0].mxu0 %v2651
        %v2827 = vpop.f32.mrb[0].mxu0
        %v2828 = vadd.f32 0.0, %v2827
        %v2829 = vpop.f32.mrb[0].mxu0
        %2830 = vdwg.mxu0
        %v2831 = vld [vmem:[#allocation10 + $0x180] sm:$0xff]
        %v2832 = vld [vmem:[#allocation10 + $0x188] sm:$0xff]
        %v2833 = vld [vmem:[#allocation10 + $0x190] sm:$0xff]
        %v2834 = vld [vmem:[#allocation10 + $0x198] sm:$0xff]
        %v2835 = vld [vmem:[#allocation10 + $0x1a0] sm:$0xff]
        %v2836 = vld [vmem:[#allocation10 + $0x1a8] sm:$0xff]
        %v2837 = vld [vmem:[#allocation10 + $0x1b0] sm:$0xff]
        %v2838 = vld [vmem:[#allocation10 + $0x1b8] sm:$0xff]
        %v2839 = vld [vmem:[#allocation10 + $0x1c0] sm:$0xff]
        %v2840 = vld [vmem:[#allocation10 + $0x1c8] sm:$0xff]
        %v2841 = vld [vmem:[#allocation10 + $0x1d0] sm:$0xff]
        %v2842 = vld [vmem:[#allocation10 + $0x1d8] sm:$0xff]
        %v2843 = vld [vmem:[#allocation10 + $0x1e0] sm:$0xff]
        %v2844 = vld [vmem:[#allocation10 + $0x1e8] sm:$0xff]
        %v2845 = vld [vmem:[#allocation10 + $0x1f0] sm:$0xff]
        %v2846 = vld [vmem:[#allocation10 + $0x1f8] sm:$0xff]
        %2847 = vmatprep.subr.mxu0 0.0
        %2848 = vmatpush1.msra.mxu0 %v2831
        %2849 = vmatprep.subr.mxu0 0.0
        %2850 = vmatpush1.msra.mxu0 %v2832
        %2851 = vmatprep.subr.mxu0 0.0
        %2852 = vmatpush1.msra.mxu0 %v2833
        %2853 = vmatprep.subr.mxu0 0.0
        %2854 = vmatpush1.msra.mxu0 %v2834
        %2855 = vmatprep.subr.mxu0 0.0
        %2856 = vmatpush1.msra.mxu0 %v2835
        %2857 = vmatprep.subr.mxu0 0.0
        %2858 = vmatpush1.msra.mxu0 %v2836
        %2859 = vmatprep.subr.mxu0 0.0
        %2860 = vmatpush1.msra.mxu0 %v2837
        %2861 = vmatprep.subr.mxu0 0.0
        %2862 = vmatpush1.msra.mxu0 %v2838
        %2863 = vmatprep.subr.mxu0 0.0
        %2864 = vmatpush1.msra.mxu0 %v2839
        %2865 = vmatprep.subr.mxu0 0.0
        %2866 = vmatpush1.msra.mxu0 %v2840
        %2867 = vmatprep.subr.mxu0 0.0
        %2868 = vmatpush1.msra.mxu0 %v2841
        %2869 = vmatprep.subr.mxu0 0.0
        %2870 = vmatpush1.msra.mxu0 %v2842
        %2871 = vmatprep.subr.mxu0 0.0
        %2872 = vmatpush1.msra.mxu0 %v2843
        %2873 = vmatprep.subr.mxu0 0.0
        %2874 = vmatpush1.msra.mxu0 %v2844
        %2875 = vmatprep.subr.mxu0 0.0
        %2876 = vmatpush1.msra.mxu0 %v2845
        %2877 = vmatprep.subr.mxu0 0.0
        %2878 = vmatpush1.msra.mxu0 %v2846
        %2879 = vmatprep.subr.mxu0 0.0
        %2880 = vmatpush1.msra.mxu0 0.0
        %2881 = vmatprep.subr.mxu0 0.0
        %2882 = vmatpush1.msra.mxu0 0.0
        %2883 = vmatprep.subr.mxu0 0.0
        %2884 = vmatpush1.msra.mxu0 0.0
        %2885 = vmatprep.subr.mxu0 0.0
        %2886 = vmatpush1.msra.mxu0 0.0
        %2887 = vmatprep.subr.mxu0 0.0
        %2888 = vmatpush1.msra.mxu0 0.0
        %2889 = vmatprep.subr.mxu0 0.0
        %2890 = vmatpush1.msra.mxu0 0.0
        %2891 = vmatprep.subr.mxu0 0.0
        %2892 = vmatpush1.msra.mxu0 0.0
        %2893 = vmatprep.subr.mxu0 0.0
        %2894 = vmatpush1.msra.mxu0 0.0
        %2895 = vmatprep.subr.mxu0 0.0
        %2896 = vmatpush1.msra.mxu0 0.0
        %2897 = vmatprep.subr.mxu0 0.0
        %2898 = vmatpush1.msra.mxu0 0.0
        %2899 = vmatprep.subr.mxu0 0.0
        %2900 = vmatpush1.msra.mxu0 0.0
        %2901 = vmatprep.subr.mxu0 0.0
        %2902 = vmatpush1.msra.mxu0 0.0
        %2903 = vmatprep.subr.mxu0 0.0
        %2904 = vmatpush1.msra.mxu0 0.0
        %2905 = vmatprep.subr.mxu0 0.0
        %2906 = vmatpush1.msra.mxu0 0.0
        %2907 = vmatprep.subr.mxu0 0.0
        %2908 = vmatpush1.msra.mxu0 0.0
        %2909 = vmatprep.subr.mxu0 0.0
        %2910 = vmatpush1.msra.mxu0 0.0
        %2911 = vmatprep.mubr.f32.mxu0 0.0
        %2912 = vmatmul.mubr.f32.gmra.mrb[0].mxu0 %v2753
        %v2913 = vpop.f32.mrb[0].mxu0
        %v2914 = vadd.f32 0.0, %v2913
        %v2915 = vpop.f32.mrb[0].mxu0
        %2916 = vmatprep.mubr.f32.mxu0 0.0
        %2917 = vmatmul.mubr.f32.gmra.mrb[0].mxu0 %v2758
        %v2918 = vpop.f32.mrb[0].mxu0
        %v2919 = vadd.f32 0.0, %v2918
        %v2920 = vpop.f32.mrb[0].mxu0
        %2921 = vmatprep.mubr.f32.mxu0 0.0
        %2922 = vmatmul.mubr.f32.gmra.mrb[0].mxu0 %v2763
        %v2923 = vpop.f32.mrb[0].mxu0
        %v2924 = vadd.f32 0.0, %v2923
        %v2925 = vpop.f32.mrb[0].mxu0
        %2926 = vmatprep.mubr.f32.mxu0 0.0
        %2927 = vmatmul.mubr.f32.gmra.mrb[0].mxu0 %v2768
        %v2928 = vpop.f32.mrb[0].mxu0
        %v2929 = vadd.f32 0.0, %v2928
        %v2930 = vpop.f32.mrb[0].mxu0
        %2931 = vmatprep.mubr.f32.mxu0 0.0
        %2932 = vmatmul.mubr.f32.gmra.mrb[0].mxu0 %v2773
        %v2933 = vpop.f32.mrb[0].mxu0
        %v2934 = vadd.f32 0.0, %v2933
        %v2935 = vpop.f32.mrb[0].mxu0
        %2936 = vmatprep.mubr.f32.mxu0 0.0
        %2937 = vmatmul.mubr.f32.gmra.mrb[0].mxu0 %v2778
        %v2938 = vpop.f32.mrb[0].mxu0
        %v2939 = vadd.f32 0.0, %v2938
        %v2940 = vpop.f32.mrb[0].mxu0
        %2941 = vmatprep.mubr.f32.mxu0 0.0
        %2942 = vmatmul.mubr.f32.gmra.mrb[0].mxu0 %v2783
        %v2943 = vpop.f32.mrb[0].mxu0
        %v2944 = vadd.f32 0.0, %v2943
        %v2945 = vpop.f32.mrb[0].mxu0
        %2946 = vmatprep.mubr.f32.mxu0 0.0
        %2947 = vmatmul.mubr.f32.gmra.mrb[0].mxu0 %v2788
        %v2948 = vpop.f32.mrb[0].mxu0
        %v2949 = vadd.f32 0.0, %v2948
        %v2950 = vpop.f32.mrb[0].mxu0
        %2951 = vmatprep.mubr.f32.mxu0 0.0
        %2952 = vmatmul.mubr.f32.gmra.mrb[0].mxu0 %v2793
        %v2953 = vpop.f32.mrb[0].mxu0
        %v2954 = vadd.f32 0.0, %v2953
        %v2955 = vpop.f32.mrb[0].mxu0
        %2956 = vmatprep.mubr.f32.mxu0 0.0
        %2957 = vmatmul.mubr.f32.gmra.mrb[0].mxu0 %v2798
        %v2958 = vpop.f32.mrb[0].mxu0
        %v2959 = vadd.f32 0.0, %v2958
        %v2960 = vpop.f32.mrb[0].mxu0
        %2961 = vmatprep.mubr.f32.mxu0 0.0
        %2962 = vmatmul.mubr.f32.gmra.mrb[0].mxu0 %v2803
        %v2963 = vpop.f32.mrb[0].mxu0
        %v2964 = vadd.f32 0.0, %v2963
        %v2965 = vpop.f32.mrb[0].mxu0
        %2966 = vmatprep.mubr.f32.mxu0 0.0
        %2967 = vmatmul.mubr.f32.gmra.mrb[0].mxu0 %v2808
        %v2968 = vpop.f32.mrb[0].mxu0
        %v2969 = vadd.f32 0.0, %v2968
        %v2970 = vpop.f32.mrb[0].mxu0
        %2971 = vmatprep.mubr.f32.mxu0 0.0
        %2972 = vmatmul.mubr.f32.gmra.mrb[0].mxu0 %v2813
        %v2973 = vpop.f32.mrb[0].mxu0
        %v2974 = vadd.f32 0.0, %v2973
        %v2975 = vpop.f32.mrb[0].mxu0
        %2976 = vmatprep.mubr.f32.mxu0 0.0
        %2977 = vmatmul.mubr.f32.gmra.mrb[0].mxu0 %v2818
        %v2978 = vpop.f32.mrb[0].mxu0
        %v2979 = vadd.f32 0.0, %v2978
        %v2980 = vpop.f32.mrb[0].mxu0
        %2981 = vmatprep.mubr.f32.mxu0 0.0
        %2982 = vmatmul.mubr.f32.gmra.mrb[0].mxu0 %v2823
        %v2983 = vpop.f32.mrb[0].mxu0
        %v2984 = vadd.f32 0.0, %v2983
        %v2985 = vpop.f32.mrb[0].mxu0
        %2986 = vmatprep.mubr.f32.mxu0 0.0
        %2987 = vmatmul.mubr.f32.gmra.mrb[0].mxu0 %v2828
        %v2988 = vpop.f32.mrb[0].mxu0
        %v2989 = vadd.f32 0.0, %v2988
        %v2990 = vpop.f32.mrb[0].mxu0
        %2991 = vdwg.mxu0
        %v2992 = vadd.f32 %v2604, %v2914
        %v2993 = vadd.f32 %v2605, %v2919
        %v2994 = vadd.f32 %v2606, %v2924
        %v2995 = vadd.f32 %v2607, %v2929
        %v2996 = vadd.f32 %v2608, %v2934
        %v2997 = vadd.f32 %v2609, %v2939
        %v2998 = vadd.f32 %v2610, %v2944
        %v2999 = vadd.f32 %v2611, %v2949
        %v3000 = vadd.f32 %v2612, %v2954
        %v3001 = vadd.f32 %v2613, %v2959
        %v3002 = vadd.f32 %v2614, %v2964
        %v3003 = vadd.f32 %v2615, %v2969
        %v3004 = vadd.f32 %v2616, %v2974
        %v3005 = vadd.f32 %v2617, %v2979
        %v3006 = vadd.f32 %v2618, %v2984
        %v3007 = vadd.f32 %v2619, %v2989
        %s3008 = smul.u32 %s32, 128
        %s3009 = scalar_lea.vmem %s308, %s3008 [#allocation4]
        %v3010 = vld [vmem:[%s3009] sm:$0xff]
        %v3011 = vld [vmem:[%s3009 + $0x8] sm:$0xff]
        %v3012 = vld [vmem:[%s3009 + $0x10] sm:$0xff]
        %v3013 = vld [vmem:[%s3009 + $0x18] sm:$0xff]
        %v3014 = vld [vmem:[%s3009 + $0x20] sm:$0xff]
        %v3015 = vld [vmem:[%s3009 + $0x28] sm:$0xff]
        %v3016 = vld [vmem:[%s3009 + $0x30] sm:$0xff]
        %v3017 = vld [vmem:[%s3009 + $0x38] sm:$0xff]
        %v3018 = vld [vmem:[%s3009 + $0x40] sm:$0xff]
        %v3019 = vld [vmem:[%s3009 + $0x48] sm:$0xff]
        %v3020 = vld [vmem:[%s3009 + $0x50] sm:$0xff]
        %v3021 = vld [vmem:[%s3009 + $0x58] sm:$0xff]
        %v3022 = vld [vmem:[%s3009 + $0x60] sm:$0xff]
        %v3023 = vld [vmem:[%s3009 + $0x68] sm:$0xff]
        %v3024 = vld [vmem:[%s3009 + $0x70] sm:$0xff]
        %v3025 = vld [vmem:[%s3009 + $0x78] sm:$0xff]
        %s3026 = sld [smem:[#allocation3]]
        %v3027 = vstv %s3026
        %v3028 = vmul.f32 %v3027, %v2992
        %v3029 = vmul.f32 %v3027, %v2993
        %v3030 = vmul.f32 %v3027, %v2994
        %v3031 = vmul.f32 %v3027, %v2995
        %v3032 = vmul.f32 %v3027, %v2996
        %v3033 = vmul.f32 %v3027, %v2997
        %v3034 = vmul.f32 %v3027, %v2998
        %v3035 = vmul.f32 %v3027, %v2999
        %v3036 = vmul.f32 %v3027, %v3000
        %v3037 = vmul.f32 %v3027, %v3001
        %v3038 = vmul.f32 %v3027, %v3002
        %v3039 = vmul.f32 %v3027, %v3003
        %v3040 = vmul.f32 %v3027, %v3004
        %v3041 = vmul.f32 %v3027, %v3005
        %v3042 = vmul.f32 %v3027, %v3006
        %v3043 = vmul.f32 %v3027, %v3007
        %v3044 = vadd.f32 %v3010, %v3028
        %v3045 = vadd.f32 %v3011, %v3029
        %v3046 = vadd.f32 %v3012, %v3030
        %v3047 = vadd.f32 %v3013, %v3031
        %v3048 = vadd.f32 %v3014, %v3032
        %v3049 = vadd.f32 %v3015, %v3033
        %v3050 = vadd.f32 %v3016, %v3034
        %v3051 = vadd.f32 %v3017, %v3035
        %v3052 = vadd.f32 %v3018, %v3036
        %v3053 = vadd.f32 %v3019, %v3037
        %v3054 = vadd.f32 %v3020, %v3038
        %v3055 = vadd.f32 %v3021, %v3039
        %v3056 = vadd.f32 %v3022, %v3040
        %v3057 = vadd.f32 %v3023, %v3041
        %v3058 = vadd.f32 %v3024, %v3042
        %v3059 = vadd.f32 %v3025, %v3043
        %3060 = vst [vmem:[%s356] sm:$0xff] %v3044
        %3061 = vst [vmem:[%s356 + $0x8] sm:$0xff] %v3045
        %3062 = vst [vmem:[%s356 + $0x10] sm:$0xff] %v3046
        %3063 = vst [vmem:[%s356 + $0x18] sm:$0xff] %v3047
        %3064 = vst [vmem:[%s356 + $0x20] sm:$0xff] %v3048
        %3065 = vst [vmem:[%s356 + $0x28] sm:$0xff] %v3049
        %3066 = vst [vmem:[%s356 + $0x30] sm:$0xff] %v3050
        %3067 = vst [vmem:[%s356 + $0x38] sm:$0xff] %v3051
        %3068 = vst [vmem:[%s356 + $0x40] sm:$0xff] %v3052
        %3069 = vst [vmem:[%s356 + $0x48] sm:$0xff] %v3053
        %3070 = vst [vmem:[%s356 + $0x50] sm:$0xff] %v3054
        %3071 = vst [vmem:[%s356 + $0x58] sm:$0xff] %v3055
        %3072 = vst [vmem:[%s356 + $0x60] sm:$0xff] %v3056
        %3073 = vst [vmem:[%s356 + $0x68] sm:$0xff] %v3057
        %3074 = vst [vmem:[%s356 + $0x70] sm:$0xff] %v3058
        %3075 = vst [vmem:[%s356 + $0x78] sm:$0xff] %v3059
        %s3076 = sand.u32 %s166, 1
        %s3077 = scalar_lea.sflag [#allocation6], %s3076
        %s3078 = sand.u32 %s166, 1
        %s3079 = smul.addr %s3078, 128
        %s3080 = scalar_lea.vmem [#allocation12], %s3079
        // Predicated region
        $region61: #{tpu_custom_call.1} parent=39 // pred_check
          %p3081 = pneg %p176
        $region62: #{tpu_custom_call.1} parent=39 // pred_check_branch
          %3083 = sbr.rel (%p3081) target = $region64
        $region63: #{tpu_custom_call.1} parent=39 // pred_region
          %s3084 = smul.u32 16, %s32
          %s3086 = ssub.s32 2048, 2048
          %3087 = vsyncadd %s3077, %s3086
          %s3088 = smul.addr %s31, 32
          %s3089 = sadd.s32 %s3084, %s3088
          %s3090 = smul.addr %s3089, 128
          %s3091 = scalar_lea.hbm %s5, %s3090
          %s3092 = sshll.u32 %s3080, 4
          %s3093 = int_to_ptr.vmem [resolvable:$true] %s3092
          %3098 = dma.vmem_to_hbm [thread:$0]  %s3093, 2048, %s3091, %s3077, 128, 128, 8
        $region64: #{tpu_custom_call.1} parent=39 // pred_fallthru
          _
      $region40: #{tpu_custom_call.1} parent=5 // pred_fallthru
        _
      %p3099 = scmp.le.s32.totalorder 2, %s22
      // Predicated region
      $region65: #{tpu_custom_call.1} parent=5 // pred_check
        %p3100 = pneg %p3099
      $region66: #{tpu_custom_call.1} parent=5 // pred_check_branch
        %3102 = sbr.rel (%p3100) target = $region68
      $region67: #{tpu_custom_call.1} parent=5 // pred_region
        %s3103 = ssub.s32 %s22, 2
        // Predicated region
        $region69: #{tpu_custom_call.1} parent=67 // pred_check
          %p3104 = pneg %p182
        $region70: #{tpu_custom_call.1} parent=67 // pred_check_branch
          %3106 = sbr.rel (%p3104) target = $region72
        $region71: #{tpu_custom_call.1} parent=67 // pred_region
          %s3107 = sand.u32 %s167, 1
          %s3108 = scalar_lea.sflag [#allocation6], %s3107
          %s3109 = sand.u32 %s167, 1
          %s3110 = smul.addr %s3109, 128
          %s3111 = scalar_lea.vmem [#allocation12], %s3110
          %3112 = dma.done %s3108, 2048
        $region72: #{tpu_custom_call.1} parent=67 // pred_fallthru
          _
      $region68: #{tpu_custom_call.1} parent=5 // pred_fallthru
        _
    $region6: #{tpu_custom_call.1} parent=1 // loop_footer
      %s26 = sadd.s32 1, %s22
    $region7: #{tpu_custom_call.1} parent=1 // loop_footer_branch
      %21 = sbr.rel target = $region3
    $region8: #{tpu_custom_call.1} parent=1 // loop_exit
      _
    %3113 = vsyncpa [#allocation5], 1
    %s3114 = scalar_lea.sflag [#allocation5], 1
    %3115 = vsyncpa %s3114, 1
    %3116 = vsyncpa [#allocation8], 1
    %s3117 = scalar_lea.sflag [#allocation8], 1
    %3118 = vsyncpa %s3117, 1
    %3119 = vsyncpa [#allocation11], 1
    %3120 = vsyncpa [#allocation6], 1
    %s3121 = scalar_lea.sflag [#allocation6], 1
    %3122 = vsyncpa %s3121, 1

</llo_original>
